<compile_context>
chip_gen: v7x
topology: tpu7x:2x2x1
jax: 0.10.0
libtpu: 0.0.40
codegen_flags: <defaults>
</compile_context>

<pallas_src>
import functools

import jax
import jax.numpy as jnp
from jax.experimental import pallas as pl
from jax.experimental.pallas import tpu as pltpu

D_MODEL = 384
NUM_HEADS = 6
HEAD_SIZE = D_MODEL // NUM_HEADS  # 64
CONTEXT_SIZE = 100

NEG_BIG = -1e30  # finite large-negative mask value (avoids -inf - -inf = NaN hazards)


def _round_up(x, m):
    return ((x + m - 1) // m) * m


def multihead_kernel(x_ref, wqkv_ref, wp_ref, bp_ref, o_ref, av_ref, *,
                     seq_len, num_heads, head_size):
    """One grid step: block_b batch elements of full multi-head causal attention."""
    Bb, Tk, C = x_ref.shape          # keys/values padded to a multiple of 128
    Tq = o_ref.shape[1]              # queries padded only to a multiple of 16
    H, hs = num_heads, head_size

    # ---- Fused QKV projection: one wide bf16 MXU matmul (M=Bb*Tk, K=C, N=3*C) ----
    x2d = x_ref[...].reshape(Bb * Tk, C)                       # bf16
    qkv = jnp.dot(x2d, wqkv_ref[...],
                  preferred_element_type=jnp.float32)          # f32 accumulate
    qkv = qkv.astype(jnp.bfloat16).reshape(Bb, Tk, 3 * C)

    # ---- Causal + pad-column mask, built once per grid step (static shapes) ----
    row = jax.lax.broadcasted_iota(jnp.int32, (Tq, Tk), 0)
    col = jax.lax.broadcasted_iota(jnp.int32, (Tq, Tk), 1)
    valid = (row >= col) & (col < seq_len)                     # col 0 always kept

    # ---- Per-head attention, batched over the block_b batch dim ----
    for h in range(H):                                         # 6 heads, static unroll
        q = qkv[:, :Tq, h * hs:(h + 1) * hs]                   # (Bb, Tq, hs); scale folded in Wq
        k = qkv[:, :, C + h * hs:C + (h + 1) * hs]             # (Bb, Tk, hs)
        v = qkv[:, :, 2 * C + h * hs:2 * C + (h + 1) * hs]     # (Bb, Tk, hs)

        s = jnp.einsum('bqd,bkd->bqk', q, k,
                       preferred_element_type=jnp.float32)     # (Bb, Tq, Tk) f32
        s = jnp.where(valid, s, NEG_BIG)

        # Softmax in f32; normalization deferred until after P@V (smaller tensor).
        s = s - jnp.max(s, axis=-1, keepdims=True)
        p = jnp.exp(s)
        denom = jnp.sum(p, axis=-1, keepdims=True)             # (Bb, Tq, 1)
        # (attention dropout: identity in eval mode)

        av = jnp.einsum('bqk,bkd->bqd', p.astype(jnp.bfloat16), v,
                        preferred_element_type=jnp.float32)    # (Bb, Tq, hs)
        av = av * pl.reciprocal(denom, approx=True)            # EUP reciprocal

        av_ref[:, h * hs:(h + 1) * hs] = (
            av.reshape(Bb * Tq, hs).astype(jnp.bfloat16))

    # ---- Single lane-dense output projection: (Bb*Tq, C) @ (C, C), K = 384 ----
    proj = jnp.dot(av_ref[...], wp_ref[...],
                   preferred_element_type=jnp.float32)
    out = proj + bp_ref[...]                                   # bias broadcast (1, C)
    # (projection dropout: identity in eval mode)
    o_ref[...] = out.reshape(Bb, Tq, C).astype(o_ref.dtype)


def pack_weights(wq, wk, wv, wp_t, bp):
    """One-time weight packing, OUTSIDE the hot forward path.

    wq/wk/wv: (H, C, hs); wp_t: (C, C) already transposed for x @ W; bp: (1, C).
    The PyTorch quirk (scores multiplied by sqrt(head_size)) is folded into Wq.
    """
    H, C, hs = wq.shape
    scale = float(hs) ** 0.5
    pack = lambda w: jnp.transpose(w, (1, 0, 2)).reshape(C, H * hs)  # (H,C,hs)->(C,H*hs)
    wqkv = jnp.concatenate([pack(wq * scale), pack(wk), pack(wv)],
                           axis=-1).astype(jnp.bfloat16)             # (C, 3*C)
    return wqkv, wp_t.astype(jnp.bfloat16), bp.astype(jnp.float32)


def _choose_block_b(B, requested):
    """Clamp block_b to B and keep >= 2 grid steps when possible (v7x 2 TCs)."""
    bb = max(1, min(requested, B))
    while bb > 1 and -(-B // bb) < 2:
        bb = max(1, bb // 2)
    return bb


@functools.partial(jax.jit, static_argnames=("block_b", "num_heads"))
def multihead_forward(x, wqkv, wp_bf, bp_f32, *, block_b=8, num_heads=NUM_HEADS):
    """x: (B, T, C) f32; wqkv: (C, 3C) bf16; wp_bf: (C, C) bf16; bp_f32: (1, C) f32."""
    B, T, C = x.shape
    hs = C // num_heads

    bb = _choose_block_b(B, block_b)
    Tk = _round_up(T, 128)   # key/value rows: lane/MXU-native padding
    Tq = _round_up(T, 16)    # query rows: sublane padding only (decoupled)
    Bp = _round_up(B, bb)

    x_p = jnp.pad(x, ((0, Bp - B), (0, Tk - T), (0, 0))).astype(jnp.bfloat16)

    kernel = functools.partial(multihead_kernel, seq_len=T,
                               num_heads=num_heads, head_size=hs)

    # VMEM budget (per step, double-buffered): weights ~2.3 MiB + block_b * (96 KiB
    # in + ~Tq/128*192 KiB out) -> far under the 32 MiB scoped default at bb<=8.
    out = pl.pallas_call(
        kernel,
        out_shape=jax.ShapeDtypeStruct((Bp, Tq, C), x.dtype),
        grid_spec=pltpu.PrefetchScalarGridSpec(
            num_scalar_prefetch=0,
            grid=(Bp // bb,),
            in_specs=[
                pl.BlockSpec((bb, Tk, C), lambda i: (i, 0, 0)),      # activations
                pl.BlockSpec((C, 3 * C), lambda i: (0, 0)),          # fused Wqkv (resident)
                pl.BlockSpec((C, C), lambda i: (0, 0)),              # Wp^T (resident)
                pl.BlockSpec((1, C), lambda i: (0, 0)),              # bias
            ],
            out_specs=pl.BlockSpec((bb, Tq, C), lambda i: (i, 0, 0)),
            scratch_shapes=[pltpu.VMEM((bb * Tq, C), jnp.bfloat16)],  # per-head AV slab
        ),
        compiler_params=pltpu.CompilerParams(
            dimension_semantics=("parallel",),
        ),
    )(x_p, wqkv, wp_bf, bp_f32)

    return out[:B, :T, :]


def reference_forward(x, wq, wk, wv, wp_t, bp):
    """Pure-JAX f32 reference mirroring the PyTorch module (eval mode)."""
    B, T, C = x.shape
    H, _, hs = wq.shape
    inv_scale = float(hs) ** (-0.5)
    causal = jnp.tril(jnp.ones((T, T), dtype=bool))
    outs = []
    for h in range(H):
        q = x @ wq[h]
        k = x @ wk[h]
        v = x @ wv[h]
        wei = (q @ jnp.swapaxes(k, -2, -1)) / inv_scale
        wei = jnp.where(causal, wei, -jnp.inf)
        wei = jax.nn.softmax(wei, axis=-1)
        outs.append(wei @ v)
    out = jnp.concatenate(outs, axis=-1)
    return out @ wp_t + bp[0]


if __name__ == "__main__":
    key = jax.random.PRNGKey(0)
    kx, kq, kk, kv, kp, kb = jax.random.split(key, 6)

    B, T = 4, 8  # small shapes; T <= context_size. B=4 exercises block_b=2, grid=2.
    C, H, hs = D_MODEL, NUM_HEADS, HEAD_SIZE
    assert T <= CONTEXT_SIZE

    x = jax.random.normal(kx, (B, T, C), dtype=jnp.float32)

    # Deterministic parameter init (synthetic; shapes from the module's __init__).
    wq = 0.02 * jax.random.normal(kq, (H, C, hs), dtype=jnp.float32)
    wk = 0.02 * jax.random.normal(kk, (H, C, hs), dtype=jnp.float32)
    wv = 0.02 * jax.random.normal(kv, (H, C, hs), dtype=jnp.float32)
    # nn.Linear(head_size*H, d_model): weight (C, C), bias (C,). Pass weight transposed.
    wp_t = 0.02 * jax.random.normal(kp, (C, C), dtype=jnp.float32)
    bp = 0.02 * jax.random.normal(kb, (1, C), dtype=jnp.float32)

    # One-time weight packing outside the hot forward path.
    wqkv, wp_bf, bp_f32 = pack_weights(wq, wk, wv, wp_t, bp)

    out = multihead_forward(x, wqkv, wp_bf, bp_f32)
    out = jax.block_until_ready(out)

    ref = reference_forward(x, wq, wk, wv, wp_t, bp)
    assert out.shape == (B, T, C)
    # bf16 matmul operands + approx reciprocal -> looser tolerance than f32-only.
    max_err = float(jnp.max(jnp.abs(out - ref)))
    assert jnp.allclose(out, ref, atol=5e-2, rtol=5e-2), f"max abs err {max_err}"

    print("KERNEL_OK")
</pallas_src>

<mosaic_0001>
module attributes {stable_mosaic.version = 11 : i64} {
  func.func @multihead_kernel(%arg0: i32, %arg1: memref<2x128x384xbf16, #tpu.memory_space<vmem>>, %arg2: memref<384x1152xbf16, #tpu.memory_space<vmem>>, %arg3: memref<384x384xbf16, #tpu.memory_space<vmem>>, %arg4: memref<1x384xf32, #tpu.memory_space<vmem>>, %arg5: memref<2x16x384xf32, #tpu.memory_space<vmem>>, %arg6: memref<32x384xbf16, #tpu.memory_space<vmem>>) attributes {dimension_semantics = [#tpu.dimension_semantics<parallel>], iteration_bounds = array<i64: 2>, scalar_prefetch = 0 : i64, scratch_operands = 1 : i64, tpu.core_type = #tpu.core_type<tc>, window_params = [{transform_indices = @transform_0, window_bounds = array<i64: 2, 128, 384>}, {pipeline_mode = #tpu.pipeline_mode<synchronous>, transform_indices = @transform_1, window_bounds = array<i64: 384, 1152>}, {pipeline_mode = #tpu.pipeline_mode<synchronous>, transform_indices = @transform_2, window_bounds = array<i64: 384, 384>}, {pipeline_mode = #tpu.pipeline_mode<synchronous>, transform_indices = @transform_3, window_bounds = array<i64: 1, 384>}, {transform_indices = @transform_4, window_bounds = array<i64: 2, 16, 384>}]} {
    %c0 = arith.constant 0 : index
    %c0_0 = arith.constant 0 : index
    %c0_1 = arith.constant 0 : index
    %0 = vector.load %arg1[%c0, %c0_0, %c0_1] : memref<2x128x384xbf16, #tpu.memory_space<vmem>>, vector<2x128x384xbf16>
    %1 = vector.shape_cast %0 : vector<2x128x384xbf16> to vector<256x384xbf16>
    %c0_2 = arith.constant 0 : index
    %c0_3 = arith.constant 0 : index
    %2 = vector.load %arg2[%c0_2, %c0_3] : memref<384x1152xbf16, #tpu.memory_space<vmem>>, vector<384x1152xbf16>
    %cst = arith.constant dense<0.000000e+00> : vector<256x1152xf32>
    %3 = tpu.matmul %1, %2, %cst {dimension_numbers = #tpu.dot_dimension_numbers<[1], [0], [0], [1], [0, 0, 1, 1], [], []>} : vector<256x384xbf16>, vector<384x1152xbf16>, vector<256x1152xf32> -> vector<256x1152xf32>
    %4 = arith.truncf %3 : vector<256x1152xf32> to vector<256x1152xbf16>
    %5 = vector.shape_cast %4 : vector<256x1152xbf16> to vector<2x128x1152xbf16>
    %6 = tpu.iota {dimensions = array<i32: 0>} : vector<16x128xi32>
    %7 = tpu.iota {dimensions = array<i32: 1>} : vector<16x128xi32>
    %8 = arith.cmpi sge, %6, %7 : vector<16x128xi32>
    %c8_i32 = arith.constant 8 : i32
    %9 = vector.broadcast %c8_i32 : i32 to vector<16x128xi32>
    %10 = arith.cmpi slt, %7, %9 : vector<16x128xi32>
    %11 = arith.andi %8, %10 : vector<16x128xi1>
    %12 = vector.extract_strided_slice %5 {offsets = [0, 0, 0], sizes = [2, 16, 64], strides = [1, 1, 1]} : vector<2x128x1152xbf16> to vector<2x16x64xbf16>
    %13 = vector.extract_strided_slice %5 {offsets = [0, 0, 384], sizes = [2, 128, 64], strides = [1, 1, 1]} : vector<2x128x1152xbf16> to vector<2x128x64xbf16>
    %14 = vector.extract_strided_slice %5 {offsets = [0, 0, 768], sizes = [2, 128, 64], strides = [1, 1, 1]} : vector<2x128x1152xbf16> to vector<2x128x64xbf16>
    "tpu.trace_start"() <{level = 10 : i32, message = "bqd,bkd->bqk"}> : () -> ()
    %cst_4 = arith.constant dense<0.000000e+00> : vector<2x16x128xf32>
    %15 = tpu.matmul %12, %13, %cst_4 {dimension_numbers = #tpu.dot_dimension_numbers<[2], [2], [1], [1], [0, 0, 0, 1, 1, 1], [0], [0]>} : vector<2x16x64xbf16>, vector<2x128x64xbf16>, vector<2x16x128xf32> -> vector<2x16x128xf32>
    %cst_5 = arith.constant -1.000000e+30 : f32
    "tpu.trace_stop"() : () -> ()
    %16 = vector.shape_cast %11 : vector<16x128xi1> to vector<1x16x128xi1>
    %17 = vector.broadcast %16 : vector<1x16x128xi1> to vector<2x16x128xi1>
    %18 = vector.broadcast %cst_5 : f32 to vector<2x16x128xf32>
    %19 = arith.select %17, %15, %18 : vector<2x16x128xi1>, vector<2x16x128xf32>
    %cst_6 = arith.constant dense<0xFF800000> : vector<2x16xf32>
    %20 = vector.multi_reduction <maximumf>, %19, %cst_6 [2] : vector<2x16x128xf32> to vector<2x16xf32>
    %21 = vector.shape_cast %20 : vector<2x16xf32> to vector<2x16x1xf32>
    %22 = vector.broadcast %21 : vector<2x16x1xf32> to vector<2x16x128xf32>
    %23 = arith.subf %19, %22 : vector<2x16x128xf32>
    %24 = math.exp %23 : vector<2x16x128xf32>
    %cst_7 = arith.constant dense<0.000000e+00> : vector<2x16xf32>
    %25 = vector.multi_reduction <add>, %24, %cst_7 [2] : vector<2x16x128xf32> to vector<2x16xf32>
    %26 = vector.shape_cast %25 : vector<2x16xf32> to vector<2x16x1xf32>
    %27 = arith.truncf %24 : vector<2x16x128xf32> to vector<2x16x128xbf16>
    "tpu.trace_start"() <{level = 10 : i32, message = "bqk,bkd->bqd"}> : () -> ()
    %cst_8 = arith.constant dense<0.000000e+00> : vector<2x16x64xf32>
    %28 = tpu.matmul %27, %14, %cst_8 {dimension_numbers = #tpu.dot_dimension_numbers<[2], [1], [1], [2], [0, 0, 0, 1, 1, 2], [0], [0]>} : vector<2x16x128xbf16>, vector<2x128x64xbf16>, vector<2x16x64xf32> -> vector<2x16x64xf32>
    "tpu.trace_stop"() : () -> ()
    %29 = tpu.reciprocal %26 {approx = true} : vector<2x16x1xf32> -> vector<2x16x1xf32>
    %30 = vector.broadcast %29 : vector<2x16x1xf32> to vector<2x16x64xf32>
    %31 = arith.mulf %28, %30 : vector<2x16x64xf32>
    %32 = vector.shape_cast %31 : vector<2x16x64xf32> to vector<32x64xf32>
    %33 = arith.truncf %32 : vector<32x64xf32> to vector<32x64xbf16>
    %c0_9 = arith.constant 0 : index
    %c0_10 = arith.constant 0 : index
    %34 = vector.load %arg6[%c0_9, %c0_10] : memref<32x384xbf16, #tpu.memory_space<vmem>>, vector<32x64xbf16>
    tpu.vector_store %arg6[%c0_9, %c0_10], %33 {strides = array<i32>} : memref<32x384xbf16, #tpu.memory_space<vmem>>, vector<32x64xbf16>,
    %35 = vector.extract_strided_slice %5 {offsets = [0, 0, 64], sizes = [2, 16, 64], strides = [1, 1, 1]} : vector<2x128x1152xbf16> to vector<2x16x64xbf16>
    %36 = vector.extract_strided_slice %5 {offsets = [0, 0, 448], sizes = [2, 128, 64], strides = [1, 1, 1]} : vector<2x128x1152xbf16> to vector<2x128x64xbf16>
    %37 = vector.extract_strided_slice %5 {offsets = [0, 0, 832], sizes = [2, 128, 64], strides = [1, 1, 1]} : vector<2x128x1152xbf16> to vector<2x128x64xbf16>
    "tpu.trace_start"() <{level = 10 : i32, message = "bqd,bkd->bqk"}> : () -> ()
    %cst_11 = arith.constant dense<0.000000e+00> : vector<2x16x128xf32>
    %38 = tpu.matmul %35, %36, %cst_11 {dimension_numbers = #tpu.dot_dimension_numbers<[2], [2], [1], [1], [0, 0, 0, 1, 1, 1], [0], [0]>} : vector<2x16x64xbf16>, vector<2x128x64xbf16>, vector<2x16x128xf32> -> vector<2x16x128xf32>
    %cst_12 = arith.constant -1.000000e+30 : f32
    "tpu.trace_stop"() : () -> ()
    %39 = vector.shape_cast %11 : vector<16x128xi1> to vector<1x16x128xi1>
    %40 = vector.broadcast %39 : vector<1x16x128xi1> to vector<2x16x128xi1>
    %41 = vector.broadcast %cst_12 : f32 to vector<2x16x128xf32>
    %42 = arith.select %40, %38, %41 : vector<2x16x128xi1>, vector<2x16x128xf32>
    %cst_13 = arith.constant dense<0xFF800000> : vector<2x16xf32>
    %43 = vector.multi_reduction <maximumf>, %42, %cst_13 [2] : vector<2x16x128xf32> to vector<2x16xf32>
    %44 = vector.shape_cast %43 : vector<2x16xf32> to vector<2x16x1xf32>
    %45 = vector.broadcast %44 : vector<2x16x1xf32> to vector<2x16x128xf32>
    %46 = arith.subf %42, %45 : vector<2x16x128xf32>
    %47 = math.exp %46 : vector<2x16x128xf32>
    %cst_14 = arith.constant dense<0.000000e+00> : vector<2x16xf32>
    %48 = vector.multi_reduction <add>, %47, %cst_14 [2] : vector<2x16x128xf32> to vector<2x16xf32>
    %49 = vector.shape_cast %48 : vector<2x16xf32> to vector<2x16x1xf32>
    %50 = arith.truncf %47 : vector<2x16x128xf32> to vector<2x16x128xbf16>
    "tpu.trace_start"() <{level = 10 : i32, message = "bqk,bkd->bqd"}> : () -> ()
    %cst_15 = arith.constant dense<0.000000e+00> : vector<2x16x64xf32>
    %51 = tpu.matmul %50, %37, %cst_15 {dimension_numbers = #tpu.dot_dimension_numbers<[2], [1], [1], [2], [0, 0, 0, 1, 1, 2], [0], [0]>} : vector<2x16x128xbf16>, vector<2x128x64xbf16>, vector<2x16x64xf32> -> vector<2x16x64xf32>
    "tpu.trace_stop"() : () -> ()
    %52 = tpu.reciprocal %49 {approx = true} : vector<2x16x1xf32> -> vector<2x16x1xf32>
    %53 = vector.broadcast %52 : vector<2x16x1xf32> to vector<2x16x64xf32>
    %54 = arith.mulf %51, %53 : vector<2x16x64xf32>
    %55 = vector.shape_cast %54 : vector<2x16x64xf32> to vector<32x64xf32>
    %56 = arith.truncf %55 : vector<32x64xf32> to vector<32x64xbf16>
    %c0_16 = arith.constant 0 : index
    %c64 = arith.constant 64 : index
    %57 = vector.load %arg6[%c0_16, %c64] : memref<32x384xbf16, #tpu.memory_space<vmem>>, vector<32x64xbf16>
    tpu.vector_store %arg6[%c0_16, %c64], %56 {strides = array<i32>} : memref<32x384xbf16, #tpu.memory_space<vmem>>, vector<32x64xbf16>,
    %58 = vector.extract_strided_slice %5 {offsets = [0, 0, 128], sizes = [2, 16, 64], strides = [1, 1, 1]} : vector<2x128x1152xbf16> to vector<2x16x64xbf16>
    %59 = vector.extract_strided_slice %5 {offsets = [0, 0, 512], sizes = [2, 128, 64], strides = [1, 1, 1]} : vector<2x128x1152xbf16> to vector<2x128x64xbf16>
    %60 = vector.extract_strided_slice %5 {offsets = [0, 0, 896], sizes = [2, 128, 64], strides = [1, 1, 1]} : vector<2x128x1152xbf16> to vector<2x128x64xbf16>
    "tpu.trace_start"() <{level = 10 : i32, message = "bqd,bkd->bqk"}> : () -> ()
    %cst_17 = arith.constant dense<0.000000e+00> : vector<2x16x128xf32>
    %61 = tpu.matmul %58, %59, %cst_17 {dimension_numbers = #tpu.dot_dimension_numbers<[2], [2], [1], [1], [0, 0, 0, 1, 1, 1], [0], [0]>} : vector<2x16x64xbf16>, vector<2x128x64xbf16>, vector<2x16x128xf32> -> vector<2x16x128xf32>
    %cst_18 = arith.constant -1.000000e+30 : f32
    "tpu.trace_stop"() : () -> ()
    %62 = vector.shape_cast %11 : vector<16x128xi1> to vector<1x16x128xi1>
    %63 = vector.broadcast %62 : vector<1x16x128xi1> to vector<2x16x128xi1>
    %64 = vector.broadcast %cst_18 : f32 to vector<2x16x128xf32>
    %65 = arith.select %63, %61, %64 : vector<2x16x128xi1>, vector<2x16x128xf32>
    %cst_19 = arith.constant dense<0xFF800000> : vector<2x16xf32>
    %66 = vector.multi_reduction <maximumf>, %65, %cst_19 [2] : vector<2x16x128xf32> to vector<2x16xf32>
    %67 = vector.shape_cast %66 : vector<2x16xf32> to vector<2x16x1xf32>
    %68 = vector.broadcast %67 : vector<2x16x1xf32> to vector<2x16x128xf32>
    %69 = arith.subf %65, %68 : vector<2x16x128xf32>
    %70 = math.exp %69 : vector<2x16x128xf32>
    %cst_20 = arith.constant dense<0.000000e+00> : vector<2x16xf32>
    %71 = vector.multi_reduction <add>, %70, %cst_20 [2] : vector<2x16x128xf32> to vector<2x16xf32>
    %72 = vector.shape_cast %71 : vector<2x16xf32> to vector<2x16x1xf32>
    %73 = arith.truncf %70 : vector<2x16x128xf32> to vector<2x16x128xbf16>
    "tpu.trace_start"() <{level = 10 : i32, message = "bqk,bkd->bqd"}> : () -> ()
    %cst_21 = arith.constant dense<0.000000e+00> : vector<2x16x64xf32>
    %74 = tpu.matmul %73, %60, %cst_21 {dimension_numbers = #tpu.dot_dimension_numbers<[2], [1], [1], [2], [0, 0, 0, 1, 1, 2], [0], [0]>} : vector<2x16x128xbf16>, vector<2x128x64xbf16>, vector<2x16x64xf32> -> vector<2x16x64xf32>
    "tpu.trace_stop"() : () -> ()
    %75 = tpu.reciprocal %72 {approx = true} : vector<2x16x1xf32> -> vector<2x16x1xf32>
    %76 = vector.broadcast %75 : vector<2x16x1xf32> to vector<2x16x64xf32>
    %77 = arith.mulf %74, %76 : vector<2x16x64xf32>
    %78 = vector.shape_cast %77 : vector<2x16x64xf32> to vector<32x64xf32>
    %79 = arith.truncf %78 : vector<32x64xf32> to vector<32x64xbf16>
    %c0_22 = arith.constant 0 : index
    %c128 = arith.constant 128 : index
    %80 = vector.load %arg6[%c0_22, %c128] : memref<32x384xbf16, #tpu.memory_space<vmem>>, vector<32x64xbf16>
    tpu.vector_store %arg6[%c0_22, %c128], %79 {strides = array<i32>} : memref<32x384xbf16, #tpu.memory_space<vmem>>, vector<32x64xbf16>,
    %81 = vector.extract_strided_slice %5 {offsets = [0, 0, 192], sizes = [2, 16, 64], strides = [1, 1, 1]} : vector<2x128x1152xbf16> to vector<2x16x64xbf16>
    %82 = vector.extract_strided_slice %5 {offsets = [0, 0, 576], sizes = [2, 128, 64], strides = [1, 1, 1]} : vector<2x128x1152xbf16> to vector<2x128x64xbf16>
    %83 = vector.extract_strided_slice %5 {offsets = [0, 0, 960], sizes = [2, 128, 64], strides = [1, 1, 1]} : vector<2x128x1152xbf16> to vector<2x128x64xbf16>
    "tpu.trace_start"() <{level = 10 : i32, message = "bqd,bkd->bqk"}> : () -> ()
    %cst_23 = arith.constant dense<0.000000e+00> : vector<2x16x128xf32>
    %84 = tpu.matmul %81, %82, %cst_23 {dimension_numbers = #tpu.dot_dimension_numbers<[2], [2], [1], [1], [0, 0, 0, 1, 1, 1], [0], [0]>} : vector<2x16x64xbf16>, vector<2x128x64xbf16>, vector<2x16x128xf32> -> vector<2x16x128xf32>
    %cst_24 = arith.constant -1.000000e+30 : f32
    "tpu.trace_stop"() : () -> ()
    %85 = vector.shape_cast %11 : vector<16x128xi1> to vector<1x16x128xi1>
    %86 = vector.broadcast %85 : vector<1x16x128xi1> to vector<2x16x128xi1>
    %87 = vector.broadcast %cst_24 : f32 to vector<2x16x128xf32>
    %88 = arith.select %86, %84, %87 : vector<2x16x128xi1>, vector<2x16x128xf32>
    %cst_25 = arith.constant dense<0xFF800000> : vector<2x16xf32>
    %89 = vector.multi_reduction <maximumf>, %88, %cst_25 [2] : vector<2x16x128xf32> to vector<2x16xf32>
    %90 = vector.shape_cast %89 : vector<2x16xf32> to vector<2x16x1xf32>
    %91 = vector.broadcast %90 : vector<2x16x1xf32> to vector<2x16x128xf32>
    %92 = arith.subf %88, %91 : vector<2x16x128xf32>
    %93 = math.exp %92 : vector<2x16x128xf32>
    %cst_26 = arith.constant dense<0.000000e+00> : vector<2x16xf32>
    %94 = vector.multi_reduction <add>, %93, %cst_26 [2] : vector<2x16x128xf32> to vector<2x16xf32>
    %95 = vector.shape_cast %94 : vector<2x16xf32> to vector<2x16x1xf32>
    %96 = arith.truncf %93 : vector<2x16x128xf32> to vector<2x16x128xbf16>
    "tpu.trace_start"() <{level = 10 : i32, message = "bqk,bkd->bqd"}> : () -> ()
    %cst_27 = arith.constant dense<0.000000e+00> : vector<2x16x64xf32>
    %97 = tpu.matmul %96, %83, %cst_27 {dimension_numbers = #tpu.dot_dimension_numbers<[2], [1], [1], [2], [0, 0, 0, 1, 1, 2], [0], [0]>} : vector<2x16x128xbf16>, vector<2x128x64xbf16>, vector<2x16x64xf32> -> vector<2x16x64xf32>
    "tpu.trace_stop"() : () -> ()
    %98 = tpu.reciprocal %95 {approx = true} : vector<2x16x1xf32> -> vector<2x16x1xf32>
    %99 = vector.broadcast %98 : vector<2x16x1xf32> to vector<2x16x64xf32>
    %100 = arith.mulf %97, %99 : vector<2x16x64xf32>
    %101 = vector.shape_cast %100 : vector<2x16x64xf32> to vector<32x64xf32>
    %102 = arith.truncf %101 : vector<32x64xf32> to vector<32x64xbf16>
    %c0_28 = arith.constant 0 : index
    %c192 = arith.constant 192 : index
    %103 = vector.load %arg6[%c0_28, %c192] : memref<32x384xbf16, #tpu.memory_space<vmem>>, vector<32x64xbf16>
    tpu.vector_store %arg6[%c0_28, %c192], %102 {strides = array<i32>} : memref<32x384xbf16, #tpu.memory_space<vmem>>, vector<32x64xbf16>,
    %104 = vector.extract_strided_slice %5 {offsets = [0, 0, 256], sizes = [2, 16, 64], strides = [1, 1, 1]} : vector<2x128x1152xbf16> to vector<2x16x64xbf16>
    %105 = vector.extract_strided_slice %5 {offsets = [0, 0, 640], sizes = [2, 128, 64], strides = [1, 1, 1]} : vector<2x128x1152xbf16> to vector<2x128x64xbf16>
    %106 = vector.extract_strided_slice %5 {offsets = [0, 0, 1024], sizes = [2, 128, 64], strides = [1, 1, 1]} : vector<2x128x1152xbf16> to vector<2x128x64xbf16>
    "tpu.trace_start"() <{level = 10 : i32, message = "bqd,bkd->bqk"}> : () -> ()
    %cst_29 = arith.constant dense<0.000000e+00> : vector<2x16x128xf32>
    %107 = tpu.matmul %104, %105, %cst_29 {dimension_numbers = #tpu.dot_dimension_numbers<[2], [2], [1], [1], [0, 0, 0, 1, 1, 1], [0], [0]>} : vector<2x16x64xbf16>, vector<2x128x64xbf16>, vector<2x16x128xf32> -> vector<2x16x128xf32>
    %cst_30 = arith.constant -1.000000e+30 : f32
    "tpu.trace_stop"() : () -> ()
    %108 = vector.shape_cast %11 : vector<16x128xi1> to vector<1x16x128xi1>
    %109 = vector.broadcast %108 : vector<1x16x128xi1> to vector<2x16x128xi1>
    %110 = vector.broadcast %cst_30 : f32 to vector<2x16x128xf32>
    %111 = arith.select %109, %107, %110 : vector<2x16x128xi1>, vector<2x16x128xf32>
    %cst_31 = arith.constant dense<0xFF800000> : vector<2x16xf32>
    %112 = vector.multi_reduction <maximumf>, %111, %cst_31 [2] : vector<2x16x128xf32> to vector<2x16xf32>
    %113 = vector.shape_cast %112 : vector<2x16xf32> to vector<2x16x1xf32>
    %114 = vector.broadcast %113 : vector<2x16x1xf32> to vector<2x16x128xf32>
    %115 = arith.subf %111, %114 : vector<2x16x128xf32>
    %116 = math.exp %115 : vector<2x16x128xf32>
    %cst_32 = arith.constant dense<0.000000e+00> : vector<2x16xf32>
    %117 = vector.multi_reduction <add>, %116, %cst_32 [2] : vector<2x16x128xf32> to vector<2x16xf32>
    %118 = vector.shape_cast %117 : vector<2x16xf32> to vector<2x16x1xf32>
    %119 = arith.truncf %116 : vector<2x16x128xf32> to vector<2x16x128xbf16>
    "tpu.trace_start"() <{level = 10 : i32, message = "bqk,bkd->bqd"}> : () -> ()
    %cst_33 = arith.constant dense<0.000000e+00> : vector<2x16x64xf32>
    %120 = tpu.matmul %119, %106, %cst_33 {dimension_numbers = #tpu.dot_dimension_numbers<[2], [1], [1], [2], [0, 0, 0, 1, 1, 2], [0], [0]>} : vector<2x16x128xbf16>, vector<2x128x64xbf16>, vector<2x16x64xf32> -> vector<2x16x64xf32>
    "tpu.trace_stop"() : () -> ()
    %121 = tpu.reciprocal %118 {approx = true} : vector<2x16x1xf32> -> vector<2x16x1xf32>
    %122 = vector.broadcast %121 : vector<2x16x1xf32> to vector<2x16x64xf32>
    %123 = arith.mulf %120, %122 : vector<2x16x64xf32>
    %124 = vector.shape_cast %123 : vector<2x16x64xf32> to vector<32x64xf32>
    %125 = arith.truncf %124 : vector<32x64xf32> to vector<32x64xbf16>
    %c0_34 = arith.constant 0 : index
    %c256 = arith.constant 256 : index
    %126 = vector.load %arg6[%c0_34, %c256] : memref<32x384xbf16, #tpu.memory_space<vmem>>, vector<32x64xbf16>
    tpu.vector_store %arg6[%c0_34, %c256], %125 {strides = array<i32>} : memref<32x384xbf16, #tpu.memory_space<vmem>>, vector<32x64xbf16>,
    %127 = vector.extract_strided_slice %5 {offsets = [0, 0, 320], sizes = [2, 16, 64], strides = [1, 1, 1]} : vector<2x128x1152xbf16> to vector<2x16x64xbf16>
    %128 = vector.extract_strided_slice %5 {offsets = [0, 0, 704], sizes = [2, 128, 64], strides = [1, 1, 1]} : vector<2x128x1152xbf16> to vector<2x128x64xbf16>
    %129 = vector.extract_strided_slice %5 {offsets = [0, 0, 1088], sizes = [2, 128, 64], strides = [1, 1, 1]} : vector<2x128x1152xbf16> to vector<2x128x64xbf16>
    "tpu.trace_start"() <{level = 10 : i32, message = "bqd,bkd->bqk"}> : () -> ()
    %cst_35 = arith.constant dense<0.000000e+00> : vector<2x16x128xf32>
    %130 = tpu.matmul %127, %128, %cst_35 {dimension_numbers = #tpu.dot_dimension_numbers<[2], [2], [1], [1], [0, 0, 0, 1, 1, 1], [0], [0]>} : vector<2x16x64xbf16>, vector<2x128x64xbf16>, vector<2x16x128xf32> -> vector<2x16x128xf32>
    %cst_36 = arith.constant -1.000000e+30 : f32
    "tpu.trace_stop"() : () -> ()
    %131 = vector.shape_cast %11 : vector<16x128xi1> to vector<1x16x128xi1>
    %132 = vector.broadcast %131 : vector<1x16x128xi1> to vector<2x16x128xi1>
    %133 = vector.broadcast %cst_36 : f32 to vector<2x16x128xf32>
    %134 = arith.select %132, %130, %133 : vector<2x16x128xi1>, vector<2x16x128xf32>
    %cst_37 = arith.constant dense<0xFF800000> : vector<2x16xf32>
    %135 = vector.multi_reduction <maximumf>, %134, %cst_37 [2] : vector<2x16x128xf32> to vector<2x16xf32>
    %136 = vector.shape_cast %135 : vector<2x16xf32> to vector<2x16x1xf32>
    %137 = vector.broadcast %136 : vector<2x16x1xf32> to vector<2x16x128xf32>
    %138 = arith.subf %134, %137 : vector<2x16x128xf32>
    %139 = math.exp %138 : vector<2x16x128xf32>
    %cst_38 = arith.constant dense<0.000000e+00> : vector<2x16xf32>
    %140 = vector.multi_reduction <add>, %139, %cst_38 [2] : vector<2x16x128xf32> to vector<2x16xf32>
    %141 = vector.shape_cast %140 : vector<2x16xf32> to vector<2x16x1xf32>
    %142 = arith.truncf %139 : vector<2x16x128xf32> to vector<2x16x128xbf16>
    "tpu.trace_start"() <{level = 10 : i32, message = "bqk,bkd->bqd"}> : () -> ()
    %cst_39 = arith.constant dense<0.000000e+00> : vector<2x16x64xf32>
    %143 = tpu.matmul %142, %129, %cst_39 {dimension_numbers = #tpu.dot_dimension_numbers<[2], [1], [1], [2], [0, 0, 0, 1, 1, 2], [0], [0]>} : vector<2x16x128xbf16>, vector<2x128x64xbf16>, vector<2x16x64xf32> -> vector<2x16x64xf32>
    "tpu.trace_stop"() : () -> ()
    %144 = tpu.reciprocal %141 {approx = true} : vector<2x16x1xf32> -> vector<2x16x1xf32>
    %145 = vector.broadcast %144 : vector<2x16x1xf32> to vector<2x16x64xf32>
    %146 = arith.mulf %143, %145 : vector<2x16x64xf32>
    %147 = vector.shape_cast %146 : vector<2x16x64xf32> to vector<32x64xf32>
    %148 = arith.truncf %147 : vector<32x64xf32> to vector<32x64xbf16>
    %c0_40 = arith.constant 0 : index
    %c320 = arith.constant 320 : index
    %149 = vector.load %arg6[%c0_40, %c320] : memref<32x384xbf16, #tpu.memory_space<vmem>>, vector<32x64xbf16>
    tpu.vector_store %arg6[%c0_40, %c320], %148 {strides = array<i32>} : memref<32x384xbf16, #tpu.memory_space<vmem>>, vector<32x64xbf16>,
    %c0_41 = arith.constant 0 : index
    %c0_42 = arith.constant 0 : index
    %150 = vector.load %arg6[%c0_41, %c0_42] : memref<32x384xbf16, #tpu.memory_space<vmem>>, vector<32x384xbf16>
    %c0_43 = arith.constant 0 : index
    %c0_44 = arith.constant 0 : index
    %151 = vector.load %arg3[%c0_43, %c0_44] : memref<384x384xbf16, #tpu.memory_space<vmem>>, vector<384x384xbf16>
    %cst_45 = arith.constant dense<0.000000e+00> : vector<32x384xf32>
    %152 = tpu.matmul %150, %151, %cst_45 {dimension_numbers = #tpu.dot_dimension_numbers<[1], [0], [0], [1], [0, 0, 1, 1], [], []>} : vector<32x384xbf16>, vector<384x384xbf16>, vector<32x384xf32> -> vector<32x384xf32>
    %c0_46 = arith.constant 0 : index
    %c0_47 = arith.constant 0 : index
    %153 = vector.load %arg4[%c0_46, %c0_47] : memref<1x384xf32, #tpu.memory_space<vmem>>, vector<1x384xf32>
    %154 = vector.broadcast %153 : vector<1x384xf32> to vector<32x384xf32>
    %155 = arith.addf %152, %154 : vector<32x384xf32>
    %156 = vector.shape_cast %155 : vector<32x384xf32> to vector<2x16x384xf32>
    %c0_48 = arith.constant 0 : index
    %c0_49 = arith.constant 0 : index
    %c0_50 = arith.constant 0 : index
    %157 = vector.load %arg5[%c0_48, %c0_49, %c0_50] : memref<2x16x384xf32, #tpu.memory_space<vmem>>, vector<2x16x384xf32>
    tpu.vector_store %arg5[%c0_48, %c0_49, %c0_50], %156 {strides = array<i32>} : memref<2x16x384xf32, #tpu.memory_space<vmem>>, vector<2x16x384xf32>,
    return
  }
  func.func @transform_0(%arg0: i32) -> (i32, i32, i32) {
    %c0_i32 = arith.constant 0 : i32
    %c0_i32_0 = arith.constant 0 : i32
    %c0_i32_1 = arith.constant 0 : i32
    return %arg0, %c0_i32, %c0_i32_0 : i32, i32, i32
  }
  func.func @transform_1(%arg0: i32) -> (i32, i32) {
    %c0_i32 = arith.constant 0 : i32
    %c0_i32_0 = arith.constant 0 : i32
    %c0_i32_1 = arith.constant 0 : i32
    return %c0_i32, %c0_i32_0 : i32, i32
  }
  func.func @transform_2(%arg0: i32) -> (i32, i32) {
    %c0_i32 = arith.constant 0 : i32
    %c0_i32_0 = arith.constant 0 : i32
    %c0_i32_1 = arith.constant 0 : i32
    return %c0_i32, %c0_i32_0 : i32, i32
  }
  func.func @transform_3(%arg0: i32) -> (i32, i32) {
    %c0_i32 = arith.constant 0 : i32
    %c0_i32_0 = arith.constant 0 : i32
    %c0_i32_1 = arith.constant 0 : i32
    return %c0_i32, %c0_i32_0 : i32, i32
  }
  func.func @transform_4(%arg0: i32) -> (i32, i32, i32) {
    %c0_i32 = arith.constant 0 : i32
    %c0_i32_0 = arith.constant 0 : i32
    %c0_i32_1 = arith.constant 0 : i32
    return %arg0, %c0_i32, %c0_i32_0 : i32, i32, i32
  }
}

</mosaic_0001>

<llo_original>
// kernel: multihead_forward.1
$region0: #{multihead_forward.1}
  #allocation0 [shape = 'u32[]', space=smem, size = 0x4, offset = 0x4, fixed_abs, tag = 'smem constant byte address 0x4 - core index']
  #allocation1 [shape = 'u32[144,128]{1,0:T(1,128)}', space=vmem, size = 0x12000, scoped, tag = 'internal scratch']
  #allocation2 [shape = 'bf16[32,384]{1,0:T(16,128)(2,1)}', space=vmem, size = 0x6000, scoped, tag = 'scratch operand']
  %s0 = inlined_call_operand.vmem [shape: bf16[4,128,384], index: 0, kind: input, shape index: {}]
  %s1 = inlined_call_operand.hbm [shape: bf16[384,1152], index: 1, kind: input, shape index: {}]
  %s2 = inlined_call_operand.vmem [shape: bf16[384,384], index: 2, kind: input, shape index: {}]
  %s3 = inlined_call_operand.vmem [shape: f32[1,384], index: 3, kind: input, shape index: {}]
  %s4 = inlined_call_operand.vmem [shape: f32[4,16,384], index: 4, kind: output, shape index: {}]
  %s5 = sld [smem:[#allocation0]]
  $region53: #{multihead_forward.1} parent=0
    _
  %s7 = ssub.s32 1, %s5
  %s8 = scalar_select 0, %s7, %s5
  $region1: #{multihead_forward.1} parent=0
    #allocation3 [shape = 'u8[884736]{0}', space=vmem, size = 0xd8000, scoped, tag = 'input window, operand 1, single buffered']
    #allocation4 [shape = 's32[2]{0}', space=sflag, size = 0x8, scoped, tag = 'scoped memory for multihead_forward.1']
    %9 = vsyncpa [#allocation4], 0
    loop: start=0, step=1, limit=4
    $region2: #{multihead_forward.1} parent=1 // loop_pre_header
      _
    $region3: #{multihead_forward.1} parent=1 // loop_header
      %s11 = sphi 0, %s15
      %p12 = scmp.ge.s32.totalorder %s11, 4
      %s21 = sphi 0, %s23
      %s24 = sphi 0, %s21
      %s25 = sphi 0, %s24
      %s41 = sphi 0, %s25
      %s45 = sphi 0, %s45
      %s47 = sphi 0, %s45
      %s48 = sphi 0, %s47
      %s62 = sphi 0, %s48
      %s66 = sphi 0, %s66
      %s68 = sphi 0, %s66
      %s69 = sphi 0, %s68
      %s83 = sphi 0, %s69
      %s87 = sphi 0, %s87
      %s89 = sphi 0, %s87
      %s90 = sphi 0, %s89
      %s104 = sphi 0, %s90
      %s110 = sphi 0, %s112
      %s113 = sphi 0, %s110
      %s114 = sphi 0, %s113
      %s130 = sphi 0, %s114
    $region4: #{multihead_forward.1} parent=1 // loop_header_branch
      %14 = sbr.rel (%p12) target = $region8
    $region5: #{multihead_forward.1} parent=1 // loop_body
      %s16 = ssub.s32 %s11, 1
      %s17 = ssub.s32 %s11, 2
      %s18 = sadd.s32 %s11, 1
      %s19 = ssub.s32 %s11, %s18
      %p20 = scmp.eq.s32.totalorder %s19, 0
      %s22 = sadd.s32 %s21, 1
      %s23 = scalar_select %p20, %s21, %s22
      %p26 = pneg %p20
      %p27 = scmp.eq.s32.totalorder %s11, 1
      %p28 = por %p26, %p27
      %p29 = scmp.ne.s32.totalorder %s21, %s24
      %p30 = scmp.eq.s32.totalorder %s11, 0
      %p31 = por %p29, %p30
      %p32 = scmp.ne.s32.totalorder %s21, %s24
      %p33 = scmp.eq.s32.totalorder %s16, 1
      %p34 = por %p32, %p33
      %p35 = scmp.ne.s32.totalorder %s24, %s25
      %p36 = scmp.eq.s32.totalorder %s16, 0
      %p37 = por %p35, %p36
      %p38 = scmp.ne.s32.totalorder %s24, %s25
      %p39 = scmp.eq.s32.totalorder %s17, 1
      %p40 = por %p38, %p39
      %p42 = scmp.ne.s32.totalorder %s25, %s41
      %p43 = scmp.eq.s32.totalorder %s17, 0
      %p44 = por %p42, %p43
      %s46 = sadd.s32 %s45, 1
      %p49 = scmp.eq.s32.totalorder %s11, 1
      %p50 = scmp.ne.s32.totalorder %s45, %s47
      %p51 = scmp.eq.s32.totalorder %s11, 0
      %p52 = por %p50, %p51
      %p53 = scmp.ne.s32.totalorder %s45, %s47
      %p54 = scmp.eq.s32.totalorder %s16, 1
      %p55 = por %p53, %p54
      %p56 = scmp.ne.s32.totalorder %s47, %s48
      %p57 = scmp.eq.s32.totalorder %s16, 0
      %p58 = por %p56, %p57
      %p59 = scmp.ne.s32.totalorder %s47, %s48
      %p60 = scmp.eq.s32.totalorder %s17, 1
      %p61 = por %p59, %p60
      %p63 = scmp.ne.s32.totalorder %s48, %s62
      %p64 = scmp.eq.s32.totalorder %s17, 0
      %p65 = por %p63, %p64
      %s67 = sadd.s32 %s66, 1
      %p70 = scmp.eq.s32.totalorder %s11, 1
      %p71 = scmp.ne.s32.totalorder %s66, %s68
      %p72 = scmp.eq.s32.totalorder %s11, 0
      %p73 = por %p71, %p72
      %p74 = scmp.ne.s32.totalorder %s66, %s68
      %p75 = scmp.eq.s32.totalorder %s16, 1
      %p76 = por %p74, %p75
      %p77 = scmp.ne.s32.totalorder %s68, %s69
      %p78 = scmp.eq.s32.totalorder %s16, 0
      %p79 = por %p77, %p78
      %p80 = scmp.ne.s32.totalorder %s68, %s69
      %p81 = scmp.eq.s32.totalorder %s17, 1
      %p82 = por %p80, %p81
      %p84 = scmp.ne.s32.totalorder %s69, %s83
      %p85 = scmp.eq.s32.totalorder %s17, 0
      %p86 = por %p84, %p85
      %s88 = sadd.s32 %s87, 1
      %p91 = scmp.eq.s32.totalorder %s11, 1
      %p92 = scmp.ne.s32.totalorder %s87, %s89
      %p93 = scmp.eq.s32.totalorder %s11, 0
      %p94 = por %p92, %p93
      %p95 = scmp.ne.s32.totalorder %s87, %s89
      %p96 = scmp.eq.s32.totalorder %s16, 1
      %p97 = por %p95, %p96
      %p98 = scmp.ne.s32.totalorder %s89, %s90
      %p99 = scmp.eq.s32.totalorder %s16, 0
      %p100 = por %p98, %p99
      %p101 = scmp.ne.s32.totalorder %s89, %s90
      %p102 = scmp.eq.s32.totalorder %s17, 1
      %p103 = por %p101, %p102
      %p105 = scmp.ne.s32.totalorder %s90, %s104
      %p106 = scmp.eq.s32.totalorder %s17, 0
      %p107 = por %p105, %p106
      %s108 = ssub.s32 %s11, %s18
      %p109 = scmp.eq.s32.totalorder %s108, 0
      %s111 = sadd.s32 %s110, 1
      %s112 = scalar_select %p109, %s110, %s111
      %p115 = pneg %p109
      %p116 = scmp.eq.s32.totalorder %s11, 1
      %p117 = por %p115, %p116
      %p118 = scmp.ne.s32.totalorder %s110, %s113
      %p119 = scmp.eq.s32.totalorder %s11, 0
      %p120 = por %p118, %p119
      %p121 = scmp.ne.s32.totalorder %s110, %s113
      %p122 = scmp.eq.s32.totalorder %s16, 1
      %p123 = por %p121, %p122
      %p124 = scmp.ne.s32.totalorder %s113, %s114
      %p125 = scmp.eq.s32.totalorder %s16, 0
      %p126 = por %p124, %p125
      %p127 = scmp.ne.s32.totalorder %s113, %s114
      %p128 = scmp.eq.s32.totalorder %s17, 1
      %p129 = por %p127, %p128
      %p131 = scmp.ne.s32.totalorder %s114, %s130
      %p132 = scmp.eq.s32.totalorder %s17, 0
      %p133 = por %p131, %p132
      %p134 = scmp.le.s32.totalorder 1, %s11
      %p135 = scmp.lt.s32.totalorder %s11, 3
      %p136 = pnand %p134, %p135
      %p137 = pneg %p136
      // Predicated region
      $region9: #{multihead_forward.1} parent=5 // pred_check
        _
      $region10: #{multihead_forward.1} parent=5 // pred_check_branch
        %139 = sbr.rel (%p136) target = $region12
      $region11: #{multihead_forward.1} parent=5 // pred_region
        %s140 = ssub.s32 %s11, 1
        // Predicated region
        $region13: #{multihead_forward.1} parent=11 // pred_check
          %p141 = pneg %p58
        $region14: #{multihead_forward.1} parent=11 // pred_check_branch
          %143 = sbr.rel (%p141) target = $region16
        $region15: #{multihead_forward.1} parent=11 // pred_region
          %s145 = ssub.s32 27648, 27648
          %146 = vsyncadd [#allocation4], %s145
          %s147 = sshll.u32 [#allocation3], 4
          %s148 = int_to_ptr.vmem [resolvable:$true] %s147
          %153 = dma.hbm_to_vmem [thread:$0]  %s1, 27648, %s148, [#allocation4], 576, 576, 36
        $region16: #{multihead_forward.1} parent=11 // pred_fallthru
          _
        // Predicated region
        $region17: #{multihead_forward.1} parent=11 // pred_check
          %p154 = pneg %p79
        $region18: #{multihead_forward.1} parent=11 // pred_check_branch
          %156 = sbr.rel (%p154) target = $region20
        $region19: #{multihead_forward.1} parent=11 // pred_region
          _
        $region20: #{multihead_forward.1} parent=11 // pred_fallthru
          _
        // Predicated region
        $region21: #{multihead_forward.1} parent=11 // pred_check
          %p157 = pneg %p100
        $region22: #{multihead_forward.1} parent=11 // pred_check_branch
          %159 = sbr.rel (%p157) target = $region24
        $region23: #{multihead_forward.1} parent=11 // pred_region
          _
        $region24: #{multihead_forward.1} parent=11 // pred_fallthru
          _
      $region12: #{multihead_forward.1} parent=5 // pred_fallthru
        _
      %p160 = scmp.lt.s32.totalorder %s11, 2
      // Predicated region
      $region25: #{multihead_forward.1} parent=5 // pred_check
        %p161 = pneg %p160
      $region26: #{multihead_forward.1} parent=5 // pred_check_branch
        %163 = sbr.rel (%p161) target = $region28
      $region27: #{multihead_forward.1} parent=5 // pred_region
        // Predicated region
        $region29: #{multihead_forward.1} parent=27 // pred_check
          %p164 = pneg %p31
        $region30: #{multihead_forward.1} parent=27 // pred_check_branch
          %166 = sbr.rel (%p164) target = $region32
        $region31: #{multihead_forward.1} parent=27 // pred_region
          %s167 = smul.u32 2, %s11
          %p168 = scmp.lt.s32.totalorder %s167, 3
          %s169 = scalar_select %p168, %s167, 3
          %s170 = smul.addr %s169, 48
          %s171 = smul.addr %s170, 4
          %s172 = scalar_lea.vmem %s0, %s171
          %s173 = smul.u32 2, %s11
        $region32: #{multihead_forward.1} parent=27 // pred_fallthru
          _
      $region28: #{multihead_forward.1} parent=5 // pred_fallthru
        _
      %p174 = scmp.le.s32.totalorder 1, %s11
      %p175 = scmp.lt.s32.totalorder %s11, 3
      %p176 = pnand %p174, %p175
      %p177 = pneg %p176
      // Predicated region
      $region33: #{multihead_forward.1} parent=5 // pred_check
        _
      $region34: #{multihead_forward.1} parent=5 // pred_check_branch
        %179 = sbr.rel (%p176) target = $region36
      $region35: #{multihead_forward.1} parent=5 // pred_region
        %s180 = ssub.s32 %s11, 1
        // Predicated region
        $region37: #{multihead_forward.1} parent=35 // pred_check
          %p181 = pneg %p58
        $region38: #{multihead_forward.1} parent=35 // pred_check_branch
          %183 = sbr.rel (%p181) target = $region40
        $region39: #{multihead_forward.1} parent=35 // pred_region
          %184 = dma.done [#allocation4], 27648
        $region40: #{multihead_forward.1} parent=35 // pred_fallthru
          _
        %s185 = smul.u32 2, %s16
        %p186 = scmp.lt.s32.totalorder %s185, 3
        %s187 = scalar_select %p186, %s185, 3
        %s188 = smul.addr %s187, 48
        %s189 = smul.addr %s188, 4
        %s190 = scalar_lea.vmem %s0, %s189
        %p191 = pneg %p37
        %p192 = pneg %p34
        %p193 = pneg %p58
        %p194 = pneg %p55
        %p195 = pneg %p79
        %p196 = pneg %p76
        %p197 = pneg %p100
        %p198 = pneg %p97
        %p199 = pneg %p126
        %p200 = pneg %p123
        %s201 = smul.u32 2, %s16
        %p202 = scmp.lt.s32.totalorder %s201, 3
        %s203 = scalar_select %p202, %s201, 3
        %s204 = smul.addr %s203, 6
        %s205 = smul.addr %s204, 8
        %s206 = scalar_lea.vmem %s4, %s205
        %s207 = smul.u32 2, %s16
        %p208 = scmp.lt.s32.totalorder %s207, 3
        %s209 = scalar_select %p208, %s207, 3
        %s210 = smul.addr %s209, 48
        %s211 = smul.addr %s210, 4
        %s212 = scalar_lea.vmem %s0, %s211
        %s213 = smul.u32 2, %s16
        %s214 = smul.u32 2, %s16
        %p215 = scmp.lt.s32.totalorder %s214, 3
        %s216 = scalar_select %p215, %s214, 3
        %s217 = smul.addr %s216, 6
        %s218 = smul.addr %s217, 8
        %s219 = scalar_lea.vmem %s4, %s218
        %s220 = smul.u32 2, %s16
        %v222 = vld [vmem:[%s212] sm:$0xff]
        %v223 = vld [vmem:[%s212 + $0x8] sm:$0xf]
        %v224 = vld [vmem:[%s212 + $0xc] sm:$0xff]
        %v225 = vld [vmem:[%s212 + $0x14] sm:$0xf]
        %v226 = vld [vmem:[%s212 + $0x18] sm:$0xff]
        %v227 = vld [vmem:[%s212 + $0x20] sm:$0xf]
        %v228 = vld [vmem:[%s212 + $0x24] sm:$0xff]
        %v229 = vld [vmem:[%s212 + $0x2c] sm:$0xf]
        %v230 = vld [vmem:[%s212 + $0x30] sm:$0xff]
        %v231 = vld [vmem:[%s212 + $0x38] sm:$0xf]
        %v232 = vld [vmem:[%s212 + $0x3c] sm:$0xff]
        %v233 = vld [vmem:[%s212 + $0x44] sm:$0xf]
        %v234 = vld [vmem:[%s212 + $0x48] sm:$0xff]
        %v235 = vld [vmem:[%s212 + $0x50] sm:$0xf]
        %v236 = vld [vmem:[%s212 + $0x54] sm:$0xff]
        %v237 = vld [vmem:[%s212 + $0x5c] sm:$0xf]
        %v238 = vld [vmem:[%s212 + $0x60] sm:$0xff]
        %v239 = vld [vmem:[%s212 + $0x68] sm:$0xf]
        %v240 = vld [vmem:[%s212 + $0x6c] sm:$0xff]
        %v241 = vld [vmem:[%s212 + $0x74] sm:$0xf]
        %v242 = vld [vmem:[%s212 + $0x78] sm:$0xff]
        %v243 = vld [vmem:[%s212 + $0x80] sm:$0xf]
        %v244 = vld [vmem:[%s212 + $0x84] sm:$0xff]
        %v245 = vld [vmem:[%s212 + $0x8c] sm:$0xf]
        %v246 = vld [vmem:[%s212 + $0x90] sm:$0xff]
        %v247 = vld [vmem:[%s212 + $0x98] sm:$0xf]
        %v248 = vld [vmem:[%s212 + $0x9c] sm:$0xff]
        %v249 = vld [vmem:[%s212 + $0xa4] sm:$0xf]
        %v250 = vld [vmem:[%s212 + $0xa8] sm:$0xff]
        %v251 = vld [vmem:[%s212 + $0xb0] sm:$0xf]
        %v252 = vld [vmem:[%s212 + $0xb4] sm:$0xff]
        %v253 = vld [vmem:[%s212 + $0xbc] sm:$0xf]
        %v254 = vld [vmem:[%s212 + $0xc0] sm:$0xff]
        %v255 = vld [vmem:[%s212 + $0xc8] sm:$0xf]
        %v256 = vld [vmem:[%s212 + $0xcc] sm:$0xff]
        %v257 = vld [vmem:[%s212 + $0xd4] sm:$0xf]
        %v258 = vld [vmem:[%s212 + $0xd8] sm:$0xff]
        %v259 = vld [vmem:[%s212 + $0xe0] sm:$0xf]
        %v260 = vld [vmem:[%s212 + $0xe4] sm:$0xff]
        %v261 = vld [vmem:[%s212 + $0xec] sm:$0xf]
        %v262 = vld [vmem:[%s212 + $0xf0] sm:$0xff]
        %v263 = vld [vmem:[%s212 + $0xf8] sm:$0xf]
        %v264 = vld [vmem:[%s212 + $0xfc] sm:$0xff]
        %v265 = vld [vmem:[%s212 + $0x104] sm:$0xf]
        %v266 = vld [vmem:[%s212 + $0x108] sm:$0xff]
        %v267 = vld [vmem:[%s212 + $0x110] sm:$0xf]
        %v268 = vld [vmem:[%s212 + $0x114] sm:$0xff]
        %v269 = vld [vmem:[%s212 + $0x11c] sm:$0xf]
        %v270 = vld [vmem:[%s212 + $0x120] sm:$0xff]
        %v271 = vld [vmem:[%s212 + $0x128] sm:$0xf]
        %v272 = vld [vmem:[%s212 + $0x12c] sm:$0xff]
        %v273 = vld [vmem:[%s212 + $0x134] sm:$0xf]
        %v274 = vld [vmem:[%s212 + $0x138] sm:$0xff]
        %v275 = vld [vmem:[%s212 + $0x140] sm:$0xf]
        %v276 = vld [vmem:[%s212 + $0x144] sm:$0xff]
        %v277 = vld [vmem:[%s212 + $0x14c] sm:$0xf]
        %v278 = vld [vmem:[%s212 + $0x150] sm:$0xff]
        %v279 = vld [vmem:[%s212 + $0x158] sm:$0xf]
        %v280 = vld [vmem:[%s212 + $0x15c] sm:$0xff]
        %v281 = vld [vmem:[%s212 + $0x164] sm:$0xf]
        %v282 = vld [vmem:[%s212 + $0x168] sm:$0xff]
        %v283 = vld [vmem:[%s212 + $0x170] sm:$0xf]
        %v284 = vld [vmem:[%s212 + $0x174] sm:$0xff]
        %v285 = vld [vmem:[%s212 + $0x17c] sm:$0xf]
        %v286 = vld [vmem:[#allocation3] sm:$0xff]
        %v287 = vld [vmem:[#allocation3 + $0x8] sm:$0xff]
        %v288 = vld [vmem:[#allocation3 + $0x10] sm:$0xff]
        %v289 = vld [vmem:[#allocation3 + $0x18] sm:$0xff]
        %v290 = vld [vmem:[#allocation3 + $0x20] sm:$0xf]
        %v291 = vld [vmem:[#allocation3 + $0x24] sm:$0xff]
        %v292 = vld [vmem:[#allocation3 + $0x2c] sm:$0xff]
        %v293 = vld [vmem:[#allocation3 + $0x34] sm:$0xff]
        %v294 = vld [vmem:[#allocation3 + $0x3c] sm:$0xff]
        %v295 = vld [vmem:[#allocation3 + $0x44] sm:$0xf]
        %v296 = vld [vmem:[#allocation3 + $0x48] sm:$0xff]
        %v297 = vld [vmem:[#allocation3 + $0x50] sm:$0xff]
        %v298 = vld [vmem:[#allocation3 + $0x58] sm:$0xff]
        %v299 = vld [vmem:[#allocation3 + $0x60] sm:$0xff]
        %v300 = vld [vmem:[#allocation3 + $0x68] sm:$0xf]
        %v301 = vld [vmem:[#allocation3 + $0x6c] sm:$0xff]
        %v302 = vld [vmem:[#allocation3 + $0x74] sm:$0xff]
        %v303 = vld [vmem:[#allocation3 + $0x7c] sm:$0xff]
        %v304 = vld [vmem:[#allocation3 + $0x84] sm:$0xff]
        %v305 = vld [vmem:[#allocation3 + $0x8c] sm:$0xf]
        %v306 = vld [vmem:[#allocation3 + $0x90] sm:$0xff]
        %v307 = vld [vmem:[#allocation3 + $0x98] sm:$0xff]
        %v308 = vld [vmem:[#allocation3 + $0xa0] sm:$0xff]
        %v309 = vld [vmem:[#allocation3 + $0xa8] sm:$0xff]
        %v310 = vld [vmem:[#allocation3 + $0xb0] sm:$0xf]
        %v311 = vld [vmem:[#allocation3 + $0xb4] sm:$0xff]
        %v312 = vld [vmem:[#allocation3 + $0xbc] sm:$0xff]
        %v313 = vld [vmem:[#allocation3 + $0xc4] sm:$0xff]
        %v314 = vld [vmem:[#allocation3 + $0xcc] sm:$0xff]
        %v315 = vld [vmem:[#allocation3 + $0xd4] sm:$0xf]
        %v316 = vld [vmem:[#allocation3 + $0xd8] sm:$0xff]
        %v317 = vld [vmem:[#allocation3 + $0xe0] sm:$0xff]
        %v318 = vld [vmem:[#allocation3 + $0xe8] sm:$0xff]
        %v319 = vld [vmem:[#allocation3 + $0xf0] sm:$0xff]
        %v320 = vld [vmem:[#allocation3 + $0xf8] sm:$0xf]
        %v321 = vld [vmem:[#allocation3 + $0xfc] sm:$0xff]
        %v322 = vld [vmem:[#allocation3 + $0x104] sm:$0xff]
        %v323 = vld [vmem:[#allocation3 + $0x10c] sm:$0xff]
        %v324 = vld [vmem:[#allocation3 + $0x114] sm:$0xff]
        %v325 = vld [vmem:[#allocation3 + $0x11c] sm:$0xf]
        %v326 = vld [vmem:[#allocation3 + $0x120] sm:$0xff]
        %v327 = vld [vmem:[#allocation3 + $0x128] sm:$0xff]
        %v328 = vld [vmem:[#allocation3 + $0x130] sm:$0xff]
        %v329 = vld [vmem:[#allocation3 + $0x138] sm:$0xff]
        %v330 = vld [vmem:[#allocation3 + $0x140] sm:$0xf]
        %v331 = vld [vmem:[#allocation3 + $0x144] sm:$0xff]
        %v332 = vld [vmem:[#allocation3 + $0x14c] sm:$0xff]
        %v333 = vld [vmem:[#allocation3 + $0x154] sm:$0xff]
        %v334 = vld [vmem:[#allocation3 + $0x15c] sm:$0xff]
        %v335 = vld [vmem:[#allocation3 + $0x164] sm:$0xf]
        %v336 = vld [vmem:[#allocation3 + $0x168] sm:$0xff]
        %v337 = vld [vmem:[#allocation3 + $0x170] sm:$0xff]
        %v338 = vld [vmem:[#allocation3 + $0x178] sm:$0xff]
        %v339 = vld [vmem:[#allocation3 + $0x180] sm:$0xff]
        %v340 = vld [vmem:[#allocation3 + $0x188] sm:$0xf]
        %v341 = vld [vmem:[#allocation3 + $0x18c] sm:$0xff]
        %v342 = vld [vmem:[#allocation3 + $0x194] sm:$0xff]
        %v343 = vld [vmem:[#allocation3 + $0x19c] sm:$0xff]
        %v344 = vld [vmem:[#allocation3 + $0x1a4] sm:$0xff]
        %v345 = vld [vmem:[#allocation3 + $0x1ac] sm:$0xf]
        %v346 = vld [vmem:[#allocation3 + $0x1b0] sm:$0xff]
        %v347 = vld [vmem:[#allocation3 + $0x1b8] sm:$0xff]
        %v348 = vld [vmem:[#allocation3 + $0x1c0] sm:$0xff]
        %v349 = vld [vmem:[#allocation3 + $0x1c8] sm:$0xff]
        %v350 = vld [vmem:[#allocation3 + $0x1d0] sm:$0xf]
        %v351 = vld [vmem:[#allocation3 + $0x1d4] sm:$0xff]
        %v352 = vld [vmem:[#allocation3 + $0x1dc] sm:$0xff]
        %v353 = vld [vmem:[#allocation3 + $0x1e4] sm:$0xff]
        %v354 = vld [vmem:[#allocation3 + $0x1ec] sm:$0xff]
        %v355 = vld [vmem:[#allocation3 + $0x1f4] sm:$0xf]
        %v356 = vld [vmem:[#allocation3 + $0x1f8] sm:$0xff]
        %v357 = vld [vmem:[#allocation3 + $0x200] sm:$0xff]
        %v358 = vld [vmem:[#allocation3 + $0x208] sm:$0xff]
        %v359 = vld [vmem:[#allocation3 + $0x210] sm:$0xff]
        %v360 = vld [vmem:[#allocation3 + $0x218] sm:$0xf]
        %v361 = vld [vmem:[#allocation3 + $0x21c] sm:$0xff]
        %v362 = vld [vmem:[#allocation3 + $0x224] sm:$0xff]
        %v363 = vld [vmem:[#allocation3 + $0x22c] sm:$0xff]
        %v364 = vld [vmem:[#allocation3 + $0x234] sm:$0xff]
        %v365 = vld [vmem:[#allocation3 + $0x23c] sm:$0xf]
        %v366 = vld [vmem:[#allocation3 + $0x240] sm:$0xff]
        %v367 = vld [vmem:[#allocation3 + $0x248] sm:$0xff]
        %v368 = vld [vmem:[#allocation3 + $0x250] sm:$0xff]
        %v369 = vld [vmem:[#allocation3 + $0x258] sm:$0xff]
        %v370 = vld [vmem:[#allocation3 + $0x260] sm:$0xf]
        %v371 = vld [vmem:[#allocation3 + $0x264] sm:$0xff]
        %v372 = vld [vmem:[#allocation3 + $0x26c] sm:$0xff]
        %v373 = vld [vmem:[#allocation3 + $0x274] sm:$0xff]
        %v374 = vld [vmem:[#allocation3 + $0x27c] sm:$0xff]
        %v375 = vld [vmem:[#allocation3 + $0x284] sm:$0xf]
        %v376 = vld [vmem:[#allocation3 + $0x288] sm:$0xff]
        %v377 = vld [vmem:[#allocation3 + $0x290] sm:$0xff]
        %v378 = vld [vmem:[#allocation3 + $0x298] sm:$0xff]
        %v379 = vld [vmem:[#allocation3 + $0x2a0] sm:$0xff]
        %v380 = vld [vmem:[#allocation3 + $0x2a8] sm:$0xf]
        %v381 = vld [vmem:[#allocation3 + $0x2ac] sm:$0xff]
        %v382 = vld [vmem:[#allocation3 + $0x2b4] sm:$0xff]
        %v383 = vld [vmem:[#allocation3 + $0x2bc] sm:$0xff]
        %v384 = vld [vmem:[#allocation3 + $0x2c4] sm:$0xff]
        %v385 = vld [vmem:[#allocation3 + $0x2cc] sm:$0xf]
        %v386 = vld [vmem:[#allocation3 + $0x2d0] sm:$0xff]
        %v387 = vld [vmem:[#allocation3 + $0x2d8] sm:$0xff]
        %v388 = vld [vmem:[#allocation3 + $0x2e0] sm:$0xff]
        %v389 = vld [vmem:[#allocation3 + $0x2e8] sm:$0xff]
        %v390 = vld [vmem:[#allocation3 + $0x2f0] sm:$0xf]
        %v391 = vld [vmem:[#allocation3 + $0x2f4] sm:$0xff]
        %v392 = vld [vmem:[#allocation3 + $0x2fc] sm:$0xff]
        %v393 = vld [vmem:[#allocation3 + $0x304] sm:$0xff]
        %v394 = vld [vmem:[#allocation3 + $0x30c] sm:$0xff]
        %v395 = vld [vmem:[#allocation3 + $0x314] sm:$0xf]
        %v396 = vld [vmem:[#allocation3 + $0x318] sm:$0xff]
        %v397 = vld [vmem:[#allocation3 + $0x320] sm:$0xff]
        %v398 = vld [vmem:[#allocation3 + $0x328] sm:$0xff]
        %v399 = vld [vmem:[#allocation3 + $0x330] sm:$0xff]
        %v400 = vld [vmem:[#allocation3 + $0x338] sm:$0xf]
        %v401 = vld [vmem:[#allocation3 + $0x33c] sm:$0xff]
        %v402 = vld [vmem:[#allocation3 + $0x344] sm:$0xff]
        %v403 = vld [vmem:[#allocation3 + $0x34c] sm:$0xff]
        %v404 = vld [vmem:[#allocation3 + $0x354] sm:$0xff]
        %v405 = vld [vmem:[#allocation3 + $0x35c] sm:$0xf]
        %v406 = vld [vmem:[#allocation3 + $0x360] sm:$0xff]
        %v407 = vld [vmem:[#allocation3 + $0x368] sm:$0xff]
        %v408 = vld [vmem:[#allocation3 + $0x370] sm:$0xff]
        %v409 = vld [vmem:[#allocation3 + $0x378] sm:$0xff]
        %v410 = vld [vmem:[#allocation3 + $0x380] sm:$0xf]
        %v411 = vld [vmem:[#allocation3 + $0x384] sm:$0xff]
        %v412 = vld [vmem:[#allocation3 + $0x38c] sm:$0xff]
        %v413 = vld [vmem:[#allocation3 + $0x394] sm:$0xff]
        %v414 = vld [vmem:[#allocation3 + $0x39c] sm:$0xff]
        %v415 = vld [vmem:[#allocation3 + $0x3a4] sm:$0xf]
        %v416 = vld [vmem:[#allocation3 + $0x3a8] sm:$0xff]
        %v417 = vld [vmem:[#allocation3 + $0x3b0] sm:$0xff]
        %v418 = vld [vmem:[#allocation3 + $0x3b8] sm:$0xff]
        %v419 = vld [vmem:[#allocation3 + $0x3c0] sm:$0xff]
        %v420 = vld [vmem:[#allocation3 + $0x3c8] sm:$0xf]
        %v421 = vld [vmem:[#allocation3 + $0x3cc] sm:$0xff]
        %v422 = vld [vmem:[#allocation3 + $0x3d4] sm:$0xff]
        %v423 = vld [vmem:[#allocation3 + $0x3dc] sm:$0xff]
        %v424 = vld [vmem:[#allocation3 + $0x3e4] sm:$0xff]
        %v425 = vld [vmem:[#allocation3 + $0x3ec] sm:$0xf]
        %v426 = vld [vmem:[#allocation3 + $0x3f0] sm:$0xff]
        %v427 = vld [vmem:[#allocation3 + $0x3f8] sm:$0xff]
        %v428 = vld [vmem:[#allocation3 + $0x400] sm:$0xff]
        %v429 = vld [vmem:[#allocation3 + $0x408] sm:$0xff]
        %v430 = vld [vmem:[#allocation3 + $0x410] sm:$0xf]
        %v431 = vld [vmem:[#allocation3 + $0x414] sm:$0xff]
        %v432 = vld [vmem:[#allocation3 + $0x41c] sm:$0xff]
        %v433 = vld [vmem:[#allocation3 + $0x424] sm:$0xff]
        %v434 = vld [vmem:[#allocation3 + $0x42c] sm:$0xff]
        %v435 = vld [vmem:[#allocation3 + $0x434] sm:$0xf]
        %v436 = vld [vmem:[#allocation3 + $0x438] sm:$0xff]
        %v437 = vld [vmem:[#allocation3 + $0x440] sm:$0xff]
        %v438 = vld [vmem:[#allocation3 + $0x448] sm:$0xff]
        %v439 = vld [vmem:[#allocation3 + $0x450] sm:$0xff]
        %v440 = vld [vmem:[#allocation3 + $0x458] sm:$0xf]
        %v441 = vld [vmem:[#allocation3 + $0x45c] sm:$0xff]
        %v442 = vld [vmem:[#allocation3 + $0x464] sm:$0xff]
        %v443 = vld [vmem:[#allocation3 + $0x46c] sm:$0xff]
        %v444 = vld [vmem:[#allocation3 + $0x474] sm:$0xff]
        %v445 = vld [vmem:[#allocation3 + $0x47c] sm:$0xf]
        %v446 = vld [vmem:[#allocation3 + $0x480] sm:$0xff]
        %v447 = vld [vmem:[#allocation3 + $0x488] sm:$0xff]
        %v448 = vld [vmem:[#allocation3 + $0x490] sm:$0xff]
        %v449 = vld [vmem:[#allocation3 + $0x498] sm:$0xff]
        %v450 = vld [vmem:[#allocation3 + $0x4a0] sm:$0xf]
        %v451 = vld [vmem:[#allocation3 + $0x4a4] sm:$0xff]
        %v452 = vld [vmem:[#allocation3 + $0x4ac] sm:$0xff]
        %v453 = vld [vmem:[#allocation3 + $0x4b4] sm:$0xff]
        %v454 = vld [vmem:[#allocation3 + $0x4bc] sm:$0xff]
        %v455 = vld [vmem:[#allocation3 + $0x4c4] sm:$0xf]
        %v456 = vld [vmem:[#allocation3 + $0x4c8] sm:$0xff]
        %v457 = vld [vmem:[#allocation3 + $0x4d0] sm:$0xff]
        %v458 = vld [vmem:[#allocation3 + $0x4d8] sm:$0xff]
        %v459 = vld [vmem:[#allocation3 + $0x4e0] sm:$0xff]
        %v460 = vld [vmem:[#allocation3 + $0x4e8] sm:$0xf]
        %v461 = vld [vmem:[#allocation3 + $0x4ec] sm:$0xff]
        %v462 = vld [vmem:[#allocation3 + $0x4f4] sm:$0xff]
        %v463 = vld [vmem:[#allocation3 + $0x4fc] sm:$0xff]
        %v464 = vld [vmem:[#allocation3 + $0x504] sm:$0xff]
        %v465 = vld [vmem:[#allocation3 + $0x50c] sm:$0xf]
        %v466 = vld [vmem:[#allocation3 + $0x510] sm:$0xff]
        %v467 = vld [vmem:[#allocation3 + $0x518] sm:$0xff]
        %v468 = vld [vmem:[#allocation3 + $0x520] sm:$0xff]
        %v469 = vld [vmem:[#allocation3 + $0x528] sm:$0xff]
        %v470 = vld [vmem:[#allocation3 + $0x530] sm:$0xf]
        %v471 = vld [vmem:[#allocation3 + $0x534] sm:$0xff]
        %v472 = vld [vmem:[#allocation3 + $0x53c] sm:$0xff]
        %v473 = vld [vmem:[#allocation3 + $0x544] sm:$0xff]
        %v474 = vld [vmem:[#allocation3 + $0x54c] sm:$0xff]
        %v475 = vld [vmem:[#allocation3 + $0x554] sm:$0xf]
        %v476 = vld [vmem:[#allocation3 + $0x558] sm:$0xff]
        %v477 = vld [vmem:[#allocation3 + $0x560] sm:$0xff]
        %v478 = vld [vmem:[#allocation3 + $0x568] sm:$0xff]
        %v479 = vld [vmem:[#allocation3 + $0x570] sm:$0xff]
        %v480 = vld [vmem:[#allocation3 + $0x578] sm:$0xf]
        %v481 = vld [vmem:[#allocation3 + $0x57c] sm:$0xff]
        %v482 = vld [vmem:[#allocation3 + $0x584] sm:$0xff]
        %v483 = vld [vmem:[#allocation3 + $0x58c] sm:$0xff]
        %v484 = vld [vmem:[#allocation3 + $0x594] sm:$0xff]
        %v485 = vld [vmem:[#allocation3 + $0x59c] sm:$0xf]
        %v486 = vld [vmem:[#allocation3 + $0x5a0] sm:$0xff]
        %v487 = vld [vmem:[#allocation3 + $0x5a8] sm:$0xff]
        %v488 = vld [vmem:[#allocation3 + $0x5b0] sm:$0xff]
        %v489 = vld [vmem:[#allocation3 + $0x5b8] sm:$0xff]
        %v490 = vld [vmem:[#allocation3 + $0x5c0] sm:$0xf]
        %v491 = vld [vmem:[#allocation3 + $0x5c4] sm:$0xff]
        %v492 = vld [vmem:[#allocation3 + $0x5cc] sm:$0xff]
        %v493 = vld [vmem:[#allocation3 + $0x5d4] sm:$0xff]
        %v494 = vld [vmem:[#allocation3 + $0x5dc] sm:$0xff]
        %v495 = vld [vmem:[#allocation3 + $0x5e4] sm:$0xf]
        %v496 = vld [vmem:[#allocation3 + $0x5e8] sm:$0xff]
        %v497 = vld [vmem:[#allocation3 + $0x5f0] sm:$0xff]
        %v498 = vld [vmem:[#allocation3 + $0x5f8] sm:$0xff]
        %v499 = vld [vmem:[#allocation3 + $0x600] sm:$0xff]
        %v500 = vld [vmem:[#allocation3 + $0x608] sm:$0xf]
        %v501 = vld [vmem:[#allocation3 + $0x60c] sm:$0xff]
        %v502 = vld [vmem:[#allocation3 + $0x614] sm:$0xff]
        %v503 = vld [vmem:[#allocation3 + $0x61c] sm:$0xff]
        %v504 = vld [vmem:[#allocation3 + $0x624] sm:$0xff]
        %v505 = vld [vmem:[#allocation3 + $0x62c] sm:$0xf]
        %v506 = vld [vmem:[#allocation3 + $0x630] sm:$0xff]
        %v507 = vld [vmem:[#allocation3 + $0x638] sm:$0xff]
        %v508 = vld [vmem:[#allocation3 + $0x640] sm:$0xff]
        %v509 = vld [vmem:[#allocation3 + $0x648] sm:$0xff]
        %v510 = vld [vmem:[#allocation3 + $0x650] sm:$0xf]
        %v511 = vld [vmem:[#allocation3 + $0x654] sm:$0xff]
        %v512 = vld [vmem:[#allocation3 + $0x65c] sm:$0xff]
        %v513 = vld [vmem:[#allocation3 + $0x664] sm:$0xff]
        %v514 = vld [vmem:[#allocation3 + $0x66c] sm:$0xff]
        %v515 = vld [vmem:[#allocation3 + $0x674] sm:$0xf]
        %v516 = vld [vmem:[#allocation3 + $0x678] sm:$0xff]
        %v517 = vld [vmem:[#allocation3 + $0x680] sm:$0xff]
        %v518 = vld [vmem:[#allocation3 + $0x688] sm:$0xff]
        %v519 = vld [vmem:[#allocation3 + $0x690] sm:$0xff]
        %v520 = vld [vmem:[#allocation3 + $0x698] sm:$0xf]
        %v521 = vld [vmem:[#allocation3 + $0x69c] sm:$0xff]
        %v522 = vld [vmem:[#allocation3 + $0x6a4] sm:$0xff]
        %v523 = vld [vmem:[#allocation3 + $0x6ac] sm:$0xff]
        %v524 = vld [vmem:[#allocation3 + $0x6b4] sm:$0xff]
        %v525 = vld [vmem:[#allocation3 + $0x6bc] sm:$0xf]
        %v590 = vunpack.c.l.b16 %v222
        %v591 = vunpack.c.h.b16 %v222
        %v592 = vunpack.c.l.b16 %v223
        %v593 = vunpack.c.l.b16 %v224
        %v594 = vunpack.c.h.b16 %v224
        %v595 = vunpack.c.l.b16 %v225
        %v596 = vunpack.c.l.b16 %v226
        %v597 = vunpack.c.h.b16 %v226
        %v598 = vunpack.c.l.b16 %v227
        %v599 = vunpack.c.l.b16 %v228
        %v600 = vunpack.c.h.b16 %v228
        %v601 = vunpack.c.l.b16 %v229
        %v602 = vunpack.c.l.b16 %v230
        %v603 = vunpack.c.h.b16 %v230
        %v604 = vunpack.c.l.b16 %v231
        %v605 = vunpack.c.l.b16 %v232
        %v606 = vunpack.c.h.b16 %v232
        %v607 = vunpack.c.l.b16 %v233
        %v608 = vunpack.c.l.b16 %v234
        %v609 = vunpack.c.h.b16 %v234
        %v610 = vunpack.c.l.b16 %v235
        %v611 = vunpack.c.l.b16 %v236
        %v612 = vunpack.c.h.b16 %v236
        %v613 = vunpack.c.l.b16 %v237
        %v614 = vunpack.c.l.b16 %v238
        %v615 = vunpack.c.h.b16 %v238
        %v616 = vunpack.c.l.b16 %v239
        %v617 = vunpack.c.l.b16 %v240
        %v618 = vunpack.c.h.b16 %v240
        %v619 = vunpack.c.l.b16 %v241
        %v620 = vunpack.c.l.b16 %v242
        %v621 = vunpack.c.h.b16 %v242
        %v622 = vunpack.c.l.b16 %v243
        %v623 = vunpack.c.l.b16 %v244
        %v624 = vunpack.c.h.b16 %v244
        %v625 = vunpack.c.l.b16 %v245
        %v626 = vunpack.c.l.b16 %v246
        %v627 = vunpack.c.h.b16 %v246
        %v628 = vunpack.c.l.b16 %v247
        %v629 = vunpack.c.l.b16 %v248
        %v630 = vunpack.c.h.b16 %v248
        %v631 = vunpack.c.l.b16 %v249
        %v632 = vunpack.c.l.b16 %v250
        %v633 = vunpack.c.h.b16 %v250
        %v634 = vunpack.c.l.b16 %v251
        %v635 = vunpack.c.l.b16 %v252
        %v636 = vunpack.c.h.b16 %v252
        %v637 = vunpack.c.l.b16 %v253
        %v638 = vunpack.c.l.b16 %v254
        %v639 = vunpack.c.h.b16 %v254
        %v640 = vunpack.c.l.b16 %v255
        %v641 = vunpack.c.l.b16 %v256
        %v642 = vunpack.c.h.b16 %v256
        %v643 = vunpack.c.l.b16 %v257
        %v644 = vunpack.c.l.b16 %v258
        %v645 = vunpack.c.h.b16 %v258
        %v646 = vunpack.c.l.b16 %v259
        %v647 = vunpack.c.l.b16 %v260
        %v648 = vunpack.c.h.b16 %v260
        %v649 = vunpack.c.l.b16 %v261
        %v650 = vunpack.c.l.b16 %v262
        %v651 = vunpack.c.h.b16 %v262
        %v652 = vunpack.c.l.b16 %v263
        %v653 = vunpack.c.l.b16 %v264
        %v654 = vunpack.c.h.b16 %v264
        %v655 = vunpack.c.l.b16 %v265
        %v656 = vunpack.c.l.b16 %v266
        %v657 = vunpack.c.h.b16 %v266
        %v658 = vunpack.c.l.b16 %v267
        %v659 = vunpack.c.l.b16 %v268
        %v660 = vunpack.c.h.b16 %v268
        %v661 = vunpack.c.l.b16 %v269
        %v662 = vunpack.c.l.b16 %v270
        %v663 = vunpack.c.h.b16 %v270
        %v664 = vunpack.c.l.b16 %v271
        %v665 = vunpack.c.l.b16 %v272
        %v666 = vunpack.c.h.b16 %v272
        %v667 = vunpack.c.l.b16 %v273
        %v668 = vunpack.c.l.b16 %v274
        %v669 = vunpack.c.h.b16 %v274
        %v670 = vunpack.c.l.b16 %v275
        %v671 = vunpack.c.l.b16 %v276
        %v672 = vunpack.c.h.b16 %v276
        %v673 = vunpack.c.l.b16 %v277
        %v674 = vunpack.c.l.b16 %v278
        %v675 = vunpack.c.h.b16 %v278
        %v676 = vunpack.c.l.b16 %v279
        %v677 = vunpack.c.l.b16 %v280
        %v678 = vunpack.c.h.b16 %v280
        %v679 = vunpack.c.l.b16 %v281
        %v680 = vunpack.c.l.b16 %v282
        %v681 = vunpack.c.h.b16 %v282
        %v682 = vunpack.c.l.b16 %v283
        %v683 = vunpack.c.l.b16 %v284
        %v684 = vunpack.c.h.b16 %v284
        %v685 = vunpack.c.l.b16 %v285
        %v686 = vpack.c.b16 %v593, %v590
        %v687 = vpack.c.b16 %v594, %v591
        %v688 = vpack.c.b16 %v595, %v592
        %v689 = vpack.c.b16 %v599, %v596
        %v690 = vpack.c.b16 %v600, %v597
        %v691 = vpack.c.b16 %v601, %v598
        %v692 = vpack.c.b16 %v605, %v602
        %v693 = vpack.c.b16 %v606, %v603
        %v694 = vpack.c.b16 %v607, %v604
        %v695 = vpack.c.b16 %v611, %v608
        %v696 = vpack.c.b16 %v612, %v609
        %v697 = vpack.c.b16 %v613, %v610
        %v698 = vpack.c.b16 %v617, %v614
        %v699 = vpack.c.b16 %v618, %v615
        %v700 = vpack.c.b16 %v619, %v616
        %v701 = vpack.c.b16 %v623, %v620
        %v702 = vpack.c.b16 %v624, %v621
        %v703 = vpack.c.b16 %v625, %v622
        %v704 = vpack.c.b16 %v629, %v626
        %v705 = vpack.c.b16 %v630, %v627
        %v706 = vpack.c.b16 %v631, %v628
        %v707 = vpack.c.b16 %v635, %v632
        %v708 = vpack.c.b16 %v636, %v633
        %v709 = vpack.c.b16 %v637, %v634
        %v710 = vpack.c.b16 %v641, %v638
        %v711 = vpack.c.b16 %v642, %v639
        %v712 = vpack.c.b16 %v643, %v640
        %v713 = vpack.c.b16 %v647, %v644
        %v714 = vpack.c.b16 %v648, %v645
        %v715 = vpack.c.b16 %v649, %v646
        %v716 = vpack.c.b16 %v653, %v650
        %v717 = vpack.c.b16 %v654, %v651
        %v718 = vpack.c.b16 %v655, %v652
        %v719 = vpack.c.b16 %v659, %v656
        %v720 = vpack.c.b16 %v660, %v657
        %v721 = vpack.c.b16 %v661, %v658
        %v722 = vpack.c.b16 %v665, %v662
        %v723 = vpack.c.b16 %v666, %v663
        %v724 = vpack.c.b16 %v667, %v664
        %v725 = vpack.c.b16 %v671, %v668
        %v726 = vpack.c.b16 %v672, %v669
        %v727 = vpack.c.b16 %v673, %v670
        %v728 = vpack.c.b16 %v677, %v674
        %v729 = vpack.c.b16 %v678, %v675
        %v730 = vpack.c.b16 %v679, %v676
        %v731 = vpack.c.b16 %v683, %v680
        %v732 = vpack.c.b16 %v684, %v681
        %v733 = vpack.c.b16 %v685, %v682
        %v1022 = vunpack.c.l.b16 %v286
        %v1023 = vunpack.c.h.b16 %v286
        %v1024 = vunpack.c.l.b16 %v287
        %v1025 = vunpack.c.h.b16 %v287
        %v1026 = vunpack.c.l.b16 %v288
        %v1027 = vunpack.c.h.b16 %v288
        %v1028 = vunpack.c.l.b16 %v289
        %v1029 = vunpack.c.h.b16 %v289
        %v1030 = vunpack.c.l.b16 %v290
        %v1031 = vunpack.c.l.b16 %v291
        %v1032 = vunpack.c.h.b16 %v291
        %v1033 = vunpack.c.l.b16 %v292
        %v1034 = vunpack.c.h.b16 %v292
        %v1035 = vunpack.c.l.b16 %v293
        %v1036 = vunpack.c.h.b16 %v293
        %v1037 = vunpack.c.l.b16 %v294
        %v1038 = vunpack.c.h.b16 %v294
        %v1039 = vunpack.c.l.b16 %v295
        %v1040 = vunpack.c.l.b16 %v296
        %v1041 = vunpack.c.h.b16 %v296
        %v1042 = vunpack.c.l.b16 %v297
        %v1043 = vunpack.c.h.b16 %v297
        %v1044 = vunpack.c.l.b16 %v298
        %v1045 = vunpack.c.h.b16 %v298
        %v1046 = vunpack.c.l.b16 %v299
        %v1047 = vunpack.c.h.b16 %v299
        %v1048 = vunpack.c.l.b16 %v300
        %v1049 = vunpack.c.l.b16 %v301
        %v1050 = vunpack.c.h.b16 %v301
        %v1051 = vunpack.c.l.b16 %v302
        %v1052 = vunpack.c.h.b16 %v302
        %v1053 = vunpack.c.l.b16 %v303
        %v1054 = vunpack.c.h.b16 %v303
        %v1055 = vunpack.c.l.b16 %v304
        %v1056 = vunpack.c.h.b16 %v304
        %v1057 = vunpack.c.l.b16 %v305
        %v1058 = vunpack.c.l.b16 %v306
        %v1059 = vunpack.c.h.b16 %v306
        %v1060 = vunpack.c.l.b16 %v307
        %v1061 = vunpack.c.h.b16 %v307
        %v1062 = vunpack.c.l.b16 %v308
        %v1063 = vunpack.c.h.b16 %v308
        %v1064 = vunpack.c.l.b16 %v309
        %v1065 = vunpack.c.h.b16 %v309
        %v1066 = vunpack.c.l.b16 %v310
        %v1067 = vunpack.c.l.b16 %v311
        %v1068 = vunpack.c.h.b16 %v311
        %v1069 = vunpack.c.l.b16 %v312
        %v1070 = vunpack.c.h.b16 %v312
        %v1071 = vunpack.c.l.b16 %v313
        %v1072 = vunpack.c.h.b16 %v313
        %v1073 = vunpack.c.l.b16 %v314
        %v1074 = vunpack.c.h.b16 %v314
        %v1075 = vunpack.c.l.b16 %v315
        %v1076 = vunpack.c.l.b16 %v316
        %v1077 = vunpack.c.h.b16 %v316
        %v1078 = vunpack.c.l.b16 %v317
        %v1079 = vunpack.c.h.b16 %v317
        %v1080 = vunpack.c.l.b16 %v318
        %v1081 = vunpack.c.h.b16 %v318
        %v1082 = vunpack.c.l.b16 %v319
        %v1083 = vunpack.c.h.b16 %v319
        %v1084 = vunpack.c.l.b16 %v320
        %v1085 = vunpack.c.l.b16 %v321
        %v1086 = vunpack.c.h.b16 %v321
        %v1087 = vunpack.c.l.b16 %v322
        %v1088 = vunpack.c.h.b16 %v322
        %v1089 = vunpack.c.l.b16 %v323
        %v1090 = vunpack.c.h.b16 %v323
        %v1091 = vunpack.c.l.b16 %v324
        %v1092 = vunpack.c.h.b16 %v324
        %v1093 = vunpack.c.l.b16 %v325
        %v1094 = vunpack.c.l.b16 %v326
        %v1095 = vunpack.c.h.b16 %v326
        %v1096 = vunpack.c.l.b16 %v327
        %v1097 = vunpack.c.h.b16 %v327
        %v1098 = vunpack.c.l.b16 %v328
        %v1099 = vunpack.c.h.b16 %v328
        %v1100 = vunpack.c.l.b16 %v329
        %v1101 = vunpack.c.h.b16 %v329
        %v1102 = vunpack.c.l.b16 %v330
        %v1103 = vunpack.c.l.b16 %v331
        %v1104 = vunpack.c.h.b16 %v331
        %v1105 = vunpack.c.l.b16 %v332
        %v1106 = vunpack.c.h.b16 %v332
        %v1107 = vunpack.c.l.b16 %v333
        %v1108 = vunpack.c.h.b16 %v333
        %v1109 = vunpack.c.l.b16 %v334
        %v1110 = vunpack.c.h.b16 %v334
        %v1111 = vunpack.c.l.b16 %v335
        %v1112 = vunpack.c.l.b16 %v336
        %v1113 = vunpack.c.h.b16 %v336
        %v1114 = vunpack.c.l.b16 %v337
        %v1115 = vunpack.c.h.b16 %v337
        %v1116 = vunpack.c.l.b16 %v338
        %v1117 = vunpack.c.h.b16 %v338
        %v1118 = vunpack.c.l.b16 %v339
        %v1119 = vunpack.c.h.b16 %v339
        %v1120 = vunpack.c.l.b16 %v340
        %v1121 = vunpack.c.l.b16 %v341
        %v1122 = vunpack.c.h.b16 %v341
        %v1123 = vunpack.c.l.b16 %v342
        %v1124 = vunpack.c.h.b16 %v342
        %v1125 = vunpack.c.l.b16 %v343
        %v1126 = vunpack.c.h.b16 %v343
        %v1127 = vunpack.c.l.b16 %v344
        %v1128 = vunpack.c.h.b16 %v344
        %v1129 = vunpack.c.l.b16 %v345
        %v1130 = vunpack.c.l.b16 %v346
        %v1131 = vunpack.c.h.b16 %v346
        %v1132 = vunpack.c.l.b16 %v347
        %v1133 = vunpack.c.h.b16 %v347
        %v1134 = vunpack.c.l.b16 %v348
        %v1135 = vunpack.c.h.b16 %v348
        %v1136 = vunpack.c.l.b16 %v349
        %v1137 = vunpack.c.h.b16 %v349
        %v1138 = vunpack.c.l.b16 %v350
        %v1139 = vunpack.c.l.b16 %v351
        %v1140 = vunpack.c.h.b16 %v351
        %v1141 = vunpack.c.l.b16 %v352
        %v1142 = vunpack.c.h.b16 %v352
        %v1143 = vunpack.c.l.b16 %v353
        %v1144 = vunpack.c.h.b16 %v353
        %v1145 = vunpack.c.l.b16 %v354
        %v1146 = vunpack.c.h.b16 %v354
        %v1147 = vunpack.c.l.b16 %v355
        %v1148 = vunpack.c.l.b16 %v356
        %v1149 = vunpack.c.h.b16 %v356
        %v1150 = vunpack.c.l.b16 %v357
        %v1151 = vunpack.c.h.b16 %v357
        %v1152 = vunpack.c.l.b16 %v358
        %v1153 = vunpack.c.h.b16 %v358
        %v1154 = vunpack.c.l.b16 %v359
        %v1155 = vunpack.c.h.b16 %v359
        %v1156 = vunpack.c.l.b16 %v360
        %v1157 = vunpack.c.l.b16 %v361
        %v1158 = vunpack.c.h.b16 %v361
        %v1159 = vunpack.c.l.b16 %v362
        %v1160 = vunpack.c.h.b16 %v362
        %v1161 = vunpack.c.l.b16 %v363
        %v1162 = vunpack.c.h.b16 %v363
        %v1163 = vunpack.c.l.b16 %v364
        %v1164 = vunpack.c.h.b16 %v364
        %v1165 = vunpack.c.l.b16 %v365
        %v1166 = vunpack.c.l.b16 %v366
        %v1167 = vunpack.c.h.b16 %v366
        %v1168 = vunpack.c.l.b16 %v367
        %v1169 = vunpack.c.h.b16 %v367
        %v1170 = vunpack.c.l.b16 %v368
        %v1171 = vunpack.c.h.b16 %v368
        %v1172 = vunpack.c.l.b16 %v369
        %v1173 = vunpack.c.h.b16 %v369
        %v1174 = vunpack.c.l.b16 %v370
        %v1175 = vunpack.c.l.b16 %v371
        %v1176 = vunpack.c.h.b16 %v371
        %v1177 = vunpack.c.l.b16 %v372
        %v1178 = vunpack.c.h.b16 %v372
        %v1179 = vunpack.c.l.b16 %v373
        %v1180 = vunpack.c.h.b16 %v373
        %v1181 = vunpack.c.l.b16 %v374
        %v1182 = vunpack.c.h.b16 %v374
        %v1183 = vunpack.c.l.b16 %v375
        %v1184 = vunpack.c.l.b16 %v376
        %v1185 = vunpack.c.h.b16 %v376
        %v1186 = vunpack.c.l.b16 %v377
        %v1187 = vunpack.c.h.b16 %v377
        %v1188 = vunpack.c.l.b16 %v378
        %v1189 = vunpack.c.h.b16 %v378
        %v1190 = vunpack.c.l.b16 %v379
        %v1191 = vunpack.c.h.b16 %v379
        %v1192 = vunpack.c.l.b16 %v380
        %v1193 = vunpack.c.l.b16 %v381
        %v1194 = vunpack.c.h.b16 %v381
        %v1195 = vunpack.c.l.b16 %v382
        %v1196 = vunpack.c.h.b16 %v382
        %v1197 = vunpack.c.l.b16 %v383
        %v1198 = vunpack.c.h.b16 %v383
        %v1199 = vunpack.c.l.b16 %v384
        %v1200 = vunpack.c.h.b16 %v384
        %v1201 = vunpack.c.l.b16 %v385
        %v1202 = vunpack.c.l.b16 %v386
        %v1203 = vunpack.c.h.b16 %v386
        %v1204 = vunpack.c.l.b16 %v387
        %v1205 = vunpack.c.h.b16 %v387
        %v1206 = vunpack.c.l.b16 %v388
        %v1207 = vunpack.c.h.b16 %v388
        %v1208 = vunpack.c.l.b16 %v389
        %v1209 = vunpack.c.h.b16 %v389
        %v1210 = vunpack.c.l.b16 %v390
        %v1211 = vunpack.c.l.b16 %v391
        %v1212 = vunpack.c.h.b16 %v391
        %v1213 = vunpack.c.l.b16 %v392
        %v1214 = vunpack.c.h.b16 %v392
        %v1215 = vunpack.c.l.b16 %v393
        %v1216 = vunpack.c.h.b16 %v393
        %v1217 = vunpack.c.l.b16 %v394
        %v1218 = vunpack.c.h.b16 %v394
        %v1219 = vunpack.c.l.b16 %v395
        %v1220 = vunpack.c.l.b16 %v396
        %v1221 = vunpack.c.h.b16 %v396
        %v1222 = vunpack.c.l.b16 %v397
        %v1223 = vunpack.c.h.b16 %v397
        %v1224 = vunpack.c.l.b16 %v398
        %v1225 = vunpack.c.h.b16 %v398
        %v1226 = vunpack.c.l.b16 %v399
        %v1227 = vunpack.c.h.b16 %v399
        %v1228 = vunpack.c.l.b16 %v400
        %v1229 = vunpack.c.l.b16 %v401
        %v1230 = vunpack.c.h.b16 %v401
        %v1231 = vunpack.c.l.b16 %v402
        %v1232 = vunpack.c.h.b16 %v402
        %v1233 = vunpack.c.l.b16 %v403
        %v1234 = vunpack.c.h.b16 %v403
        %v1235 = vunpack.c.l.b16 %v404
        %v1236 = vunpack.c.h.b16 %v404
        %v1237 = vunpack.c.l.b16 %v405
        %v1238 = vunpack.c.l.b16 %v406
        %v1239 = vunpack.c.h.b16 %v406
        %v1240 = vunpack.c.l.b16 %v407
        %v1241 = vunpack.c.h.b16 %v407
        %v1242 = vunpack.c.l.b16 %v408
        %v1243 = vunpack.c.h.b16 %v408
        %v1244 = vunpack.c.l.b16 %v409
        %v1245 = vunpack.c.h.b16 %v409
        %v1246 = vunpack.c.l.b16 %v410
        %v1247 = vunpack.c.l.b16 %v411
        %v1248 = vunpack.c.h.b16 %v411
        %v1249 = vunpack.c.l.b16 %v412
        %v1250 = vunpack.c.h.b16 %v412
        %v1251 = vunpack.c.l.b16 %v413
        %v1252 = vunpack.c.h.b16 %v413
        %v1253 = vunpack.c.l.b16 %v414
        %v1254 = vunpack.c.h.b16 %v414
        %v1255 = vunpack.c.l.b16 %v415
        %v1256 = vunpack.c.l.b16 %v416
        %v1257 = vunpack.c.h.b16 %v416
        %v1258 = vunpack.c.l.b16 %v417
        %v1259 = vunpack.c.h.b16 %v417
        %v1260 = vunpack.c.l.b16 %v418
        %v1261 = vunpack.c.h.b16 %v418
        %v1262 = vunpack.c.l.b16 %v419
        %v1263 = vunpack.c.h.b16 %v419
        %v1264 = vunpack.c.l.b16 %v420
        %v1265 = vunpack.c.l.b16 %v421
        %v1266 = vunpack.c.h.b16 %v421
        %v1267 = vunpack.c.l.b16 %v422
        %v1268 = vunpack.c.h.b16 %v422
        %v1269 = vunpack.c.l.b16 %v423
        %v1270 = vunpack.c.h.b16 %v423
        %v1271 = vunpack.c.l.b16 %v424
        %v1272 = vunpack.c.h.b16 %v424
        %v1273 = vunpack.c.l.b16 %v425
        %v1274 = vunpack.c.l.b16 %v426
        %v1275 = vunpack.c.h.b16 %v426
        %v1276 = vunpack.c.l.b16 %v427
        %v1277 = vunpack.c.h.b16 %v427
        %v1278 = vunpack.c.l.b16 %v428
        %v1279 = vunpack.c.h.b16 %v428
        %v1280 = vunpack.c.l.b16 %v429
        %v1281 = vunpack.c.h.b16 %v429
        %v1282 = vunpack.c.l.b16 %v430
        %v1283 = vunpack.c.l.b16 %v431
        %v1284 = vunpack.c.h.b16 %v431
        %v1285 = vunpack.c.l.b16 %v432
        %v1286 = vunpack.c.h.b16 %v432
        %v1287 = vunpack.c.l.b16 %v433
        %v1288 = vunpack.c.h.b16 %v433
        %v1289 = vunpack.c.l.b16 %v434
        %v1290 = vunpack.c.h.b16 %v434
        %v1291 = vunpack.c.l.b16 %v435
        %v1292 = vunpack.c.l.b16 %v436
        %v1293 = vunpack.c.h.b16 %v436
        %v1294 = vunpack.c.l.b16 %v437
        %v1295 = vunpack.c.h.b16 %v437
        %v1296 = vunpack.c.l.b16 %v438
        %v1297 = vunpack.c.h.b16 %v438
        %v1298 = vunpack.c.l.b16 %v439
        %v1299 = vunpack.c.h.b16 %v439
        %v1300 = vunpack.c.l.b16 %v440
        %v1301 = vunpack.c.l.b16 %v441
        %v1302 = vunpack.c.h.b16 %v441
        %v1303 = vunpack.c.l.b16 %v442
        %v1304 = vunpack.c.h.b16 %v442
        %v1305 = vunpack.c.l.b16 %v443
        %v1306 = vunpack.c.h.b16 %v443
        %v1307 = vunpack.c.l.b16 %v444
        %v1308 = vunpack.c.h.b16 %v444
        %v1309 = vunpack.c.l.b16 %v445
        %v1310 = vunpack.c.l.b16 %v446
        %v1311 = vunpack.c.h.b16 %v446
        %v1312 = vunpack.c.l.b16 %v447
        %v1313 = vunpack.c.h.b16 %v447
        %v1314 = vunpack.c.l.b16 %v448
        %v1315 = vunpack.c.h.b16 %v448
        %v1316 = vunpack.c.l.b16 %v449
        %v1317 = vunpack.c.h.b16 %v449
        %v1318 = vunpack.c.l.b16 %v450
        %v1319 = vunpack.c.l.b16 %v451
        %v1320 = vunpack.c.h.b16 %v451
        %v1321 = vunpack.c.l.b16 %v452
        %v1322 = vunpack.c.h.b16 %v452
        %v1323 = vunpack.c.l.b16 %v453
        %v1324 = vunpack.c.h.b16 %v453
        %v1325 = vunpack.c.l.b16 %v454
        %v1326 = vunpack.c.h.b16 %v454
        %v1327 = vunpack.c.l.b16 %v455
        %v1328 = vunpack.c.l.b16 %v456
        %v1329 = vunpack.c.h.b16 %v456
        %v1330 = vunpack.c.l.b16 %v457
        %v1331 = vunpack.c.h.b16 %v457
        %v1332 = vunpack.c.l.b16 %v458
        %v1333 = vunpack.c.h.b16 %v458
        %v1334 = vunpack.c.l.b16 %v459
        %v1335 = vunpack.c.h.b16 %v459
        %v1336 = vunpack.c.l.b16 %v460
        %v1337 = vunpack.c.l.b16 %v461
        %v1338 = vunpack.c.h.b16 %v461
        %v1339 = vunpack.c.l.b16 %v462
        %v1340 = vunpack.c.h.b16 %v462
        %v1341 = vunpack.c.l.b16 %v463
        %v1342 = vunpack.c.h.b16 %v463
        %v1343 = vunpack.c.l.b16 %v464
        %v1344 = vunpack.c.h.b16 %v464
        %v1345 = vunpack.c.l.b16 %v465
        %v1346 = vunpack.c.l.b16 %v466
        %v1347 = vunpack.c.h.b16 %v466
        %v1348 = vunpack.c.l.b16 %v467
        %v1349 = vunpack.c.h.b16 %v467
        %v1350 = vunpack.c.l.b16 %v468
        %v1351 = vunpack.c.h.b16 %v468
        %v1352 = vunpack.c.l.b16 %v469
        %v1353 = vunpack.c.h.b16 %v469
        %v1354 = vunpack.c.l.b16 %v470
        %v1355 = vunpack.c.l.b16 %v471
        %v1356 = vunpack.c.h.b16 %v471
        %v1357 = vunpack.c.l.b16 %v472
        %v1358 = vunpack.c.h.b16 %v472
        %v1359 = vunpack.c.l.b16 %v473
        %v1360 = vunpack.c.h.b16 %v473
        %v1361 = vunpack.c.l.b16 %v474
        %v1362 = vunpack.c.h.b16 %v474
        %v1363 = vunpack.c.l.b16 %v475
        %v1364 = vunpack.c.l.b16 %v476
        %v1365 = vunpack.c.h.b16 %v476
        %v1366 = vunpack.c.l.b16 %v477
        %v1367 = vunpack.c.h.b16 %v477
        %v1368 = vunpack.c.l.b16 %v478
        %v1369 = vunpack.c.h.b16 %v478
        %v1370 = vunpack.c.l.b16 %v479
        %v1371 = vunpack.c.h.b16 %v479
        %v1372 = vunpack.c.l.b16 %v480
        %v1373 = vunpack.c.l.b16 %v481
        %v1374 = vunpack.c.h.b16 %v481
        %v1375 = vunpack.c.l.b16 %v482
        %v1376 = vunpack.c.h.b16 %v482
        %v1377 = vunpack.c.l.b16 %v483
        %v1378 = vunpack.c.h.b16 %v483
        %v1379 = vunpack.c.l.b16 %v484
        %v1380 = vunpack.c.h.b16 %v484
        %v1381 = vunpack.c.l.b16 %v485
        %v1382 = vunpack.c.l.b16 %v486
        %v1383 = vunpack.c.h.b16 %v486
        %v1384 = vunpack.c.l.b16 %v487
        %v1385 = vunpack.c.h.b16 %v487
        %v1386 = vunpack.c.l.b16 %v488
        %v1387 = vunpack.c.h.b16 %v488
        %v1388 = vunpack.c.l.b16 %v489
        %v1389 = vunpack.c.h.b16 %v489
        %v1390 = vunpack.c.l.b16 %v490
        %v1391 = vunpack.c.l.b16 %v491
        %v1392 = vunpack.c.h.b16 %v491
        %v1393 = vunpack.c.l.b16 %v492
        %v1394 = vunpack.c.h.b16 %v492
        %v1395 = vunpack.c.l.b16 %v493
        %v1396 = vunpack.c.h.b16 %v493
        %v1397 = vunpack.c.l.b16 %v494
        %v1398 = vunpack.c.h.b16 %v494
        %v1399 = vunpack.c.l.b16 %v495
        %v1400 = vunpack.c.l.b16 %v496
        %v1401 = vunpack.c.h.b16 %v496
        %v1402 = vunpack.c.l.b16 %v497
        %v1403 = vunpack.c.h.b16 %v497
        %v1404 = vunpack.c.l.b16 %v498
        %v1405 = vunpack.c.h.b16 %v498
        %v1406 = vunpack.c.l.b16 %v499
        %v1407 = vunpack.c.h.b16 %v499
        %v1408 = vunpack.c.l.b16 %v500
        %v1409 = vunpack.c.l.b16 %v501
        %v1410 = vunpack.c.h.b16 %v501
        %v1411 = vunpack.c.l.b16 %v502
        %v1412 = vunpack.c.h.b16 %v502
        %v1413 = vunpack.c.l.b16 %v503
        %v1414 = vunpack.c.h.b16 %v503
        %v1415 = vunpack.c.l.b16 %v504
        %v1416 = vunpack.c.h.b16 %v504
        %v1417 = vunpack.c.l.b16 %v505
        %v1418 = vunpack.c.l.b16 %v506
        %v1419 = vunpack.c.h.b16 %v506
        %v1420 = vunpack.c.l.b16 %v507
        %v1421 = vunpack.c.h.b16 %v507
        %v1422 = vunpack.c.l.b16 %v508
        %v1423 = vunpack.c.h.b16 %v508
        %v1424 = vunpack.c.l.b16 %v509
        %v1425 = vunpack.c.h.b16 %v509
        %v1426 = vunpack.c.l.b16 %v510
        %v1427 = vunpack.c.l.b16 %v511
        %v1428 = vunpack.c.h.b16 %v511
        %v1429 = vunpack.c.l.b16 %v512
        %v1430 = vunpack.c.h.b16 %v512
        %v1431 = vunpack.c.l.b16 %v513
        %v1432 = vunpack.c.h.b16 %v513
        %v1433 = vunpack.c.l.b16 %v514
        %v1434 = vunpack.c.h.b16 %v514
        %v1435 = vunpack.c.l.b16 %v515
        %v1436 = vunpack.c.l.b16 %v516
        %v1437 = vunpack.c.h.b16 %v516
        %v1438 = vunpack.c.l.b16 %v517
        %v1439 = vunpack.c.h.b16 %v517
        %v1440 = vunpack.c.l.b16 %v518
        %v1441 = vunpack.c.h.b16 %v518
        %v1442 = vunpack.c.l.b16 %v519
        %v1443 = vunpack.c.h.b16 %v519
        %v1444 = vunpack.c.l.b16 %v520
        %v1445 = vunpack.c.l.b16 %v521
        %v1446 = vunpack.c.h.b16 %v521
        %v1447 = vunpack.c.l.b16 %v522
        %v1448 = vunpack.c.h.b16 %v522
        %v1449 = vunpack.c.l.b16 %v523
        %v1450 = vunpack.c.h.b16 %v523
        %v1451 = vunpack.c.l.b16 %v524
        %v1452 = vunpack.c.h.b16 %v524
        %v1453 = vunpack.c.l.b16 %v525
        %v1454 = vpack.c.b16 %v1031, %v1022
        %v1455 = vpack.c.b16 %v1032, %v1023
        %v1456 = vpack.c.b16 %v1033, %v1024
        %v1457 = vpack.c.b16 %v1034, %v1025
        %v1458 = vpack.c.b16 %v1035, %v1026
        %v1459 = vpack.c.b16 %v1036, %v1027
        %v1460 = vpack.c.b16 %v1037, %v1028
        %v1461 = vpack.c.b16 %v1038, %v1029
        %v1462 = vpack.c.b16 %v1039, %v1030
        %v1463 = vpack.c.b16 %v1049, %v1040
        %v1464 = vpack.c.b16 %v1050, %v1041
        %v1465 = vpack.c.b16 %v1051, %v1042
        %v1466 = vpack.c.b16 %v1052, %v1043
        %v1467 = vpack.c.b16 %v1053, %v1044
        %v1468 = vpack.c.b16 %v1054, %v1045
        %v1469 = vpack.c.b16 %v1055, %v1046
        %v1470 = vpack.c.b16 %v1056, %v1047
        %v1471 = vpack.c.b16 %v1057, %v1048
        %v1472 = vpack.c.b16 %v1067, %v1058
        %v1473 = vpack.c.b16 %v1068, %v1059
        %v1474 = vpack.c.b16 %v1069, %v1060
        %v1475 = vpack.c.b16 %v1070, %v1061
        %v1476 = vpack.c.b16 %v1071, %v1062
        %v1477 = vpack.c.b16 %v1072, %v1063
        %v1478 = vpack.c.b16 %v1073, %v1064
        %v1479 = vpack.c.b16 %v1074, %v1065
        %v1480 = vpack.c.b16 %v1075, %v1066
        %v1481 = vpack.c.b16 %v1085, %v1076
        %v1482 = vpack.c.b16 %v1086, %v1077
        %v1483 = vpack.c.b16 %v1087, %v1078
        %v1484 = vpack.c.b16 %v1088, %v1079
        %v1485 = vpack.c.b16 %v1089, %v1080
        %v1486 = vpack.c.b16 %v1090, %v1081
        %v1487 = vpack.c.b16 %v1091, %v1082
        %v1488 = vpack.c.b16 %v1092, %v1083
        %v1489 = vpack.c.b16 %v1093, %v1084
        %v1490 = vpack.c.b16 %v1103, %v1094
        %v1491 = vpack.c.b16 %v1104, %v1095
        %v1492 = vpack.c.b16 %v1105, %v1096
        %v1493 = vpack.c.b16 %v1106, %v1097
        %v1494 = vpack.c.b16 %v1107, %v1098
        %v1495 = vpack.c.b16 %v1108, %v1099
        %v1496 = vpack.c.b16 %v1109, %v1100
        %v1497 = vpack.c.b16 %v1110, %v1101
        %v1498 = vpack.c.b16 %v1111, %v1102
        %v1499 = vpack.c.b16 %v1121, %v1112
        %v1500 = vpack.c.b16 %v1122, %v1113
        %v1501 = vpack.c.b16 %v1123, %v1114
        %v1502 = vpack.c.b16 %v1124, %v1115
        %v1503 = vpack.c.b16 %v1125, %v1116
        %v1504 = vpack.c.b16 %v1126, %v1117
        %v1505 = vpack.c.b16 %v1127, %v1118
        %v1506 = vpack.c.b16 %v1128, %v1119
        %v1507 = vpack.c.b16 %v1129, %v1120
        %v1508 = vpack.c.b16 %v1139, %v1130
        %v1509 = vpack.c.b16 %v1140, %v1131
        %v1510 = vpack.c.b16 %v1141, %v1132
        %v1511 = vpack.c.b16 %v1142, %v1133
        %v1512 = vpack.c.b16 %v1143, %v1134
        %v1513 = vpack.c.b16 %v1144, %v1135
        %v1514 = vpack.c.b16 %v1145, %v1136
        %v1515 = vpack.c.b16 %v1146, %v1137
        %v1516 = vpack.c.b16 %v1147, %v1138
        %v1517 = vpack.c.b16 %v1157, %v1148
        %v1518 = vpack.c.b16 %v1158, %v1149
        %v1519 = vpack.c.b16 %v1159, %v1150
        %v1520 = vpack.c.b16 %v1160, %v1151
        %v1521 = vpack.c.b16 %v1161, %v1152
        %v1522 = vpack.c.b16 %v1162, %v1153
        %v1523 = vpack.c.b16 %v1163, %v1154
        %v1524 = vpack.c.b16 %v1164, %v1155
        %v1525 = vpack.c.b16 %v1165, %v1156
        %v1526 = vpack.c.b16 %v1175, %v1166
        %v1527 = vpack.c.b16 %v1176, %v1167
        %v1528 = vpack.c.b16 %v1177, %v1168
        %v1529 = vpack.c.b16 %v1178, %v1169
        %v1530 = vpack.c.b16 %v1179, %v1170
        %v1531 = vpack.c.b16 %v1180, %v1171
        %v1532 = vpack.c.b16 %v1181, %v1172
        %v1533 = vpack.c.b16 %v1182, %v1173
        %v1534 = vpack.c.b16 %v1183, %v1174
        %v1535 = vpack.c.b16 %v1193, %v1184
        %v1536 = vpack.c.b16 %v1194, %v1185
        %v1537 = vpack.c.b16 %v1195, %v1186
        %v1538 = vpack.c.b16 %v1196, %v1187
        %v1539 = vpack.c.b16 %v1197, %v1188
        %v1540 = vpack.c.b16 %v1198, %v1189
        %v1541 = vpack.c.b16 %v1199, %v1190
        %v1542 = vpack.c.b16 %v1200, %v1191
        %v1543 = vpack.c.b16 %v1201, %v1192
        %v1544 = vpack.c.b16 %v1211, %v1202
        %v1545 = vpack.c.b16 %v1212, %v1203
        %v1546 = vpack.c.b16 %v1213, %v1204
        %v1547 = vpack.c.b16 %v1214, %v1205
        %v1548 = vpack.c.b16 %v1215, %v1206
        %v1549 = vpack.c.b16 %v1216, %v1207
        %v1550 = vpack.c.b16 %v1217, %v1208
        %v1551 = vpack.c.b16 %v1218, %v1209
        %v1552 = vpack.c.b16 %v1219, %v1210
        %v1553 = vpack.c.b16 %v1229, %v1220
        %v1554 = vpack.c.b16 %v1230, %v1221
        %v1555 = vpack.c.b16 %v1231, %v1222
        %v1556 = vpack.c.b16 %v1232, %v1223
        %v1557 = vpack.c.b16 %v1233, %v1224
        %v1558 = vpack.c.b16 %v1234, %v1225
        %v1559 = vpack.c.b16 %v1235, %v1226
        %v1560 = vpack.c.b16 %v1236, %v1227
        %v1561 = vpack.c.b16 %v1237, %v1228
        %v1562 = vpack.c.b16 %v1247, %v1238
        %v1563 = vpack.c.b16 %v1248, %v1239
        %v1564 = vpack.c.b16 %v1249, %v1240
        %v1565 = vpack.c.b16 %v1250, %v1241
        %v1566 = vpack.c.b16 %v1251, %v1242
        %v1567 = vpack.c.b16 %v1252, %v1243
        %v1568 = vpack.c.b16 %v1253, %v1244
        %v1569 = vpack.c.b16 %v1254, %v1245
        %v1570 = vpack.c.b16 %v1255, %v1246
        %v1571 = vpack.c.b16 %v1265, %v1256
        %v1572 = vpack.c.b16 %v1266, %v1257
        %v1573 = vpack.c.b16 %v1267, %v1258
        %v1574 = vpack.c.b16 %v1268, %v1259
        %v1575 = vpack.c.b16 %v1269, %v1260
        %v1576 = vpack.c.b16 %v1270, %v1261
        %v1577 = vpack.c.b16 %v1271, %v1262
        %v1578 = vpack.c.b16 %v1272, %v1263
        %v1579 = vpack.c.b16 %v1273, %v1264
        %v1580 = vpack.c.b16 %v1283, %v1274
        %v1581 = vpack.c.b16 %v1284, %v1275
        %v1582 = vpack.c.b16 %v1285, %v1276
        %v1583 = vpack.c.b16 %v1286, %v1277
        %v1584 = vpack.c.b16 %v1287, %v1278
        %v1585 = vpack.c.b16 %v1288, %v1279
        %v1586 = vpack.c.b16 %v1289, %v1280
        %v1587 = vpack.c.b16 %v1290, %v1281
        %v1588 = vpack.c.b16 %v1291, %v1282
        %v1589 = vpack.c.b16 %v1301, %v1292
        %v1590 = vpack.c.b16 %v1302, %v1293
        %v1591 = vpack.c.b16 %v1303, %v1294
        %v1592 = vpack.c.b16 %v1304, %v1295
        %v1593 = vpack.c.b16 %v1305, %v1296
        %v1594 = vpack.c.b16 %v1306, %v1297
        %v1595 = vpack.c.b16 %v1307, %v1298
        %v1596 = vpack.c.b16 %v1308, %v1299
        %v1597 = vpack.c.b16 %v1309, %v1300
        %v1598 = vpack.c.b16 %v1319, %v1310
        %v1599 = vpack.c.b16 %v1320, %v1311
        %v1600 = vpack.c.b16 %v1321, %v1312
        %v1601 = vpack.c.b16 %v1322, %v1313
        %v1602 = vpack.c.b16 %v1323, %v1314
        %v1603 = vpack.c.b16 %v1324, %v1315
        %v1604 = vpack.c.b16 %v1325, %v1316
        %v1605 = vpack.c.b16 %v1326, %v1317
        %v1606 = vpack.c.b16 %v1327, %v1318
        %v1607 = vpack.c.b16 %v1337, %v1328
        %v1608 = vpack.c.b16 %v1338, %v1329
        %v1609 = vpack.c.b16 %v1339, %v1330
        %v1610 = vpack.c.b16 %v1340, %v1331
        %v1611 = vpack.c.b16 %v1341, %v1332
        %v1612 = vpack.c.b16 %v1342, %v1333
        %v1613 = vpack.c.b16 %v1343, %v1334
        %v1614 = vpack.c.b16 %v1344, %v1335
        %v1615 = vpack.c.b16 %v1345, %v1336
        %v1616 = vpack.c.b16 %v1355, %v1346
        %v1617 = vpack.c.b16 %v1356, %v1347
        %v1618 = vpack.c.b16 %v1357, %v1348
        %v1619 = vpack.c.b16 %v1358, %v1349
        %v1620 = vpack.c.b16 %v1359, %v1350
        %v1621 = vpack.c.b16 %v1360, %v1351
        %v1622 = vpack.c.b16 %v1361, %v1352
        %v1623 = vpack.c.b16 %v1362, %v1353
        %v1624 = vpack.c.b16 %v1363, %v1354
        %v1625 = vpack.c.b16 %v1373, %v1364
        %v1626 = vpack.c.b16 %v1374, %v1365
        %v1627 = vpack.c.b16 %v1375, %v1366
        %v1628 = vpack.c.b16 %v1376, %v1367
        %v1629 = vpack.c.b16 %v1377, %v1368
        %v1630 = vpack.c.b16 %v1378, %v1369
        %v1631 = vpack.c.b16 %v1379, %v1370
        %v1632 = vpack.c.b16 %v1380, %v1371
        %v1633 = vpack.c.b16 %v1381, %v1372
        %v1634 = vpack.c.b16 %v1391, %v1382
        %v1635 = vpack.c.b16 %v1392, %v1383
        %v1636 = vpack.c.b16 %v1393, %v1384
        %v1637 = vpack.c.b16 %v1394, %v1385
        %v1638 = vpack.c.b16 %v1395, %v1386
        %v1639 = vpack.c.b16 %v1396, %v1387
        %v1640 = vpack.c.b16 %v1397, %v1388
        %v1641 = vpack.c.b16 %v1398, %v1389
        %v1642 = vpack.c.b16 %v1399, %v1390
        %v1643 = vpack.c.b16 %v1409, %v1400
        %v1644 = vpack.c.b16 %v1410, %v1401
        %v1645 = vpack.c.b16 %v1411, %v1402
        %v1646 = vpack.c.b16 %v1412, %v1403
        %v1647 = vpack.c.b16 %v1413, %v1404
        %v1648 = vpack.c.b16 %v1414, %v1405
        %v1649 = vpack.c.b16 %v1415, %v1406
        %v1650 = vpack.c.b16 %v1416, %v1407
        %v1651 = vpack.c.b16 %v1417, %v1408
        %v1652 = vpack.c.b16 %v1427, %v1418
        %v1653 = vpack.c.b16 %v1428, %v1419
        %v1654 = vpack.c.b16 %v1429, %v1420
        %v1655 = vpack.c.b16 %v1430, %v1421
        %v1656 = vpack.c.b16 %v1431, %v1422
        %v1657 = vpack.c.b16 %v1432, %v1423
        %v1658 = vpack.c.b16 %v1433, %v1424
        %v1659 = vpack.c.b16 %v1434, %v1425
        %v1660 = vpack.c.b16 %v1435, %v1426
        %v1661 = vpack.c.b16 %v1445, %v1436
        %v1662 = vpack.c.b16 %v1446, %v1437
        %v1663 = vpack.c.b16 %v1447, %v1438
        %v1664 = vpack.c.b16 %v1448, %v1439
        %v1665 = vpack.c.b16 %v1449, %v1440
        %v1666 = vpack.c.b16 %v1450, %v1441
        %v1667 = vpack.c.b16 %v1451, %v1442
        %v1668 = vpack.c.b16 %v1452, %v1443
        %v1669 = vpack.c.b16 %v1453, %v1444
        %1886 = vmatprep.subr.bf16.mxu0 %v1455
        %1887 = vmatpush1.bf16.msra.mxu0 %v1454
        %1888 = vmatprep.subr.bf16.mxu0 %v1464
        %1889 = vmatpush1.bf16.msra.mxu0 %v1463
        %1890 = vmatprep.subr.bf16.mxu0 %v1473
        %1891 = vmatpush1.bf16.msra.mxu0 %v1472
        %1892 = vmatprep.subr.bf16.mxu0 %v1482
        %1893 = vmatpush1.bf16.msra.mxu0 %v1481
        %1894 = vmatprep.subr.bf16.mxu0 %v1491
        %1895 = vmatpush1.bf16.msra.mxu0 %v1490
        %1896 = vmatprep.subr.bf16.mxu0 %v1500
        %1897 = vmatpush1.bf16.msra.mxu0 %v1499
        %1898 = vmatprep.subr.bf16.mxu0 %v1509
        %1899 = vmatpush1.bf16.msra.mxu0 %v1508
        %1900 = vmatprep.subr.bf16.mxu0 %v1518
        %1901 = vmatpush1.bf16.msra.mxu0 %v1517
        %1902 = vmatprep.subr.bf16.mxu0 %v1527
        %1903 = vmatpush1.bf16.msra.mxu0 %v1526
        %1904 = vmatprep.subr.bf16.mxu0 %v1536
        %1905 = vmatpush1.bf16.msra.mxu0 %v1535
        %1906 = vmatprep.subr.bf16.mxu0 %v1545
        %1907 = vmatpush1.bf16.msra.mxu0 %v1544
        %1908 = vmatprep.subr.bf16.mxu0 %v1554
        %1909 = vmatpush1.bf16.msra.mxu0 %v1553
        %1910 = vmatprep.subr.bf16.mxu0 %v1563
        %1911 = vmatpush1.bf16.msra.mxu0 %v1562
        %1912 = vmatprep.subr.bf16.mxu0 %v1572
        %1913 = vmatpush1.bf16.msra.mxu0 %v1571
        %1914 = vmatprep.subr.bf16.mxu0 %v1581
        %1915 = vmatpush1.bf16.msra.mxu0 %v1580
        %1916 = vmatprep.subr.bf16.mxu0 %v1590
        %1917 = vmatpush1.bf16.msra.mxu0 %v1589
        %1918 = vmatprep.mubr.bf16.mxu0 %v687
        %1919 = vmatmul.mubr.bf16.gmra.mrb[0].mxu0 %v686
        %v1920 = vpop.f32.mrb[0].mxu0
        %v1921 = vadd.f32 0.0, %v1920
        %v1922 = vpop.f32.mrb[0].mxu0
        %v1923 = vadd.f32 0.0, %v1922
        %v1924 = vpop.f32.mrb[0].mxu0
        %v1925 = vadd.f32 0.0, %v1924
        %v1926 = vpop.f32.mrb[0].mxu0
        %v1927 = vadd.f32 0.0, %v1926
        %1928 = vmatprep.mubr.bf16.mxu0 %v690
        %1929 = vmatmul.mubr.bf16.gmra.mrb[0].mxu0 %v689
        %v1930 = vpop.f32.mrb[0].mxu0
        %v1931 = vpop.f32.mrb[0].mxu0
        %v1932 = vpop.f32.mrb[0].mxu0
        %v1933 = vpop.f32.mrb[0].mxu0
        %1934 = vmatprep.mubr.bf16.mxu0 %v693
        %1935 = vmatmul.mubr.bf16.gmra.mrb[0].mxu0 %v692
        %v1936 = vpop.f32.mrb[0].mxu0
        %v1937 = vpop.f32.mrb[0].mxu0
        %v1938 = vpop.f32.mrb[0].mxu0
        %v1939 = vpop.f32.mrb[0].mxu0
        %1940 = vmatprep.mubr.bf16.mxu0 %v696
        %1941 = vmatmul.mubr.bf16.gmra.mrb[0].mxu0 %v695
        %v1942 = vpop.f32.mrb[0].mxu0
        %v1943 = vpop.f32.mrb[0].mxu0
        %v1944 = vpop.f32.mrb[0].mxu0
        %v1945 = vpop.f32.mrb[0].mxu0
        %1946 = vmatprep.mubr.bf16.mxu0 %v699
        %1947 = vmatmul.mubr.bf16.gmra.mrb[0].mxu0 %v698
        %v1948 = vpop.f32.mrb[0].mxu0
        %v1949 = vpop.f32.mrb[0].mxu0
        %v1950 = vpop.f32.mrb[0].mxu0
        %v1951 = vpop.f32.mrb[0].mxu0
        %1952 = vmatprep.mubr.bf16.mxu0 %v702
        %1953 = vmatmul.mubr.bf16.gmra.mrb[0].mxu0 %v701
        %v1954 = vpop.f32.mrb[0].mxu0
        %v1955 = vpop.f32.mrb[0].mxu0
        %v1956 = vpop.f32.mrb[0].mxu0
        %v1957 = vpop.f32.mrb[0].mxu0
        %1958 = vmatprep.mubr.bf16.mxu0 %v705
        %1959 = vmatmul.mubr.bf16.gmra.mrb[0].mxu0 %v704
        %v1960 = vpop.f32.mrb[0].mxu0
        %v1961 = vpop.f32.mrb[0].mxu0
        %v1962 = vpop.f32.mrb[0].mxu0
        %v1963 = vpop.f32.mrb[0].mxu0
        %1964 = vmatprep.mubr.bf16.mxu0 %v708
        %1965 = vmatmul.mubr.bf16.gmra.mrb[0].mxu0 %v707
        %v1966 = vpop.f32.mrb[0].mxu0
        %v1967 = vpop.f32.mrb[0].mxu0
        %v1968 = vpop.f32.mrb[0].mxu0
        %v1969 = vpop.f32.mrb[0].mxu0
        %1970 = vmatprep.mubr.bf16.mxu0 %v711
        %1971 = vmatmul.mubr.bf16.gmra.mrb[0].mxu0 %v710
        %v1972 = vpop.f32.mrb[0].mxu0
        %v1973 = vadd.f32 0.0, %v1972
        %v1974 = vpop.f32.mrb[0].mxu0
        %v1975 = vadd.f32 0.0, %v1974
        %v1976 = vpop.f32.mrb[0].mxu0
        %v1977 = vadd.f32 0.0, %v1976
        %v1978 = vpop.f32.mrb[0].mxu0
        %v1979 = vadd.f32 0.0, %v1978
        %1980 = vmatprep.mubr.bf16.mxu0 %v714
        %1981 = vmatmul.mubr.bf16.gmra.mrb[0].mxu0 %v713
        %v1982 = vpop.f32.mrb[0].mxu0
        %v1983 = vpop.f32.mrb[0].mxu0
        %v1984 = vpop.f32.mrb[0].mxu0
        %v1985 = vpop.f32.mrb[0].mxu0
        %1986 = vmatprep.mubr.bf16.mxu0 %v717
        %1987 = vmatmul.mubr.bf16.gmra.mrb[0].mxu0 %v716
        %v1988 = vpop.f32.mrb[0].mxu0
        %v1989 = vpop.f32.mrb[0].mxu0
        %v1990 = vpop.f32.mrb[0].mxu0
        %v1991 = vpop.f32.mrb[0].mxu0
        %1992 = vmatprep.mubr.bf16.mxu0 %v720
        %1993 = vmatmul.mubr.bf16.gmra.mrb[0].mxu0 %v719
        %v1994 = vpop.f32.mrb[0].mxu0
        %v1995 = vpop.f32.mrb[0].mxu0
        %v1996 = vpop.f32.mrb[0].mxu0
        %v1997 = vpop.f32.mrb[0].mxu0
        %1998 = vmatprep.mubr.bf16.mxu0 %v723
        %1999 = vmatmul.mubr.bf16.gmra.mrb[0].mxu0 %v722
        %v2000 = vpop.f32.mrb[0].mxu0
        %v2001 = vpop.f32.mrb[0].mxu0
        %v2002 = vpop.f32.mrb[0].mxu0
        %v2003 = vpop.f32.mrb[0].mxu0
        %2004 = vmatprep.mubr.bf16.mxu0 %v726
        %2005 = vmatmul.mubr.bf16.gmra.mrb[0].mxu0 %v725
        %v2006 = vpop.f32.mrb[0].mxu0
        %v2007 = vpop.f32.mrb[0].mxu0
        %v2008 = vpop.f32.mrb[0].mxu0
        %v2009 = vpop.f32.mrb[0].mxu0
        %2010 = vmatprep.mubr.bf16.mxu0 %v729
        %2011 = vmatmul.mubr.bf16.gmra.mrb[0].mxu0 %v728
        %v2012 = vpop.f32.mrb[0].mxu0
        %v2013 = vpop.f32.mrb[0].mxu0
        %v2014 = vpop.f32.mrb[0].mxu0
        %v2015 = vpop.f32.mrb[0].mxu0
        %2016 = vmatprep.mubr.bf16.mxu0 %v732
        %2017 = vmatmul.mubr.bf16.gmra.mrb[0].mxu0 %v731
        %v2018 = vpop.f32.mrb[0].mxu0
        %v2019 = vpop.f32.mrb[0].mxu0
        %v2020 = vpop.f32.mrb[0].mxu0
        %v2021 = vpop.f32.mrb[0].mxu0
        %2022 = vdwg.mxu0
        %2023 = vmatprep.subr.bf16.mxu0 %v1599
        %2024 = vmatpush1.bf16.msra.mxu0 %v1598
        %2025 = vmatprep.subr.bf16.mxu0 %v1608
        %2026 = vmatpush1.bf16.msra.mxu0 %v1607
        %2027 = vmatprep.subr.bf16.mxu0 %v1617
        %2028 = vmatpush1.bf16.msra.mxu0 %v1616
        %2029 = vmatprep.subr.bf16.mxu0 %v1626
        %2030 = vmatpush1.bf16.msra.mxu0 %v1625
        %2031 = vmatprep.subr.bf16.mxu0 %v1635
        %2032 = vmatpush1.bf16.msra.mxu0 %v1634
        %2033 = vmatprep.subr.bf16.mxu0 %v1644
        %2034 = vmatpush1.bf16.msra.mxu0 %v1643
        %2035 = vmatprep.subr.bf16.mxu0 %v1653
        %2036 = vmatpush1.bf16.msra.mxu0 %v1652
        %2037 = vmatprep.subr.bf16.mxu0 %v1662
        %2038 = vmatpush1.bf16.msra.mxu0 %v1661
        %2039 = vmatprep.subr.bf16.mxu0 0
        %2040 = vmatpush1.bf16.msra.mxu0 0
        %2041 = vmatprep.subr.bf16.mxu0 0
        %2042 = vmatpush1.bf16.msra.mxu0 0
        %2043 = vmatprep.subr.bf16.mxu0 0
        %2044 = vmatpush1.bf16.msra.mxu0 0
        %2045 = vmatprep.subr.bf16.mxu0 0
        %2046 = vmatpush1.bf16.msra.mxu0 0
        %2047 = vmatprep.subr.bf16.mxu0 0
        %2048 = vmatpush1.bf16.msra.mxu0 0
        %2049 = vmatprep.subr.bf16.mxu0 0
        %2050 = vmatpush1.bf16.msra.mxu0 0
        %2051 = vmatprep.subr.bf16.mxu0 0
        %2052 = vmatpush1.bf16.msra.mxu0 0
        %2053 = vmatprep.subr.bf16.mxu0 0
        %2054 = vmatpush1.bf16.msra.mxu0 0
        %2055 = vmatprep.mubr.bf16.mxu0 0
        %2056 = vmatmul.mubr.bf16.gmra.mrb[0].mxu0 %v688
        %v2057 = vpop.f32.mrb[0].mxu0
        %v2058 = vadd.f32 %v1921, %v2057
        %v2059 = vpop.f32.mrb[0].mxu0
        %v2060 = vadd.f32 %v1923, %v2059
        %v2061 = vpop.f32.mrb[0].mxu0
        %v2062 = vadd.f32 %v1925, %v2061
        %v2063 = vpop.f32.mrb[0].mxu0
        %v2064 = vadd.f32 %v1927, %v2063
        %2065 = vmatprep.mubr.bf16.mxu0 0
        %2066 = vmatmul.mubr.bf16.gmra.mrb[0].mxu0 %v691
        %v2067 = vpop.f32.mrb[0].mxu0
        %v2068 = vpop.f32.mrb[0].mxu0
        %v2069 = vpop.f32.mrb[0].mxu0
        %v2070 = vpop.f32.mrb[0].mxu0
        %2071 = vmatprep.mubr.bf16.mxu0 0
        %2072 = vmatmul.mubr.bf16.gmra.mrb[0].mxu0 %v694
        %v2073 = vpop.f32.mrb[0].mxu0
        %v2074 = vpop.f32.mrb[0].mxu0
        %v2075 = vpop.f32.mrb[0].mxu0
        %v2076 = vpop.f32.mrb[0].mxu0
        %2077 = vmatprep.mubr.bf16.mxu0 0
        %2078 = vmatmul.mubr.bf16.gmra.mrb[0].mxu0 %v697
        %v2079 = vpop.f32.mrb[0].mxu0
        %v2080 = vpop.f32.mrb[0].mxu0
        %v2081 = vpop.f32.mrb[0].mxu0
        %v2082 = vpop.f32.mrb[0].mxu0
        %2083 = vmatprep.mubr.bf16.mxu0 0
        %2084 = vmatmul.mubr.bf16.gmra.mrb[0].mxu0 %v700
        %v2085 = vpop.f32.mrb[0].mxu0
        %v2086 = vpop.f32.mrb[0].mxu0
        %v2087 = vpop.f32.mrb[0].mxu0
        %v2088 = vpop.f32.mrb[0].mxu0
        %2089 = vmatprep.mubr.bf16.mxu0 0
        %2090 = vmatmul.mubr.bf16.gmra.mrb[0].mxu0 %v703
        %v2091 = vpop.f32.mrb[0].mxu0
        %v2092 = vpop.f32.mrb[0].mxu0
        %v2093 = vpop.f32.mrb[0].mxu0
        %v2094 = vpop.f32.mrb[0].mxu0
        %2095 = vmatprep.mubr.bf16.mxu0 0
        %2096 = vmatmul.mubr.bf16.gmra.mrb[0].mxu0 %v706
        %v2097 = vpop.f32.mrb[0].mxu0
        %v2098 = vpop.f32.mrb[0].mxu0
        %v2099 = vpop.f32.mrb[0].mxu0
        %v2100 = vpop.f32.mrb[0].mxu0
        %2101 = vmatprep.mubr.bf16.mxu0 0
        %2102 = vmatmul.mubr.bf16.gmra.mrb[0].mxu0 %v709
        %v2103 = vpop.f32.mrb[0].mxu0
        %v2104 = vpop.f32.mrb[0].mxu0
        %v2105 = vpop.f32.mrb[0].mxu0
        %v2106 = vpop.f32.mrb[0].mxu0
        %2107 = vmatprep.mubr.bf16.mxu0 0
        %2108 = vmatmul.mubr.bf16.gmra.mrb[0].mxu0 %v712
        %v2109 = vpop.f32.mrb[0].mxu0
        %v2110 = vadd.f32 %v1973, %v2109
        %v2111 = vpop.f32.mrb[0].mxu0
        %v2112 = vadd.f32 %v1975, %v2111
        %v2113 = vpop.f32.mrb[0].mxu0
        %v2114 = vadd.f32 %v1977, %v2113
        %v2115 = vpop.f32.mrb[0].mxu0
        %v2116 = vadd.f32 %v1979, %v2115
        %2117 = vmatprep.mubr.bf16.mxu0 0
        %2118 = vmatmul.mubr.bf16.gmra.mrb[0].mxu0 %v715
        %v2119 = vpop.f32.mrb[0].mxu0
        %v2120 = vpop.f32.mrb[0].mxu0
        %v2121 = vpop.f32.mrb[0].mxu0
        %v2122 = vpop.f32.mrb[0].mxu0
        %2123 = vmatprep.mubr.bf16.mxu0 0
        %2124 = vmatmul.mubr.bf16.gmra.mrb[0].mxu0 %v718
        %v2125 = vpop.f32.mrb[0].mxu0
        %v2126 = vpop.f32.mrb[0].mxu0
        %v2127 = vpop.f32.mrb[0].mxu0
        %v2128 = vpop.f32.mrb[0].mxu0
        %2129 = vmatprep.mubr.bf16.mxu0 0
        %2130 = vmatmul.mubr.bf16.gmra.mrb[0].mxu0 %v721
        %v2131 = vpop.f32.mrb[0].mxu0
        %v2132 = vpop.f32.mrb[0].mxu0
        %v2133 = vpop.f32.mrb[0].mxu0
        %v2134 = vpop.f32.mrb[0].mxu0
        %2135 = vmatprep.mubr.bf16.mxu0 0
        %2136 = vmatmul.mubr.bf16.gmra.mrb[0].mxu0 %v724
        %v2137 = vpop.f32.mrb[0].mxu0
        %v2138 = vpop.f32.mrb[0].mxu0
        %v2139 = vpop.f32.mrb[0].mxu0
        %v2140 = vpop.f32.mrb[0].mxu0
        %2141 = vmatprep.mubr.bf16.mxu0 0
        %2142 = vmatmul.mubr.bf16.gmra.mrb[0].mxu0 %v727
        %v2143 = vpop.f32.mrb[0].mxu0
        %v2144 = vpop.f32.mrb[0].mxu0
        %v2145 = vpop.f32.mrb[0].mxu0
        %v2146 = vpop.f32.mrb[0].mxu0
        %2147 = vmatprep.mubr.bf16.mxu0 0
        %2148 = vmatmul.mubr.bf16.gmra.mrb[0].mxu0 %v730
        %v2149 = vpop.f32.mrb[0].mxu0
        %v2150 = vpop.f32.mrb[0].mxu0
        %v2151 = vpop.f32.mrb[0].mxu0
        %v2152 = vpop.f32.mrb[0].mxu0
        %2153 = vmatprep.mubr.bf16.mxu0 0
        %2154 = vmatmul.mubr.bf16.gmra.mrb[0].mxu0 %v733
        %v2155 = vpop.f32.mrb[0].mxu0
        %v2156 = vpop.f32.mrb[0].mxu0
        %v2157 = vpop.f32.mrb[0].mxu0
        %v2158 = vpop.f32.mrb[0].mxu0
        %2159 = vdwg.mxu0
        %2160 = vmatprep.subr.bf16.mxu0 %v1457
        %2161 = vmatpush1.bf16.msra.mxu0 %v1456
        %2162 = vmatprep.subr.bf16.mxu0 %v1466
        %2163 = vmatpush1.bf16.msra.mxu0 %v1465
        %2164 = vmatprep.subr.bf16.mxu0 %v1475
        %2165 = vmatpush1.bf16.msra.mxu0 %v1474
        %2166 = vmatprep.subr.bf16.mxu0 %v1484
        %2167 = vmatpush1.bf16.msra.mxu0 %v1483
        %2168 = vmatprep.subr.bf16.mxu0 %v1493
        %2169 = vmatpush1.bf16.msra.mxu0 %v1492
        %2170 = vmatprep.subr.bf16.mxu0 %v1502
        %2171 = vmatpush1.bf16.msra.mxu0 %v1501
        %2172 = vmatprep.subr.bf16.mxu0 %v1511
        %2173 = vmatpush1.bf16.msra.mxu0 %v1510
        %2174 = vmatprep.subr.bf16.mxu0 %v1520
        %2175 = vmatpush1.bf16.msra.mxu0 %v1519
        %2176 = vmatprep.subr.bf16.mxu0 %v1529
        %2177 = vmatpush1.bf16.msra.mxu0 %v1528
        %2178 = vmatprep.subr.bf16.mxu0 %v1538
        %2179 = vmatpush1.bf16.msra.mxu0 %v1537
        %2180 = vmatprep.subr.bf16.mxu0 %v1547
        %2181 = vmatpush1.bf16.msra.mxu0 %v1546
        %2182 = vmatprep.subr.bf16.mxu0 %v1556
        %2183 = vmatpush1.bf16.msra.mxu0 %v1555
        %2184 = vmatprep.subr.bf16.mxu0 %v1565
        %2185 = vmatpush1.bf16.msra.mxu0 %v1564
        %2186 = vmatprep.subr.bf16.mxu0 %v1574
        %2187 = vmatpush1.bf16.msra.mxu0 %v1573
        %2188 = vmatprep.subr.bf16.mxu0 %v1583
        %2189 = vmatpush1.bf16.msra.mxu0 %v1582
        %2190 = vmatprep.subr.bf16.mxu0 %v1592
        %2191 = vmatpush1.bf16.msra.mxu0 %v1591
        %2192 = vmatprep.mubr.bf16.mxu0 %v687
        %2193 = vmatmul.mubr.bf16.gmra.mrb[0].mxu0 %v686
        %v2194 = vpop.f32.mrb[0].mxu0
        %v2195 = vadd.f32 0.0, %v2194
        %v2196 = vpop.f32.mrb[0].mxu0
        %v2197 = vadd.f32 0.0, %v2196
        %v2198 = vpop.f32.mrb[0].mxu0
        %v2199 = vadd.f32 0.0, %v2198
        %v2200 = vpop.f32.mrb[0].mxu0
        %v2201 = vadd.f32 0.0, %v2200
        %2202 = vmatprep.mubr.bf16.mxu0 %v690
        %2203 = vmatmul.mubr.bf16.gmra.mrb[0].mxu0 %v689
        %v2204 = vpop.f32.mrb[0].mxu0
        %v2205 = vpop.f32.mrb[0].mxu0
        %v2206 = vadd.f32 0.0, %v2205
        %v2207 = vpop.f32.mrb[0].mxu0
        %v2208 = vpop.f32.mrb[0].mxu0
        %v2209 = vadd.f32 0.0, %v2208
        %2210 = vmatprep.mubr.bf16.mxu0 %v693
        %2211 = vmatmul.mubr.bf16.gmra.mrb[0].mxu0 %v692
        %v2212 = vpop.f32.mrb[0].mxu0
        %v2213 = vpop.f32.mrb[0].mxu0
        %v2214 = vadd.f32 0.0, %v2213
        %v2215 = vpop.f32.mrb[0].mxu0
        %v2216 = vpop.f32.mrb[0].mxu0
        %v2217 = vadd.f32 0.0, %v2216
        %2218 = vmatprep.mubr.bf16.mxu0 %v696
        %2219 = vmatmul.mubr.bf16.gmra.mrb[0].mxu0 %v695
        %v2220 = vpop.f32.mrb[0].mxu0
        %v2221 = vpop.f32.mrb[0].mxu0
        %v2222 = vadd.f32 0.0, %v2221
        %v2223 = vpop.f32.mrb[0].mxu0
        %v2224 = vpop.f32.mrb[0].mxu0
        %v2225 = vadd.f32 0.0, %v2224
        %2226 = vmatprep.mubr.bf16.mxu0 %v699
        %2227 = vmatmul.mubr.bf16.gmra.mrb[0].mxu0 %v698
        %v2228 = vpop.f32.mrb[0].mxu0
        %v2229 = vpop.f32.mrb[0].mxu0
        %v2230 = vadd.f32 0.0, %v2229
        %v2231 = vpop.f32.mrb[0].mxu0
        %v2232 = vpop.f32.mrb[0].mxu0
        %v2233 = vadd.f32 0.0, %v2232
        %2234 = vmatprep.mubr.bf16.mxu0 %v702
        %2235 = vmatmul.mubr.bf16.gmra.mrb[0].mxu0 %v701
        %v2236 = vpop.f32.mrb[0].mxu0
        %v2237 = vpop.f32.mrb[0].mxu0
        %v2238 = vadd.f32 0.0, %v2237
        %v2239 = vpop.f32.mrb[0].mxu0
        %v2240 = vpop.f32.mrb[0].mxu0
        %v2241 = vadd.f32 0.0, %v2240
        %2242 = vmatprep.mubr.bf16.mxu0 %v705
        %2243 = vmatmul.mubr.bf16.gmra.mrb[0].mxu0 %v704
        %v2244 = vpop.f32.mrb[0].mxu0
        %v2245 = vpop.f32.mrb[0].mxu0
        %v2246 = vadd.f32 0.0, %v2245
        %v2247 = vpop.f32.mrb[0].mxu0
        %v2248 = vpop.f32.mrb[0].mxu0
        %v2249 = vadd.f32 0.0, %v2248
        %2250 = vmatprep.mubr.bf16.mxu0 %v708
        %2251 = vmatmul.mubr.bf16.gmra.mrb[0].mxu0 %v707
        %v2252 = vpop.f32.mrb[0].mxu0
        %v2253 = vpop.f32.mrb[0].mxu0
        %v2254 = vadd.f32 0.0, %v2253
        %v2255 = vpop.f32.mrb[0].mxu0
        %v2256 = vpop.f32.mrb[0].mxu0
        %v2257 = vadd.f32 0.0, %v2256
        %2258 = vmatprep.mubr.bf16.mxu0 %v711
        %2259 = vmatmul.mubr.bf16.gmra.mrb[0].mxu0 %v710
        %v2260 = vpop.f32.mrb[0].mxu0
        %v2261 = vadd.f32 0.0, %v2260
        %v2262 = vpop.f32.mrb[0].mxu0
        %v2263 = vadd.f32 0.0, %v2262
        %v2264 = vpop.f32.mrb[0].mxu0
        %v2265 = vadd.f32 0.0, %v2264
        %v2266 = vpop.f32.mrb[0].mxu0
        %v2267 = vadd.f32 0.0, %v2266
        %2268 = vmatprep.mubr.bf16.mxu0 %v714
        %2269 = vmatmul.mubr.bf16.gmra.mrb[0].mxu0 %v713
        %v2270 = vpop.f32.mrb[0].mxu0
        %v2271 = vpop.f32.mrb[0].mxu0
        %v2272 = vadd.f32 0.0, %v2271
        %v2273 = vpop.f32.mrb[0].mxu0
        %v2274 = vpop.f32.mrb[0].mxu0
        %v2275 = vadd.f32 0.0, %v2274
        %2276 = vmatprep.mubr.bf16.mxu0 %v717
        %2277 = vmatmul.mubr.bf16.gmra.mrb[0].mxu0 %v716
        %v2278 = vpop.f32.mrb[0].mxu0
        %v2279 = vpop.f32.mrb[0].mxu0
        %v2280 = vadd.f32 0.0, %v2279
        %v2281 = vpop.f32.mrb[0].mxu0
        %v2282 = vpop.f32.mrb[0].mxu0
        %v2283 = vadd.f32 0.0, %v2282
        %2284 = vmatprep.mubr.bf16.mxu0 %v720
        %2285 = vmatmul.mubr.bf16.gmra.mrb[0].mxu0 %v719
        %v2286 = vpop.f32.mrb[0].mxu0
        %v2287 = vpop.f32.mrb[0].mxu0
        %v2288 = vadd.f32 0.0, %v2287
        %v2289 = vpop.f32.mrb[0].mxu0
        %v2290 = vpop.f32.mrb[0].mxu0
        %v2291 = vadd.f32 0.0, %v2290
        %2292 = vmatprep.mubr.bf16.mxu0 %v723
        %2293 = vmatmul.mubr.bf16.gmra.mrb[0].mxu0 %v722
        %v2294 = vpop.f32.mrb[0].mxu0
        %v2295 = vpop.f32.mrb[0].mxu0
        %v2296 = vadd.f32 0.0, %v2295
        %v2297 = vpop.f32.mrb[0].mxu0
        %v2298 = vpop.f32.mrb[0].mxu0
        %v2299 = vadd.f32 0.0, %v2298
        %2300 = vmatprep.mubr.bf16.mxu0 %v726
        %2301 = vmatmul.mubr.bf16.gmra.mrb[0].mxu0 %v725
        %v2302 = vpop.f32.mrb[0].mxu0
        %v2303 = vpop.f32.mrb[0].mxu0
        %v2304 = vadd.f32 0.0, %v2303
        %v2305 = vpop.f32.mrb[0].mxu0
        %v2306 = vpop.f32.mrb[0].mxu0
        %v2307 = vadd.f32 0.0, %v2306
        %2308 = vmatprep.mubr.bf16.mxu0 %v729
        %2309 = vmatmul.mubr.bf16.gmra.mrb[0].mxu0 %v728
        %v2310 = vpop.f32.mrb[0].mxu0
        %v2311 = vpop.f32.mrb[0].mxu0
        %v2312 = vadd.f32 0.0, %v2311
        %v2313 = vpop.f32.mrb[0].mxu0
        %v2314 = vpop.f32.mrb[0].mxu0
        %v2315 = vadd.f32 0.0, %v2314
        %2316 = vmatprep.mubr.bf16.mxu0 %v732
        %2317 = vmatmul.mubr.bf16.gmra.mrb[0].mxu0 %v731
        %v2318 = vpop.f32.mrb[0].mxu0
        %v2319 = vpop.f32.mrb[0].mxu0
        %v2320 = vadd.f32 0.0, %v2319
        %v2321 = vpop.f32.mrb[0].mxu0
        %v2322 = vpop.f32.mrb[0].mxu0
        %v2323 = vadd.f32 0.0, %v2322
        %2324 = vdwg.mxu0
        %2325 = vmatprep.subr.bf16.mxu0 %v1601
        %2326 = vmatpush1.bf16.msra.mxu0 %v1600
        %2327 = vmatprep.subr.bf16.mxu0 %v1610
        %2328 = vmatpush1.bf16.msra.mxu0 %v1609
        %2329 = vmatprep.subr.bf16.mxu0 %v1619
        %2330 = vmatpush1.bf16.msra.mxu0 %v1618
        %2331 = vmatprep.subr.bf16.mxu0 %v1628
        %2332 = vmatpush1.bf16.msra.mxu0 %v1627
        %2333 = vmatprep.subr.bf16.mxu0 %v1637
        %2334 = vmatpush1.bf16.msra.mxu0 %v1636
        %2335 = vmatprep.subr.bf16.mxu0 %v1646
        %2336 = vmatpush1.bf16.msra.mxu0 %v1645
        %2337 = vmatprep.subr.bf16.mxu0 %v1655
        %2338 = vmatpush1.bf16.msra.mxu0 %v1654
        %2339 = vmatprep.subr.bf16.mxu0 %v1664
        %2340 = vmatpush1.bf16.msra.mxu0 %v1663
        %2341 = vmatprep.subr.bf16.mxu0 0
        %2342 = vmatpush1.bf16.msra.mxu0 0
        %2343 = vmatprep.subr.bf16.mxu0 0
        %2344 = vmatpush1.bf16.msra.mxu0 0
        %2345 = vmatprep.subr.bf16.mxu0 0
        %2346 = vmatpush1.bf16.msra.mxu0 0
        %2347 = vmatprep.subr.bf16.mxu0 0
        %2348 = vmatpush1.bf16.msra.mxu0 0
        %2349 = vmatprep.subr.bf16.mxu0 0
        %2350 = vmatpush1.bf16.msra.mxu0 0
        %2351 = vmatprep.subr.bf16.mxu0 0
        %2352 = vmatpush1.bf16.msra.mxu0 0
        %2353 = vmatprep.subr.bf16.mxu0 0
        %2354 = vmatpush1.bf16.msra.mxu0 0
        %2355 = vmatprep.subr.bf16.mxu0 0
        %2356 = vmatpush1.bf16.msra.mxu0 0
        %2357 = vmatprep.mubr.bf16.mxu0 0
        %2358 = vmatmul.mubr.bf16.gmra.mrb[0].mxu0 %v688
        %v2359 = vpop.f32.mrb[0].mxu0
        %v2360 = vadd.f32 %v2195, %v2359
        %v2361 = vpop.f32.mrb[0].mxu0
        %v2362 = vadd.f32 %v2197, %v2361
        %v2363 = vpop.f32.mrb[0].mxu0
        %v2364 = vadd.f32 %v2199, %v2363
        %v2365 = vpop.f32.mrb[0].mxu0
        %v2366 = vadd.f32 %v2201, %v2365
        %2367 = vmatprep.mubr.bf16.mxu0 0
        %2368 = vmatmul.mubr.bf16.gmra.mrb[0].mxu0 %v691
        %v2369 = vpop.f32.mrb[0].mxu0
        %v2370 = vpop.f32.mrb[0].mxu0
        %v2371 = vadd.f32 %v2206, %v2370
        %v2372 = vpop.f32.mrb[0].mxu0
        %v2373 = vpop.f32.mrb[0].mxu0
        %v2374 = vadd.f32 %v2209, %v2373
        %2375 = vmatprep.mubr.bf16.mxu0 0
        %2376 = vmatmul.mubr.bf16.gmra.mrb[0].mxu0 %v694
        %v2377 = vpop.f32.mrb[0].mxu0
        %v2378 = vpop.f32.mrb[0].mxu0
        %v2379 = vadd.f32 %v2214, %v2378
        %v2380 = vpop.f32.mrb[0].mxu0
        %v2381 = vpop.f32.mrb[0].mxu0
        %v2382 = vadd.f32 %v2217, %v2381
        %2383 = vmatprep.mubr.bf16.mxu0 0
        %2384 = vmatmul.mubr.bf16.gmra.mrb[0].mxu0 %v697
        %v2385 = vpop.f32.mrb[0].mxu0
        %v2386 = vpop.f32.mrb[0].mxu0
        %v2387 = vadd.f32 %v2222, %v2386
        %v2388 = vpop.f32.mrb[0].mxu0
        %v2389 = vpop.f32.mrb[0].mxu0
        %v2390 = vadd.f32 %v2225, %v2389
        %2391 = vmatprep.mubr.bf16.mxu0 0
        %2392 = vmatmul.mubr.bf16.gmra.mrb[0].mxu0 %v700
        %v2393 = vpop.f32.mrb[0].mxu0
        %v2394 = vpop.f32.mrb[0].mxu0
        %v2395 = vadd.f32 %v2230, %v2394
        %v2396 = vpop.f32.mrb[0].mxu0
        %v2397 = vpop.f32.mrb[0].mxu0
        %v2398 = vadd.f32 %v2233, %v2397
        %2399 = vmatprep.mubr.bf16.mxu0 0
        %2400 = vmatmul.mubr.bf16.gmra.mrb[0].mxu0 %v703
        %v2401 = vpop.f32.mrb[0].mxu0
        %v2402 = vpop.f32.mrb[0].mxu0
        %v2403 = vadd.f32 %v2238, %v2402
        %v2404 = vpop.f32.mrb[0].mxu0
        %v2405 = vpop.f32.mrb[0].mxu0
        %v2406 = vadd.f32 %v2241, %v2405
        %2407 = vmatprep.mubr.bf16.mxu0 0
        %2408 = vmatmul.mubr.bf16.gmra.mrb[0].mxu0 %v706
        %v2409 = vpop.f32.mrb[0].mxu0
        %v2410 = vpop.f32.mrb[0].mxu0
        %v2411 = vadd.f32 %v2246, %v2410
        %v2412 = vpop.f32.mrb[0].mxu0
        %v2413 = vpop.f32.mrb[0].mxu0
        %v2414 = vadd.f32 %v2249, %v2413
        %2415 = vmatprep.mubr.bf16.mxu0 0
        %2416 = vmatmul.mubr.bf16.gmra.mrb[0].mxu0 %v709
        %v2417 = vpop.f32.mrb[0].mxu0
        %v2418 = vpop.f32.mrb[0].mxu0
        %v2419 = vadd.f32 %v2254, %v2418
        %v2420 = vpop.f32.mrb[0].mxu0
        %v2421 = vpop.f32.mrb[0].mxu0
        %v2422 = vadd.f32 %v2257, %v2421
        %2423 = vmatprep.mubr.bf16.mxu0 0
        %2424 = vmatmul.mubr.bf16.gmra.mrb[0].mxu0 %v712
        %v2425 = vpop.f32.mrb[0].mxu0
        %v2426 = vadd.f32 %v2261, %v2425
        %v2427 = vpop.f32.mrb[0].mxu0
        %v2428 = vadd.f32 %v2263, %v2427
        %v2429 = vpop.f32.mrb[0].mxu0
        %v2430 = vadd.f32 %v2265, %v2429
        %v2431 = vpop.f32.mrb[0].mxu0
        %v2432 = vadd.f32 %v2267, %v2431
        %2433 = vmatprep.mubr.bf16.mxu0 0
        %2434 = vmatmul.mubr.bf16.gmra.mrb[0].mxu0 %v715
        %v2435 = vpop.f32.mrb[0].mxu0
        %v2436 = vpop.f32.mrb[0].mxu0
        %v2437 = vadd.f32 %v2272, %v2436
        %v2438 = vpop.f32.mrb[0].mxu0
        %v2439 = vpop.f32.mrb[0].mxu0
        %v2440 = vadd.f32 %v2275, %v2439
        %2441 = vmatprep.mubr.bf16.mxu0 0
        %2442 = vmatmul.mubr.bf16.gmra.mrb[0].mxu0 %v718
        %v2443 = vpop.f32.mrb[0].mxu0
        %v2444 = vpop.f32.mrb[0].mxu0
        %v2445 = vadd.f32 %v2280, %v2444
        %v2446 = vpop.f32.mrb[0].mxu0
        %v2447 = vpop.f32.mrb[0].mxu0
        %v2448 = vadd.f32 %v2283, %v2447
        %2449 = vmatprep.mubr.bf16.mxu0 0
        %2450 = vmatmul.mubr.bf16.gmra.mrb[0].mxu0 %v721
        %v2451 = vpop.f32.mrb[0].mxu0
        %v2452 = vpop.f32.mrb[0].mxu0
        %v2453 = vadd.f32 %v2288, %v2452
        %v2454 = vpop.f32.mrb[0].mxu0
        %v2455 = vpop.f32.mrb[0].mxu0
        %v2456 = vadd.f32 %v2291, %v2455
        %2457 = vmatprep.mubr.bf16.mxu0 0
        %2458 = vmatmul.mubr.bf16.gmra.mrb[0].mxu0 %v724
        %v2459 = vpop.f32.mrb[0].mxu0
        %v2460 = vpop.f32.mrb[0].mxu0
        %v2461 = vadd.f32 %v2296, %v2460
        %v2462 = vpop.f32.mrb[0].mxu0
        %v2463 = vpop.f32.mrb[0].mxu0
        %v2464 = vadd.f32 %v2299, %v2463
        %2465 = vmatprep.mubr.bf16.mxu0 0
        %2466 = vmatmul.mubr.bf16.gmra.mrb[0].mxu0 %v727
        %v2467 = vpop.f32.mrb[0].mxu0
        %v2468 = vpop.f32.mrb[0].mxu0
        %v2469 = vadd.f32 %v2304, %v2468
        %v2470 = vpop.f32.mrb[0].mxu0
        %v2471 = vpop.f32.mrb[0].mxu0
        %v2472 = vadd.f32 %v2307, %v2471
        %2473 = vmatprep.mubr.bf16.mxu0 0
        %2474 = vmatmul.mubr.bf16.gmra.mrb[0].mxu0 %v730
        %v2475 = vpop.f32.mrb[0].mxu0
        %v2476 = vpop.f32.mrb[0].mxu0
        %v2477 = vadd.f32 %v2312, %v2476
        %v2478 = vpop.f32.mrb[0].mxu0
        %v2479 = vpop.f32.mrb[0].mxu0
        %v2480 = vadd.f32 %v2315, %v2479
        %2481 = vmatprep.mubr.bf16.mxu0 0
        %2482 = vmatmul.mubr.bf16.gmra.mrb[0].mxu0 %v733
        %v2483 = vpop.f32.mrb[0].mxu0
        %v2484 = vpop.f32.mrb[0].mxu0
        %v2485 = vadd.f32 %v2320, %v2484
        %v2486 = vpop.f32.mrb[0].mxu0
        %v2487 = vpop.f32.mrb[0].mxu0
        %v2488 = vadd.f32 %v2323, %v2487
        %2489 = vdwg.mxu0
        %2490 = vmatprep.subr.bf16.mxu0 %v1459
        %2491 = vmatpush1.bf16.msra.mxu0 %v1458
        %2492 = vmatprep.subr.bf16.mxu0 %v1468
        %2493 = vmatpush1.bf16.msra.mxu0 %v1467
        %2494 = vmatprep.subr.bf16.mxu0 %v1477
        %2495 = vmatpush1.bf16.msra.mxu0 %v1476
        %2496 = vmatprep.subr.bf16.mxu0 %v1486
        %2497 = vmatpush1.bf16.msra.mxu0 %v1485
        %2498 = vmatprep.subr.bf16.mxu0 %v1495
        %2499 = vmatpush1.bf16.msra.mxu0 %v1494
        %2500 = vmatprep.subr.bf16.mxu0 %v1504
        %2501 = vmatpush1.bf16.msra.mxu0 %v1503
        %2502 = vmatprep.subr.bf16.mxu0 %v1513
        %2503 = vmatpush1.bf16.msra.mxu0 %v1512
        %2504 = vmatprep.subr.bf16.mxu0 %v1522
        %2505 = vmatpush1.bf16.msra.mxu0 %v1521
        %2506 = vmatprep.subr.bf16.mxu0 %v1531
        %2507 = vmatpush1.bf16.msra.mxu0 %v1530
        %2508 = vmatprep.subr.bf16.mxu0 %v1540
        %2509 = vmatpush1.bf16.msra.mxu0 %v1539
        %2510 = vmatprep.subr.bf16.mxu0 %v1549
        %2511 = vmatpush1.bf16.msra.mxu0 %v1548
        %2512 = vmatprep.subr.bf16.mxu0 %v1558
        %2513 = vmatpush1.bf16.msra.mxu0 %v1557
        %2514 = vmatprep.subr.bf16.mxu0 %v1567
        %2515 = vmatpush1.bf16.msra.mxu0 %v1566
        %2516 = vmatprep.subr.bf16.mxu0 %v1576
        %2517 = vmatpush1.bf16.msra.mxu0 %v1575
        %2518 = vmatprep.subr.bf16.mxu0 %v1585
        %2519 = vmatpush1.bf16.msra.mxu0 %v1584
        %2520 = vmatprep.subr.bf16.mxu0 %v1594
        %2521 = vmatpush1.bf16.msra.mxu0 %v1593
        %2522 = vmatprep.mubr.bf16.mxu0 %v687
        %2523 = vmatmul.mubr.bf16.gmra.mrb[0].mxu0 %v686
        %v2524 = vpop.f32.mrb[0].mxu0
        %v2525 = vadd.f32 0.0, %v2524
        %v2526 = vpop.f32.mrb[0].mxu0
        %v2527 = vadd.f32 0.0, %v2526
        %v2528 = vpop.f32.mrb[0].mxu0
        %v2529 = vadd.f32 0.0, %v2528
        %v2530 = vpop.f32.mrb[0].mxu0
        %v2531 = vadd.f32 0.0, %v2530
        %2532 = vmatprep.mubr.bf16.mxu0 %v690
        %2533 = vmatmul.mubr.bf16.gmra.mrb[0].mxu0 %v689
        %v2534 = vpop.f32.mrb[0].mxu0
        %v2535 = vadd.f32 0.0, %v2534
        %v2536 = vpop.f32.mrb[0].mxu0
        %v2537 = vadd.f32 0.0, %v2536
        %v2538 = vpop.f32.mrb[0].mxu0
        %v2539 = vadd.f32 0.0, %v2538
        %v2540 = vpop.f32.mrb[0].mxu0
        %v2541 = vadd.f32 0.0, %v2540
        %2542 = vmatprep.mubr.bf16.mxu0 %v693
        %2543 = vmatmul.mubr.bf16.gmra.mrb[0].mxu0 %v692
        %v2544 = vpop.f32.mrb[0].mxu0
        %v2545 = vadd.f32 0.0, %v2544
        %v2546 = vpop.f32.mrb[0].mxu0
        %v2547 = vadd.f32 0.0, %v2546
        %v2548 = vpop.f32.mrb[0].mxu0
        %v2549 = vadd.f32 0.0, %v2548
        %v2550 = vpop.f32.mrb[0].mxu0
        %v2551 = vadd.f32 0.0, %v2550
        %2552 = vmatprep.mubr.bf16.mxu0 %v696
        %2553 = vmatmul.mubr.bf16.gmra.mrb[0].mxu0 %v695
        %v2554 = vpop.f32.mrb[0].mxu0
        %v2555 = vadd.f32 0.0, %v2554
        %v2556 = vpop.f32.mrb[0].mxu0
        %v2557 = vadd.f32 0.0, %v2556
        %v2558 = vpop.f32.mrb[0].mxu0
        %v2559 = vadd.f32 0.0, %v2558
        %v2560 = vpop.f32.mrb[0].mxu0
        %v2561 = vadd.f32 0.0, %v2560
        %2562 = vmatprep.mubr.bf16.mxu0 %v699
        %2563 = vmatmul.mubr.bf16.gmra.mrb[0].mxu0 %v698
        %v2564 = vpop.f32.mrb[0].mxu0
        %v2565 = vadd.f32 0.0, %v2564
        %v2566 = vpop.f32.mrb[0].mxu0
        %v2567 = vadd.f32 0.0, %v2566
        %v2568 = vpop.f32.mrb[0].mxu0
        %v2569 = vadd.f32 0.0, %v2568
        %v2570 = vpop.f32.mrb[0].mxu0
        %v2571 = vadd.f32 0.0, %v2570
        %2572 = vmatprep.mubr.bf16.mxu0 %v702
        %2573 = vmatmul.mubr.bf16.gmra.mrb[0].mxu0 %v701
        %v2574 = vpop.f32.mrb[0].mxu0
        %v2575 = vadd.f32 0.0, %v2574
        %v2576 = vpop.f32.mrb[0].mxu0
        %v2577 = vadd.f32 0.0, %v2576
        %v2578 = vpop.f32.mrb[0].mxu0
        %v2579 = vadd.f32 0.0, %v2578
        %v2580 = vpop.f32.mrb[0].mxu0
        %v2581 = vadd.f32 0.0, %v2580
        %2582 = vmatprep.mubr.bf16.mxu0 %v705
        %2583 = vmatmul.mubr.bf16.gmra.mrb[0].mxu0 %v704
        %v2584 = vpop.f32.mrb[0].mxu0
        %v2585 = vadd.f32 0.0, %v2584
        %v2586 = vpop.f32.mrb[0].mxu0
        %v2587 = vadd.f32 0.0, %v2586
        %v2588 = vpop.f32.mrb[0].mxu0
        %v2589 = vadd.f32 0.0, %v2588
        %v2590 = vpop.f32.mrb[0].mxu0
        %v2591 = vadd.f32 0.0, %v2590
        %2592 = vmatprep.mubr.bf16.mxu0 %v708
        %2593 = vmatmul.mubr.bf16.gmra.mrb[0].mxu0 %v707
        %v2594 = vpop.f32.mrb[0].mxu0
        %v2595 = vadd.f32 0.0, %v2594
        %v2596 = vpop.f32.mrb[0].mxu0
        %v2597 = vadd.f32 0.0, %v2596
        %v2598 = vpop.f32.mrb[0].mxu0
        %v2599 = vadd.f32 0.0, %v2598
        %v2600 = vpop.f32.mrb[0].mxu0
        %v2601 = vadd.f32 0.0, %v2600
        %2602 = vmatprep.mubr.bf16.mxu0 %v711
        %2603 = vmatmul.mubr.bf16.gmra.mrb[0].mxu0 %v710
        %v2604 = vpop.f32.mrb[0].mxu0
        %v2605 = vadd.f32 0.0, %v2604
        %v2606 = vpop.f32.mrb[0].mxu0
        %v2607 = vadd.f32 0.0, %v2606
        %v2608 = vpop.f32.mrb[0].mxu0
        %v2609 = vadd.f32 0.0, %v2608
        %v2610 = vpop.f32.mrb[0].mxu0
        %v2611 = vadd.f32 0.0, %v2610
        %2612 = vmatprep.mubr.bf16.mxu0 %v714
        %2613 = vmatmul.mubr.bf16.gmra.mrb[0].mxu0 %v713
        %v2614 = vpop.f32.mrb[0].mxu0
        %v2615 = vadd.f32 0.0, %v2614
        %v2616 = vpop.f32.mrb[0].mxu0
        %v2617 = vadd.f32 0.0, %v2616
        %v2618 = vpop.f32.mrb[0].mxu0
        %v2619 = vadd.f32 0.0, %v2618
        %v2620 = vpop.f32.mrb[0].mxu0
        %v2621 = vadd.f32 0.0, %v2620
        %2622 = vmatprep.mubr.bf16.mxu0 %v717
        %2623 = vmatmul.mubr.bf16.gmra.mrb[0].mxu0 %v716
        %v2624 = vpop.f32.mrb[0].mxu0
        %v2625 = vadd.f32 0.0, %v2624
        %v2626 = vpop.f32.mrb[0].mxu0
        %v2627 = vadd.f32 0.0, %v2626
        %v2628 = vpop.f32.mrb[0].mxu0
        %v2629 = vadd.f32 0.0, %v2628
        %v2630 = vpop.f32.mrb[0].mxu0
        %v2631 = vadd.f32 0.0, %v2630
        %2632 = vmatprep.mubr.bf16.mxu0 %v720
        %2633 = vmatmul.mubr.bf16.gmra.mrb[0].mxu0 %v719
        %v2634 = vpop.f32.mrb[0].mxu0
        %v2635 = vadd.f32 0.0, %v2634
        %v2636 = vpop.f32.mrb[0].mxu0
        %v2637 = vadd.f32 0.0, %v2636
        %v2638 = vpop.f32.mrb[0].mxu0
        %v2639 = vadd.f32 0.0, %v2638
        %v2640 = vpop.f32.mrb[0].mxu0
        %v2641 = vadd.f32 0.0, %v2640
        %2642 = vmatprep.mubr.bf16.mxu0 %v723
        %2643 = vmatmul.mubr.bf16.gmra.mrb[0].mxu0 %v722
        %v2644 = vpop.f32.mrb[0].mxu0
        %v2645 = vadd.f32 0.0, %v2644
        %v2646 = vpop.f32.mrb[0].mxu0
        %v2647 = vadd.f32 0.0, %v2646
        %v2648 = vpop.f32.mrb[0].mxu0
        %v2649 = vadd.f32 0.0, %v2648
        %v2650 = vpop.f32.mrb[0].mxu0
        %v2651 = vadd.f32 0.0, %v2650
        %2652 = vmatprep.mubr.bf16.mxu0 %v726
        %2653 = vmatmul.mubr.bf16.gmra.mrb[0].mxu0 %v725
        %v2654 = vpop.f32.mrb[0].mxu0
        %v2655 = vadd.f32 0.0, %v2654
        %v2656 = vpop.f32.mrb[0].mxu0
        %v2657 = vadd.f32 0.0, %v2656
        %v2658 = vpop.f32.mrb[0].mxu0
        %v2659 = vadd.f32 0.0, %v2658
        %v2660 = vpop.f32.mrb[0].mxu0
        %v2661 = vadd.f32 0.0, %v2660
        %2662 = vmatprep.mubr.bf16.mxu0 %v729
        %2663 = vmatmul.mubr.bf16.gmra.mrb[0].mxu0 %v728
        %v2664 = vpop.f32.mrb[0].mxu0
        %v2665 = vadd.f32 0.0, %v2664
        %v2666 = vpop.f32.mrb[0].mxu0
        %v2667 = vadd.f32 0.0, %v2666
        %v2668 = vpop.f32.mrb[0].mxu0
        %v2669 = vadd.f32 0.0, %v2668
        %v2670 = vpop.f32.mrb[0].mxu0
        %v2671 = vadd.f32 0.0, %v2670
        %2672 = vmatprep.mubr.bf16.mxu0 %v732
        %2673 = vmatmul.mubr.bf16.gmra.mrb[0].mxu0 %v731
        %v2674 = vpop.f32.mrb[0].mxu0
        %v2675 = vadd.f32 0.0, %v2674
        %v2676 = vpop.f32.mrb[0].mxu0
        %v2677 = vadd.f32 0.0, %v2676
        %v2678 = vpop.f32.mrb[0].mxu0
        %v2679 = vadd.f32 0.0, %v2678
        %v2680 = vpop.f32.mrb[0].mxu0
        %v2681 = vadd.f32 0.0, %v2680
        %2682 = vdwg.mxu0
        %2683 = vmatprep.subr.bf16.mxu0 %v1603
        %2684 = vmatpush1.bf16.msra.mxu0 %v1602
        %2685 = vmatprep.subr.bf16.mxu0 %v1612
        %2686 = vmatpush1.bf16.msra.mxu0 %v1611
        %2687 = vmatprep.subr.bf16.mxu0 %v1621
        %2688 = vmatpush1.bf16.msra.mxu0 %v1620
        %2689 = vmatprep.subr.bf16.mxu0 %v1630
        %2690 = vmatpush1.bf16.msra.mxu0 %v1629
        %2691 = vmatprep.subr.bf16.mxu0 %v1639
        %2692 = vmatpush1.bf16.msra.mxu0 %v1638
        %2693 = vmatprep.subr.bf16.mxu0 %v1648
        %2694 = vmatpush1.bf16.msra.mxu0 %v1647
        %2695 = vmatprep.subr.bf16.mxu0 %v1657
        %2696 = vmatpush1.bf16.msra.mxu0 %v1656
        %2697 = vmatprep.subr.bf16.mxu0 %v1666
        %2698 = vmatpush1.bf16.msra.mxu0 %v1665
        %2699 = vmatprep.subr.bf16.mxu0 0
        %2700 = vmatpush1.bf16.msra.mxu0 0
        %2701 = vmatprep.subr.bf16.mxu0 0
        %2702 = vmatpush1.bf16.msra.mxu0 0
        %2703 = vmatprep.subr.bf16.mxu0 0
        %2704 = vmatpush1.bf16.msra.mxu0 0
        %2705 = vmatprep.subr.bf16.mxu0 0
        %2706 = vmatpush1.bf16.msra.mxu0 0
        %2707 = vmatprep.subr.bf16.mxu0 0
        %2708 = vmatpush1.bf16.msra.mxu0 0
        %2709 = vmatprep.subr.bf16.mxu0 0
        %2710 = vmatpush1.bf16.msra.mxu0 0
        %2711 = vmatprep.subr.bf16.mxu0 0
        %2712 = vmatpush1.bf16.msra.mxu0 0
        %2713 = vmatprep.subr.bf16.mxu0 0
        %2714 = vmatpush1.bf16.msra.mxu0 0
        %2715 = vmatprep.mubr.bf16.mxu0 0
        %2716 = vmatmul.mubr.bf16.gmra.mrb[0].mxu0 %v688
        %v2717 = vpop.f32.mrb[0].mxu0
        %v2718 = vadd.f32 %v2525, %v2717
        %v2719 = vpop.f32.mrb[0].mxu0
        %v2720 = vadd.f32 %v2527, %v2719
        %v2721 = vpop.f32.mrb[0].mxu0
        %v2722 = vadd.f32 %v2529, %v2721
        %v2723 = vpop.f32.mrb[0].mxu0
        %v2724 = vadd.f32 %v2531, %v2723
        %2725 = vmatprep.mubr.bf16.mxu0 0
        %2726 = vmatmul.mubr.bf16.gmra.mrb[0].mxu0 %v691
        %v2727 = vpop.f32.mrb[0].mxu0
        %v2728 = vadd.f32 %v2535, %v2727
        %v2729 = vpop.f32.mrb[0].mxu0
        %v2730 = vadd.f32 %v2537, %v2729
        %v2731 = vpop.f32.mrb[0].mxu0
        %v2732 = vadd.f32 %v2539, %v2731
        %v2733 = vpop.f32.mrb[0].mxu0
        %v2734 = vadd.f32 %v2541, %v2733
        %2735 = vmatprep.mubr.bf16.mxu0 0
        %2736 = vmatmul.mubr.bf16.gmra.mrb[0].mxu0 %v694
        %v2737 = vpop.f32.mrb[0].mxu0
        %v2738 = vadd.f32 %v2545, %v2737
        %v2739 = vpop.f32.mrb[0].mxu0
        %v2740 = vadd.f32 %v2547, %v2739
        %v2741 = vpop.f32.mrb[0].mxu0
        %v2742 = vadd.f32 %v2549, %v2741
        %v2743 = vpop.f32.mrb[0].mxu0
        %v2744 = vadd.f32 %v2551, %v2743
        %2745 = vmatprep.mubr.bf16.mxu0 0
        %2746 = vmatmul.mubr.bf16.gmra.mrb[0].mxu0 %v697
        %v2747 = vpop.f32.mrb[0].mxu0
        %v2748 = vadd.f32 %v2555, %v2747
        %v2749 = vpop.f32.mrb[0].mxu0
        %v2750 = vadd.f32 %v2557, %v2749
        %v2751 = vpop.f32.mrb[0].mxu0
        %v2752 = vadd.f32 %v2559, %v2751
        %v2753 = vpop.f32.mrb[0].mxu0
        %v2754 = vadd.f32 %v2561, %v2753
        %2755 = vmatprep.mubr.bf16.mxu0 0
        %2756 = vmatmul.mubr.bf16.gmra.mrb[0].mxu0 %v700
        %v2757 = vpop.f32.mrb[0].mxu0
        %v2758 = vadd.f32 %v2565, %v2757
        %v2759 = vpop.f32.mrb[0].mxu0
        %v2760 = vadd.f32 %v2567, %v2759
        %v2761 = vpop.f32.mrb[0].mxu0
        %v2762 = vadd.f32 %v2569, %v2761
        %v2763 = vpop.f32.mrb[0].mxu0
        %v2764 = vadd.f32 %v2571, %v2763
        %2765 = vmatprep.mubr.bf16.mxu0 0
        %2766 = vmatmul.mubr.bf16.gmra.mrb[0].mxu0 %v703
        %v2767 = vpop.f32.mrb[0].mxu0
        %v2768 = vadd.f32 %v2575, %v2767
        %v2769 = vpop.f32.mrb[0].mxu0
        %v2770 = vadd.f32 %v2577, %v2769
        %v2771 = vpop.f32.mrb[0].mxu0
        %v2772 = vadd.f32 %v2579, %v2771
        %v2773 = vpop.f32.mrb[0].mxu0
        %v2774 = vadd.f32 %v2581, %v2773
        %2775 = vmatprep.mubr.bf16.mxu0 0
        %2776 = vmatmul.mubr.bf16.gmra.mrb[0].mxu0 %v706
        %v2777 = vpop.f32.mrb[0].mxu0
        %v2778 = vadd.f32 %v2585, %v2777
        %v2779 = vpop.f32.mrb[0].mxu0
        %v2780 = vadd.f32 %v2587, %v2779
        %v2781 = vpop.f32.mrb[0].mxu0
        %v2782 = vadd.f32 %v2589, %v2781
        %v2783 = vpop.f32.mrb[0].mxu0
        %v2784 = vadd.f32 %v2591, %v2783
        %2785 = vmatprep.mubr.bf16.mxu0 0
        %2786 = vmatmul.mubr.bf16.gmra.mrb[0].mxu0 %v709
        %v2787 = vpop.f32.mrb[0].mxu0
        %v2788 = vadd.f32 %v2595, %v2787
        %v2789 = vpop.f32.mrb[0].mxu0
        %v2790 = vadd.f32 %v2597, %v2789
        %v2791 = vpop.f32.mrb[0].mxu0
        %v2792 = vadd.f32 %v2599, %v2791
        %v2793 = vpop.f32.mrb[0].mxu0
        %v2794 = vadd.f32 %v2601, %v2793
        %2795 = vmatprep.mubr.bf16.mxu0 0
        %2796 = vmatmul.mubr.bf16.gmra.mrb[0].mxu0 %v712
        %v2797 = vpop.f32.mrb[0].mxu0
        %v2798 = vadd.f32 %v2605, %v2797
        %v2799 = vpop.f32.mrb[0].mxu0
        %v2800 = vadd.f32 %v2607, %v2799
        %v2801 = vpop.f32.mrb[0].mxu0
        %v2802 = vadd.f32 %v2609, %v2801
        %v2803 = vpop.f32.mrb[0].mxu0
        %v2804 = vadd.f32 %v2611, %v2803
        %2805 = vmatprep.mubr.bf16.mxu0 0
        %2806 = vmatmul.mubr.bf16.gmra.mrb[0].mxu0 %v715
        %v2807 = vpop.f32.mrb[0].mxu0
        %v2808 = vadd.f32 %v2615, %v2807
        %v2809 = vpop.f32.mrb[0].mxu0
        %v2810 = vadd.f32 %v2617, %v2809
        %v2811 = vpop.f32.mrb[0].mxu0
        %v2812 = vadd.f32 %v2619, %v2811
        %v2813 = vpop.f32.mrb[0].mxu0
        %v2814 = vadd.f32 %v2621, %v2813
        %2815 = vmatprep.mubr.bf16.mxu0 0
        %2816 = vmatmul.mubr.bf16.gmra.mrb[0].mxu0 %v718
        %v2817 = vpop.f32.mrb[0].mxu0
        %v2818 = vadd.f32 %v2625, %v2817
        %v2819 = vpop.f32.mrb[0].mxu0
        %v2820 = vadd.f32 %v2627, %v2819
        %v2821 = vpop.f32.mrb[0].mxu0
        %v2822 = vadd.f32 %v2629, %v2821
        %v2823 = vpop.f32.mrb[0].mxu0
        %v2824 = vadd.f32 %v2631, %v2823
        %2825 = vmatprep.mubr.bf16.mxu0 0
        %2826 = vmatmul.mubr.bf16.gmra.mrb[0].mxu0 %v721
        %v2827 = vpop.f32.mrb[0].mxu0
        %v2828 = vadd.f32 %v2635, %v2827
        %v2829 = vpop.f32.mrb[0].mxu0
        %v2830 = vadd.f32 %v2637, %v2829
        %v2831 = vpop.f32.mrb[0].mxu0
        %v2832 = vadd.f32 %v2639, %v2831
        %v2833 = vpop.f32.mrb[0].mxu0
        %v2834 = vadd.f32 %v2641, %v2833
        %2835 = vmatprep.mubr.bf16.mxu0 0
        %2836 = vmatmul.mubr.bf16.gmra.mrb[0].mxu0 %v724
        %v2837 = vpop.f32.mrb[0].mxu0
        %v2838 = vadd.f32 %v2645, %v2837
        %v2839 = vpop.f32.mrb[0].mxu0
        %v2840 = vadd.f32 %v2647, %v2839
        %v2841 = vpop.f32.mrb[0].mxu0
        %v2842 = vadd.f32 %v2649, %v2841
        %v2843 = vpop.f32.mrb[0].mxu0
        %v2844 = vadd.f32 %v2651, %v2843
        %2845 = vmatprep.mubr.bf16.mxu0 0
        %2846 = vmatmul.mubr.bf16.gmra.mrb[0].mxu0 %v727
        %v2847 = vpop.f32.mrb[0].mxu0
        %v2848 = vadd.f32 %v2655, %v2847
        %v2849 = vpop.f32.mrb[0].mxu0
        %v2850 = vadd.f32 %v2657, %v2849
        %v2851 = vpop.f32.mrb[0].mxu0
        %v2852 = vadd.f32 %v2659, %v2851
        %v2853 = vpop.f32.mrb[0].mxu0
        %v2854 = vadd.f32 %v2661, %v2853
        %2855 = vmatprep.mubr.bf16.mxu0 0
        %2856 = vmatmul.mubr.bf16.gmra.mrb[0].mxu0 %v730
        %v2857 = vpop.f32.mrb[0].mxu0
        %v2858 = vadd.f32 %v2665, %v2857
        %v2859 = vpop.f32.mrb[0].mxu0
        %v2860 = vadd.f32 %v2667, %v2859
        %v2861 = vpop.f32.mrb[0].mxu0
        %v2862 = vadd.f32 %v2669, %v2861
        %v2863 = vpop.f32.mrb[0].mxu0
        %v2864 = vadd.f32 %v2671, %v2863
        %2865 = vmatprep.mubr.bf16.mxu0 0
        %2866 = vmatmul.mubr.bf16.gmra.mrb[0].mxu0 %v733
        %v2867 = vpop.f32.mrb[0].mxu0
        %v2868 = vadd.f32 %v2675, %v2867
        %v2869 = vpop.f32.mrb[0].mxu0
        %v2870 = vadd.f32 %v2677, %v2869
        %v2871 = vpop.f32.mrb[0].mxu0
        %v2872 = vadd.f32 %v2679, %v2871
        %v2873 = vpop.f32.mrb[0].mxu0
        %v2874 = vadd.f32 %v2681, %v2873
        %2875 = vdwg.mxu0
        %2876 = vmatprep.subr.bf16.mxu0 %v1461
        %2877 = vmatpush1.bf16.msra.mxu0 %v1460
        %2878 = vmatprep.subr.bf16.mxu0 %v1470
        %2879 = vmatpush1.bf16.msra.mxu0 %v1469
        %2880 = vmatprep.subr.bf16.mxu0 %v1479
        %2881 = vmatpush1.bf16.msra.mxu0 %v1478
        %2882 = vmatprep.subr.bf16.mxu0 %v1488
        %2883 = vmatpush1.bf16.msra.mxu0 %v1487
        %2884 = vmatprep.subr.bf16.mxu0 %v1497
        %2885 = vmatpush1.bf16.msra.mxu0 %v1496
        %2886 = vmatprep.subr.bf16.mxu0 %v1506
        %2887 = vmatpush1.bf16.msra.mxu0 %v1505
        %2888 = vmatprep.subr.bf16.mxu0 %v1515
        %2889 = vmatpush1.bf16.msra.mxu0 %v1514
        %2890 = vmatprep.subr.bf16.mxu0 %v1524
        %2891 = vmatpush1.bf16.msra.mxu0 %v1523
        %2892 = vmatprep.subr.bf16.mxu0 %v1533
        %2893 = vmatpush1.bf16.msra.mxu0 %v1532
        %2894 = vmatprep.subr.bf16.mxu0 %v1542
        %2895 = vmatpush1.bf16.msra.mxu0 %v1541
        %2896 = vmatprep.subr.bf16.mxu0 %v1551
        %2897 = vmatpush1.bf16.msra.mxu0 %v1550
        %2898 = vmatprep.subr.bf16.mxu0 %v1560
        %2899 = vmatpush1.bf16.msra.mxu0 %v1559
        %2900 = vmatprep.subr.bf16.mxu0 %v1569
        %2901 = vmatpush1.bf16.msra.mxu0 %v1568
        %2902 = vmatprep.subr.bf16.mxu0 %v1578
        %2903 = vmatpush1.bf16.msra.mxu0 %v1577
        %2904 = vmatprep.subr.bf16.mxu0 %v1587
        %2905 = vmatpush1.bf16.msra.mxu0 %v1586
        %2906 = vmatprep.subr.bf16.mxu0 %v1596
        %2907 = vmatpush1.bf16.msra.mxu0 %v1595
        %2908 = vmatprep.mubr.bf16.mxu0 %v687
        %2909 = vmatmul.mubr.bf16.gmra.mrb[0].mxu0 %v686
        %v2910 = vpop.f32.mrb[0].mxu0
        %v2911 = vadd.f32 0.0, %v2910
        %v2912 = vpop.f32.mrb[0].mxu0
        %v2913 = vadd.f32 0.0, %v2912
        %v2914 = vpop.f32.mrb[0].mxu0
        %v2915 = vadd.f32 0.0, %v2914
        %v2916 = vpop.f32.mrb[0].mxu0
        %v2917 = vadd.f32 0.0, %v2916
        %2918 = vmatprep.mubr.bf16.mxu0 %v690
        %2919 = vmatmul.mubr.bf16.gmra.mrb[0].mxu0 %v689
        %v2920 = vpop.f32.mrb[0].mxu0
        %v2921 = vadd.f32 0.0, %v2920
        %v2922 = vpop.f32.mrb[0].mxu0
        %v2923 = vadd.f32 0.0, %v2922
        %v2924 = vpop.f32.mrb[0].mxu0
        %v2925 = vadd.f32 0.0, %v2924
        %v2926 = vpop.f32.mrb[0].mxu0
        %v2927 = vadd.f32 0.0, %v2926
        %2928 = vmatprep.mubr.bf16.mxu0 %v693
        %2929 = vmatmul.mubr.bf16.gmra.mrb[0].mxu0 %v692
        %v2930 = vpop.f32.mrb[0].mxu0
        %v2931 = vadd.f32 0.0, %v2930
        %v2932 = vpop.f32.mrb[0].mxu0
        %v2933 = vadd.f32 0.0, %v2932
        %v2934 = vpop.f32.mrb[0].mxu0
        %v2935 = vadd.f32 0.0, %v2934
        %v2936 = vpop.f32.mrb[0].mxu0
        %v2937 = vadd.f32 0.0, %v2936
        %2938 = vmatprep.mubr.bf16.mxu0 %v696
        %2939 = vmatmul.mubr.bf16.gmra.mrb[0].mxu0 %v695
        %v2940 = vpop.f32.mrb[0].mxu0
        %v2941 = vadd.f32 0.0, %v2940
        %v2942 = vpop.f32.mrb[0].mxu0
        %v2943 = vadd.f32 0.0, %v2942
        %v2944 = vpop.f32.mrb[0].mxu0
        %v2945 = vadd.f32 0.0, %v2944
        %v2946 = vpop.f32.mrb[0].mxu0
        %v2947 = vadd.f32 0.0, %v2946
        %2948 = vmatprep.mubr.bf16.mxu0 %v699
        %2949 = vmatmul.mubr.bf16.gmra.mrb[0].mxu0 %v698
        %v2950 = vpop.f32.mrb[0].mxu0
        %v2951 = vadd.f32 0.0, %v2950
        %v2952 = vpop.f32.mrb[0].mxu0
        %v2953 = vadd.f32 0.0, %v2952
        %v2954 = vpop.f32.mrb[0].mxu0
        %v2955 = vadd.f32 0.0, %v2954
        %v2956 = vpop.f32.mrb[0].mxu0
        %v2957 = vadd.f32 0.0, %v2956
        %2958 = vmatprep.mubr.bf16.mxu0 %v702
        %2959 = vmatmul.mubr.bf16.gmra.mrb[0].mxu0 %v701
        %v2960 = vpop.f32.mrb[0].mxu0
        %v2961 = vadd.f32 0.0, %v2960
        %v2962 = vpop.f32.mrb[0].mxu0
        %v2963 = vadd.f32 0.0, %v2962
        %v2964 = vpop.f32.mrb[0].mxu0
        %v2965 = vadd.f32 0.0, %v2964
        %v2966 = vpop.f32.mrb[0].mxu0
        %v2967 = vadd.f32 0.0, %v2966
        %2968 = vmatprep.mubr.bf16.mxu0 %v705
        %2969 = vmatmul.mubr.bf16.gmra.mrb[0].mxu0 %v704
        %v2970 = vpop.f32.mrb[0].mxu0
        %v2971 = vadd.f32 0.0, %v2970
        %v2972 = vpop.f32.mrb[0].mxu0
        %v2973 = vadd.f32 0.0, %v2972
        %v2974 = vpop.f32.mrb[0].mxu0
        %v2975 = vadd.f32 0.0, %v2974
        %v2976 = vpop.f32.mrb[0].mxu0
        %v2977 = vadd.f32 0.0, %v2976
        %2978 = vmatprep.mubr.bf16.mxu0 %v708
        %2979 = vmatmul.mubr.bf16.gmra.mrb[0].mxu0 %v707
        %v2980 = vpop.f32.mrb[0].mxu0
        %v2981 = vadd.f32 0.0, %v2980
        %v2982 = vpop.f32.mrb[0].mxu0
        %v2983 = vadd.f32 0.0, %v2982
        %v2984 = vpop.f32.mrb[0].mxu0
        %v2985 = vadd.f32 0.0, %v2984
        %v2986 = vpop.f32.mrb[0].mxu0
        %v2987 = vadd.f32 0.0, %v2986
        %2988 = vmatprep.mubr.bf16.mxu0 %v711
        %2989 = vmatmul.mubr.bf16.gmra.mrb[0].mxu0 %v710
        %v2990 = vpop.f32.mrb[0].mxu0
        %v2991 = vadd.f32 0.0, %v2990
        %v2992 = vpop.f32.mrb[0].mxu0
        %v2993 = vadd.f32 0.0, %v2992
        %v2994 = vpop.f32.mrb[0].mxu0
        %v2995 = vadd.f32 0.0, %v2994
        %v2996 = vpop.f32.mrb[0].mxu0
        %v2997 = vadd.f32 0.0, %v2996
        %2998 = vmatprep.mubr.bf16.mxu0 %v714
        %2999 = vmatmul.mubr.bf16.gmra.mrb[0].mxu0 %v713
        %v3000 = vpop.f32.mrb[0].mxu0
        %v3001 = vadd.f32 0.0, %v3000
        %v3002 = vpop.f32.mrb[0].mxu0
        %v3003 = vadd.f32 0.0, %v3002
        %v3004 = vpop.f32.mrb[0].mxu0
        %v3005 = vadd.f32 0.0, %v3004
        %v3006 = vpop.f32.mrb[0].mxu0
        %v3007 = vadd.f32 0.0, %v3006
        %3008 = vmatprep.mubr.bf16.mxu0 %v717
        %3009 = vmatmul.mubr.bf16.gmra.mrb[0].mxu0 %v716
        %v3010 = vpop.f32.mrb[0].mxu0
        %v3011 = vadd.f32 0.0, %v3010
        %v3012 = vpop.f32.mrb[0].mxu0
        %v3013 = vadd.f32 0.0, %v3012
        %v3014 = vpop.f32.mrb[0].mxu0
        %v3015 = vadd.f32 0.0, %v3014
        %v3016 = vpop.f32.mrb[0].mxu0
        %v3017 = vadd.f32 0.0, %v3016
        %3018 = vmatprep.mubr.bf16.mxu0 %v720
        %3019 = vmatmul.mubr.bf16.gmra.mrb[0].mxu0 %v719
        %v3020 = vpop.f32.mrb[0].mxu0
        %v3021 = vadd.f32 0.0, %v3020
        %v3022 = vpop.f32.mrb[0].mxu0
        %v3023 = vadd.f32 0.0, %v3022
        %v3024 = vpop.f32.mrb[0].mxu0
        %v3025 = vadd.f32 0.0, %v3024
        %v3026 = vpop.f32.mrb[0].mxu0
        %v3027 = vadd.f32 0.0, %v3026
        %3028 = vmatprep.mubr.bf16.mxu0 %v723
        %3029 = vmatmul.mubr.bf16.gmra.mrb[0].mxu0 %v722
        %v3030 = vpop.f32.mrb[0].mxu0
        %v3031 = vadd.f32 0.0, %v3030
        %v3032 = vpop.f32.mrb[0].mxu0
        %v3033 = vadd.f32 0.0, %v3032
        %v3034 = vpop.f32.mrb[0].mxu0
        %v3035 = vadd.f32 0.0, %v3034
        %v3036 = vpop.f32.mrb[0].mxu0
        %v3037 = vadd.f32 0.0, %v3036
        %3038 = vmatprep.mubr.bf16.mxu0 %v726
        %3039 = vmatmul.mubr.bf16.gmra.mrb[0].mxu0 %v725
        %v3040 = vpop.f32.mrb[0].mxu0
        %v3041 = vadd.f32 0.0, %v3040
        %v3042 = vpop.f32.mrb[0].mxu0
        %v3043 = vadd.f32 0.0, %v3042
        %v3044 = vpop.f32.mrb[0].mxu0
        %v3045 = vadd.f32 0.0, %v3044
        %v3046 = vpop.f32.mrb[0].mxu0
        %v3047 = vadd.f32 0.0, %v3046
        %3048 = vmatprep.mubr.bf16.mxu0 %v729
        %3049 = vmatmul.mubr.bf16.gmra.mrb[0].mxu0 %v728
        %v3050 = vpop.f32.mrb[0].mxu0
        %v3051 = vadd.f32 0.0, %v3050
        %v3052 = vpop.f32.mrb[0].mxu0
        %v3053 = vadd.f32 0.0, %v3052
        %v3054 = vpop.f32.mrb[0].mxu0
        %v3055 = vadd.f32 0.0, %v3054
        %v3056 = vpop.f32.mrb[0].mxu0
        %v3057 = vadd.f32 0.0, %v3056
        %3058 = vmatprep.mubr.bf16.mxu0 %v732
        %3059 = vmatmul.mubr.bf16.gmra.mrb[0].mxu0 %v731
        %v3060 = vpop.f32.mrb[0].mxu0
        %v3061 = vadd.f32 0.0, %v3060
        %v3062 = vpop.f32.mrb[0].mxu0
        %v3063 = vadd.f32 0.0, %v3062
        %v3064 = vpop.f32.mrb[0].mxu0
        %v3065 = vadd.f32 0.0, %v3064
        %v3066 = vpop.f32.mrb[0].mxu0
        %v3067 = vadd.f32 0.0, %v3066
        %3068 = vdwg.mxu0
        %3069 = vmatprep.subr.bf16.mxu0 %v1605
        %3070 = vmatpush1.bf16.msra.mxu0 %v1604
        %3071 = vmatprep.subr.bf16.mxu0 %v1614
        %3072 = vmatpush1.bf16.msra.mxu0 %v1613
        %3073 = vmatprep.subr.bf16.mxu0 %v1623
        %3074 = vmatpush1.bf16.msra.mxu0 %v1622
        %3075 = vmatprep.subr.bf16.mxu0 %v1632
        %3076 = vmatpush1.bf16.msra.mxu0 %v1631
        %3077 = vmatprep.subr.bf16.mxu0 %v1641
        %3078 = vmatpush1.bf16.msra.mxu0 %v1640
        %3079 = vmatprep.subr.bf16.mxu0 %v1650
        %3080 = vmatpush1.bf16.msra.mxu0 %v1649
        %3081 = vmatprep.subr.bf16.mxu0 %v1659
        %3082 = vmatpush1.bf16.msra.mxu0 %v1658
        %3083 = vmatprep.subr.bf16.mxu0 %v1668
        %3084 = vmatpush1.bf16.msra.mxu0 %v1667
        %3085 = vmatprep.subr.bf16.mxu0 0
        %3086 = vmatpush1.bf16.msra.mxu0 0
        %3087 = vmatprep.subr.bf16.mxu0 0
        %3088 = vmatpush1.bf16.msra.mxu0 0
        %3089 = vmatprep.subr.bf16.mxu0 0
        %3090 = vmatpush1.bf16.msra.mxu0 0
        %3091 = vmatprep.subr.bf16.mxu0 0
        %3092 = vmatpush1.bf16.msra.mxu0 0
        %3093 = vmatprep.subr.bf16.mxu0 0
        %3094 = vmatpush1.bf16.msra.mxu0 0
        %3095 = vmatprep.subr.bf16.mxu0 0
        %3096 = vmatpush1.bf16.msra.mxu0 0
        %3097 = vmatprep.subr.bf16.mxu0 0
        %3098 = vmatpush1.bf16.msra.mxu0 0
        %3099 = vmatprep.subr.bf16.mxu0 0
        %3100 = vmatpush1.bf16.msra.mxu0 0
        %3101 = vmatprep.mubr.bf16.mxu0 0
        %3102 = vmatmul.mubr.bf16.gmra.mrb[0].mxu0 %v688
        %v3103 = vpop.f32.mrb[0].mxu0
        %v3104 = vadd.f32 %v2911, %v3103
        %v3105 = vpop.f32.mrb[0].mxu0
        %v3106 = vadd.f32 %v2913, %v3105
        %v3107 = vpop.f32.mrb[0].mxu0
        %v3108 = vadd.f32 %v2915, %v3107
        %v3109 = vpop.f32.mrb[0].mxu0
        %v3110 = vadd.f32 %v2917, %v3109
        %3111 = vmatprep.mubr.bf16.mxu0 0
        %3112 = vmatmul.mubr.bf16.gmra.mrb[0].mxu0 %v691
        %v3113 = vpop.f32.mrb[0].mxu0
        %v3114 = vadd.f32 %v2921, %v3113
        %v3115 = vpop.f32.mrb[0].mxu0
        %v3116 = vadd.f32 %v2923, %v3115
        %v3117 = vpop.f32.mrb[0].mxu0
        %v3118 = vadd.f32 %v2925, %v3117
        %v3119 = vpop.f32.mrb[0].mxu0
        %v3120 = vadd.f32 %v2927, %v3119
        %3121 = vmatprep.mubr.bf16.mxu0 0
        %3122 = vmatmul.mubr.bf16.gmra.mrb[0].mxu0 %v694
        %v3123 = vpop.f32.mrb[0].mxu0
        %v3124 = vadd.f32 %v2931, %v3123
        %v3125 = vpop.f32.mrb[0].mxu0
        %v3126 = vadd.f32 %v2933, %v3125
        %v3127 = vpop.f32.mrb[0].mxu0
        %v3128 = vadd.f32 %v2935, %v3127
        %v3129 = vpop.f32.mrb[0].mxu0
        %v3130 = vadd.f32 %v2937, %v3129
        %3131 = vmatprep.mubr.bf16.mxu0 0
        %3132 = vmatmul.mubr.bf16.gmra.mrb[0].mxu0 %v697
        %v3133 = vpop.f32.mrb[0].mxu0
        %v3134 = vadd.f32 %v2941, %v3133
        %v3135 = vpop.f32.mrb[0].mxu0
        %v3136 = vadd.f32 %v2943, %v3135
        %v3137 = vpop.f32.mrb[0].mxu0
        %v3138 = vadd.f32 %v2945, %v3137
        %v3139 = vpop.f32.mrb[0].mxu0
        %v3140 = vadd.f32 %v2947, %v3139
        %3141 = vmatprep.mubr.bf16.mxu0 0
        %3142 = vmatmul.mubr.bf16.gmra.mrb[0].mxu0 %v700
        %v3143 = vpop.f32.mrb[0].mxu0
        %v3144 = vadd.f32 %v2951, %v3143
        %v3145 = vpop.f32.mrb[0].mxu0
        %v3146 = vadd.f32 %v2953, %v3145
        %v3147 = vpop.f32.mrb[0].mxu0
        %v3148 = vadd.f32 %v2955, %v3147
        %v3149 = vpop.f32.mrb[0].mxu0
        %v3150 = vadd.f32 %v2957, %v3149
        %3151 = vmatprep.mubr.bf16.mxu0 0
        %3152 = vmatmul.mubr.bf16.gmra.mrb[0].mxu0 %v703
        %v3153 = vpop.f32.mrb[0].mxu0
        %v3154 = vadd.f32 %v2961, %v3153
        %v3155 = vpop.f32.mrb[0].mxu0
        %v3156 = vadd.f32 %v2963, %v3155
        %v3157 = vpop.f32.mrb[0].mxu0
        %v3158 = vadd.f32 %v2965, %v3157
        %v3159 = vpop.f32.mrb[0].mxu0
        %v3160 = vadd.f32 %v2967, %v3159
        %3161 = vmatprep.mubr.bf16.mxu0 0
        %3162 = vmatmul.mubr.bf16.gmra.mrb[0].mxu0 %v706
        %v3163 = vpop.f32.mrb[0].mxu0
        %v3164 = vadd.f32 %v2971, %v3163
        %v3165 = vpop.f32.mrb[0].mxu0
        %v3166 = vadd.f32 %v2973, %v3165
        %v3167 = vpop.f32.mrb[0].mxu0
        %v3168 = vadd.f32 %v2975, %v3167
        %v3169 = vpop.f32.mrb[0].mxu0
        %v3170 = vadd.f32 %v2977, %v3169
        %3171 = vmatprep.mubr.bf16.mxu0 0
        %3172 = vmatmul.mubr.bf16.gmra.mrb[0].mxu0 %v709
        %v3173 = vpop.f32.mrb[0].mxu0
        %v3174 = vadd.f32 %v2981, %v3173
        %v3175 = vpop.f32.mrb[0].mxu0
        %v3176 = vadd.f32 %v2983, %v3175
        %v3177 = vpop.f32.mrb[0].mxu0
        %v3178 = vadd.f32 %v2985, %v3177
        %v3179 = vpop.f32.mrb[0].mxu0
        %v3180 = vadd.f32 %v2987, %v3179
        %3181 = vmatprep.mubr.bf16.mxu0 0
        %3182 = vmatmul.mubr.bf16.gmra.mrb[0].mxu0 %v712
        %v3183 = vpop.f32.mrb[0].mxu0
        %v3184 = vadd.f32 %v2991, %v3183
        %v3185 = vpop.f32.mrb[0].mxu0
        %v3186 = vadd.f32 %v2993, %v3185
        %v3187 = vpop.f32.mrb[0].mxu0
        %v3188 = vadd.f32 %v2995, %v3187
        %v3189 = vpop.f32.mrb[0].mxu0
        %v3190 = vadd.f32 %v2997, %v3189
        %3191 = vmatprep.mubr.bf16.mxu0 0
        %3192 = vmatmul.mubr.bf16.gmra.mrb[0].mxu0 %v715
        %v3193 = vpop.f32.mrb[0].mxu0
        %v3194 = vadd.f32 %v3001, %v3193
        %v3195 = vpop.f32.mrb[0].mxu0
        %v3196 = vadd.f32 %v3003, %v3195
        %v3197 = vpop.f32.mrb[0].mxu0
        %v3198 = vadd.f32 %v3005, %v3197
        %v3199 = vpop.f32.mrb[0].mxu0
        %v3200 = vadd.f32 %v3007, %v3199
        %3201 = vmatprep.mubr.bf16.mxu0 0
        %3202 = vmatmul.mubr.bf16.gmra.mrb[0].mxu0 %v718
        %v3203 = vpop.f32.mrb[0].mxu0
        %v3204 = vadd.f32 %v3011, %v3203
        %v3205 = vpop.f32.mrb[0].mxu0
        %v3206 = vadd.f32 %v3013, %v3205
        %v3207 = vpop.f32.mrb[0].mxu0
        %v3208 = vadd.f32 %v3015, %v3207
        %v3209 = vpop.f32.mrb[0].mxu0
        %v3210 = vadd.f32 %v3017, %v3209
        %3211 = vmatprep.mubr.bf16.mxu0 0
        %3212 = vmatmul.mubr.bf16.gmra.mrb[0].mxu0 %v721
        %v3213 = vpop.f32.mrb[0].mxu0
        %v3214 = vadd.f32 %v3021, %v3213
        %v3215 = vpop.f32.mrb[0].mxu0
        %v3216 = vadd.f32 %v3023, %v3215
        %v3217 = vpop.f32.mrb[0].mxu0
        %v3218 = vadd.f32 %v3025, %v3217
        %v3219 = vpop.f32.mrb[0].mxu0
        %v3220 = vadd.f32 %v3027, %v3219
        %3221 = vmatprep.mubr.bf16.mxu0 0
        %3222 = vmatmul.mubr.bf16.gmra.mrb[0].mxu0 %v724
        %v3223 = vpop.f32.mrb[0].mxu0
        %v3224 = vadd.f32 %v3031, %v3223
        %v3225 = vpop.f32.mrb[0].mxu0
        %v3226 = vadd.f32 %v3033, %v3225
        %v3227 = vpop.f32.mrb[0].mxu0
        %v3228 = vadd.f32 %v3035, %v3227
        %v3229 = vpop.f32.mrb[0].mxu0
        %v3230 = vadd.f32 %v3037, %v3229
        %3231 = vmatprep.mubr.bf16.mxu0 0
        %3232 = vmatmul.mubr.bf16.gmra.mrb[0].mxu0 %v727
        %v3233 = vpop.f32.mrb[0].mxu0
        %v3234 = vadd.f32 %v3041, %v3233
        %v3235 = vpop.f32.mrb[0].mxu0
        %v3236 = vadd.f32 %v3043, %v3235
        %v3237 = vpop.f32.mrb[0].mxu0
        %v3238 = vadd.f32 %v3045, %v3237
        %v3239 = vpop.f32.mrb[0].mxu0
        %v3240 = vadd.f32 %v3047, %v3239
        %3241 = vmatprep.mubr.bf16.mxu0 0
        %3242 = vmatmul.mubr.bf16.gmra.mrb[0].mxu0 %v730
        %v3243 = vpop.f32.mrb[0].mxu0
        %v3244 = vadd.f32 %v3051, %v3243
        %v3245 = vpop.f32.mrb[0].mxu0
        %v3246 = vadd.f32 %v3053, %v3245
        %v3247 = vpop.f32.mrb[0].mxu0
        %v3248 = vadd.f32 %v3055, %v3247
        %v3249 = vpop.f32.mrb[0].mxu0
        %v3250 = vadd.f32 %v3057, %v3249
        %3251 = vmatprep.mubr.bf16.mxu0 0
        %3252 = vmatmul.mubr.bf16.gmra.mrb[0].mxu0 %v733
        %v3253 = vpop.f32.mrb[0].mxu0
        %v3254 = vadd.f32 %v3061, %v3253
        %v3255 = vpop.f32.mrb[0].mxu0
        %v3256 = vadd.f32 %v3063, %v3255
        %v3257 = vpop.f32.mrb[0].mxu0
        %v3258 = vadd.f32 %v3065, %v3257
        %v3259 = vpop.f32.mrb[0].mxu0
        %v3260 = vadd.f32 %v3067, %v3259
        %3261 = vdwg.mxu0
        %3262 = vmatprep.subr.bf16.mxu0 0
        %3263 = vmatpush1.bf16.msra.mxu0 %v1462
        %3264 = vmatprep.subr.bf16.mxu0 0
        %3265 = vmatpush1.bf16.msra.mxu0 %v1471
        %3266 = vmatprep.subr.bf16.mxu0 0
        %3267 = vmatpush1.bf16.msra.mxu0 %v1480
        %3268 = vmatprep.subr.bf16.mxu0 0
        %3269 = vmatpush1.bf16.msra.mxu0 %v1489
        %3270 = vmatprep.subr.bf16.mxu0 0
        %3271 = vmatpush1.bf16.msra.mxu0 %v1498
        %3272 = vmatprep.subr.bf16.mxu0 0
        %3273 = vmatpush1.bf16.msra.mxu0 %v1507
        %3274 = vmatprep.subr.bf16.mxu0 0
        %3275 = vmatpush1.bf16.msra.mxu0 %v1516
        %3276 = vmatprep.subr.bf16.mxu0 0
        %3277 = vmatpush1.bf16.msra.mxu0 %v1525
        %3278 = vmatprep.subr.bf16.mxu0 0
        %3279 = vmatpush1.bf16.msra.mxu0 %v1534
        %3280 = vmatprep.subr.bf16.mxu0 0
        %3281 = vmatpush1.bf16.msra.mxu0 %v1543
        %3282 = vmatprep.subr.bf16.mxu0 0
        %3283 = vmatpush1.bf16.msra.mxu0 %v1552
        %3284 = vmatprep.subr.bf16.mxu0 0
        %3285 = vmatpush1.bf16.msra.mxu0 %v1561
        %3286 = vmatprep.subr.bf16.mxu0 0
        %3287 = vmatpush1.bf16.msra.mxu0 %v1570
        %3288 = vmatprep.subr.bf16.mxu0 0
        %3289 = vmatpush1.bf16.msra.mxu0 %v1579
        %3290 = vmatprep.subr.bf16.mxu0 0
        %3291 = vmatpush1.bf16.msra.mxu0 %v1588
        %3292 = vmatprep.subr.bf16.mxu0 0
        %3293 = vmatpush1.bf16.msra.mxu0 %v1597
        %3294 = vmatprep.mubr.bf16.mxu0 %v687
        %3295 = vmatmul.mubr.bf16.gmra.mrb[0].mxu0 %v686
        %v3296 = vpop.f32.mrb[0].mxu0
        %v3297 = vadd.f32 0.0, %v3296
        %v3298 = vpop.f32.mrb[0].mxu0
        %v3299 = vpop.f32.mrb[0].mxu0
        %v3300 = vadd.f32 0.0, %v3299
        %v3301 = vpop.f32.mrb[0].mxu0
        %3302 = vmatprep.mubr.bf16.mxu0 %v690
        %3303 = vmatmul.mubr.bf16.gmra.mrb[0].mxu0 %v689
        %v3304 = vpop.f32.mrb[0].mxu0
        %v3305 = vadd.f32 0.0, %v3304
        %v3306 = vpop.f32.mrb[0].mxu0
        %v3307 = vpop.f32.mrb[0].mxu0
        %v3308 = vadd.f32 0.0, %v3307
        %v3309 = vpop.f32.mrb[0].mxu0
        %3310 = vmatprep.mubr.bf16.mxu0 %v693
        %3311 = vmatmul.mubr.bf16.gmra.mrb[0].mxu0 %v692
        %v3312 = vpop.f32.mrb[0].mxu0
        %v3313 = vadd.f32 0.0, %v3312
        %v3314 = vpop.f32.mrb[0].mxu0
        %v3315 = vpop.f32.mrb[0].mxu0
        %v3316 = vadd.f32 0.0, %v3315
        %v3317 = vpop.f32.mrb[0].mxu0
        %3318 = vmatprep.mubr.bf16.mxu0 %v696
        %3319 = vmatmul.mubr.bf16.gmra.mrb[0].mxu0 %v695
        %v3320 = vpop.f32.mrb[0].mxu0
        %v3321 = vadd.f32 0.0, %v3320
        %v3322 = vpop.f32.mrb[0].mxu0
        %v3323 = vpop.f32.mrb[0].mxu0
        %v3324 = vadd.f32 0.0, %v3323
        %v3325 = vpop.f32.mrb[0].mxu0
        %3326 = vmatprep.mubr.bf16.mxu0 %v699
        %3327 = vmatmul.mubr.bf16.gmra.mrb[0].mxu0 %v698
        %v3328 = vpop.f32.mrb[0].mxu0
        %v3329 = vadd.f32 0.0, %v3328
        %v3330 = vpop.f32.mrb[0].mxu0
        %v3331 = vpop.f32.mrb[0].mxu0
        %v3332 = vadd.f32 0.0, %v3331
        %v3333 = vpop.f32.mrb[0].mxu0
        %3334 = vmatprep.mubr.bf16.mxu0 %v702
        %3335 = vmatmul.mubr.bf16.gmra.mrb[0].mxu0 %v701
        %v3336 = vpop.f32.mrb[0].mxu0
        %v3337 = vadd.f32 0.0, %v3336
        %v3338 = vpop.f32.mrb[0].mxu0
        %v3339 = vpop.f32.mrb[0].mxu0
        %v3340 = vadd.f32 0.0, %v3339
        %v3341 = vpop.f32.mrb[0].mxu0
        %3342 = vmatprep.mubr.bf16.mxu0 %v705
        %3343 = vmatmul.mubr.bf16.gmra.mrb[0].mxu0 %v704
        %v3344 = vpop.f32.mrb[0].mxu0
        %v3345 = vadd.f32 0.0, %v3344
        %v3346 = vpop.f32.mrb[0].mxu0
        %v3347 = vpop.f32.mrb[0].mxu0
        %v3348 = vadd.f32 0.0, %v3347
        %v3349 = vpop.f32.mrb[0].mxu0
        %3350 = vmatprep.mubr.bf16.mxu0 %v708
        %3351 = vmatmul.mubr.bf16.gmra.mrb[0].mxu0 %v707
        %v3352 = vpop.f32.mrb[0].mxu0
        %v3353 = vadd.f32 0.0, %v3352
        %v3354 = vpop.f32.mrb[0].mxu0
        %v3355 = vpop.f32.mrb[0].mxu0
        %v3356 = vadd.f32 0.0, %v3355
        %v3357 = vpop.f32.mrb[0].mxu0
        %3358 = vmatprep.mubr.bf16.mxu0 %v711
        %3359 = vmatmul.mubr.bf16.gmra.mrb[0].mxu0 %v710
        %v3360 = vpop.f32.mrb[0].mxu0
        %v3361 = vadd.f32 0.0, %v3360
        %v3362 = vpop.f32.mrb[0].mxu0
        %v3363 = vpop.f32.mrb[0].mxu0
        %v3364 = vadd.f32 0.0, %v3363
        %v3365 = vpop.f32.mrb[0].mxu0
        %3366 = vmatprep.mubr.bf16.mxu0 %v714
        %3367 = vmatmul.mubr.bf16.gmra.mrb[0].mxu0 %v713
        %v3368 = vpop.f32.mrb[0].mxu0
        %v3369 = vadd.f32 0.0, %v3368
        %v3370 = vpop.f32.mrb[0].mxu0
        %v3371 = vpop.f32.mrb[0].mxu0
        %v3372 = vadd.f32 0.0, %v3371
        %v3373 = vpop.f32.mrb[0].mxu0
        %3374 = vmatprep.mubr.bf16.mxu0 %v717
        %3375 = vmatmul.mubr.bf16.gmra.mrb[0].mxu0 %v716
        %v3376 = vpop.f32.mrb[0].mxu0
        %v3377 = vadd.f32 0.0, %v3376
        %v3378 = vpop.f32.mrb[0].mxu0
        %v3379 = vpop.f32.mrb[0].mxu0
        %v3380 = vadd.f32 0.0, %v3379
        %v3381 = vpop.f32.mrb[0].mxu0
        %3382 = vmatprep.mubr.bf16.mxu0 %v720
        %3383 = vmatmul.mubr.bf16.gmra.mrb[0].mxu0 %v719
        %v3384 = vpop.f32.mrb[0].mxu0
        %v3385 = vadd.f32 0.0, %v3384
        %v3386 = vpop.f32.mrb[0].mxu0
        %v3387 = vpop.f32.mrb[0].mxu0
        %v3388 = vadd.f32 0.0, %v3387
        %v3389 = vpop.f32.mrb[0].mxu0
        %3390 = vmatprep.mubr.bf16.mxu0 %v723
        %3391 = vmatmul.mubr.bf16.gmra.mrb[0].mxu0 %v722
        %v3392 = vpop.f32.mrb[0].mxu0
        %v3393 = vadd.f32 0.0, %v3392
        %v3394 = vpop.f32.mrb[0].mxu0
        %v3395 = vpop.f32.mrb[0].mxu0
        %v3396 = vadd.f32 0.0, %v3395
        %v3397 = vpop.f32.mrb[0].mxu0
        %3398 = vmatprep.mubr.bf16.mxu0 %v726
        %3399 = vmatmul.mubr.bf16.gmra.mrb[0].mxu0 %v725
        %v3400 = vpop.f32.mrb[0].mxu0
        %v3401 = vadd.f32 0.0, %v3400
        %v3402 = vpop.f32.mrb[0].mxu0
        %v3403 = vpop.f32.mrb[0].mxu0
        %v3404 = vadd.f32 0.0, %v3403
        %v3405 = vpop.f32.mrb[0].mxu0
        %3406 = vmatprep.mubr.bf16.mxu0 %v729
        %3407 = vmatmul.mubr.bf16.gmra.mrb[0].mxu0 %v728
        %v3408 = vpop.f32.mrb[0].mxu0
        %v3409 = vadd.f32 0.0, %v3408
        %v3410 = vpop.f32.mrb[0].mxu0
        %v3411 = vpop.f32.mrb[0].mxu0
        %v3412 = vadd.f32 0.0, %v3411
        %v3413 = vpop.f32.mrb[0].mxu0
        %3414 = vmatprep.mubr.bf16.mxu0 %v732
        %3415 = vmatmul.mubr.bf16.gmra.mrb[0].mxu0 %v731
        %v3416 = vpop.f32.mrb[0].mxu0
        %v3417 = vadd.f32 0.0, %v3416
        %v3418 = vpop.f32.mrb[0].mxu0
        %v3419 = vpop.f32.mrb[0].mxu0
        %v3420 = vadd.f32 0.0, %v3419
        %v3421 = vpop.f32.mrb[0].mxu0
        %3422 = vdwg.mxu0
        %3423 = vmatprep.subr.bf16.mxu0 0
        %3424 = vmatpush1.bf16.msra.mxu0 %v1606
        %3425 = vmatprep.subr.bf16.mxu0 0
        %3426 = vmatpush1.bf16.msra.mxu0 %v1615
        %3427 = vmatprep.subr.bf16.mxu0 0
        %3428 = vmatpush1.bf16.msra.mxu0 %v1624
        %3429 = vmatprep.subr.bf16.mxu0 0
        %3430 = vmatpush1.bf16.msra.mxu0 %v1633
        %3431 = vmatprep.subr.bf16.mxu0 0
        %3432 = vmatpush1.bf16.msra.mxu0 %v1642
        %3433 = vmatprep.subr.bf16.mxu0 0
        %3434 = vmatpush1.bf16.msra.mxu0 %v1651
        %3435 = vmatprep.subr.bf16.mxu0 0
        %3436 = vmatpush1.bf16.msra.mxu0 %v1660
        %3437 = vmatprep.subr.bf16.mxu0 0
        %3438 = vmatpush1.bf16.msra.mxu0 %v1669
        %3439 = vmatprep.subr.bf16.mxu0 0
        %3440 = vmatpush1.bf16.msra.mxu0 0
        %3441 = vmatprep.subr.bf16.mxu0 0
        %3442 = vmatpush1.bf16.msra.mxu0 0
        %3443 = vmatprep.subr.bf16.mxu0 0
        %3444 = vmatpush1.bf16.msra.mxu0 0
        %3445 = vmatprep.subr.bf16.mxu0 0
        %3446 = vmatpush1.bf16.msra.mxu0 0
        %3447 = vmatprep.subr.bf16.mxu0 0
        %3448 = vmatpush1.bf16.msra.mxu0 0
        %3449 = vmatprep.subr.bf16.mxu0 0
        %3450 = vmatpush1.bf16.msra.mxu0 0
        %3451 = vmatprep.subr.bf16.mxu0 0
        %3452 = vmatpush1.bf16.msra.mxu0 0
        %3453 = vmatprep.subr.bf16.mxu0 0
        %3454 = vmatpush1.bf16.msra.mxu0 0
        %3455 = vmatprep.mubr.bf16.mxu0 0
        %3456 = vmatmul.mubr.bf16.gmra.mrb[0].mxu0 %v688
        %v3457 = vpop.f32.mrb[0].mxu0
        %v3458 = vadd.f32 %v3297, %v3457
        %v3459 = vpop.f32.mrb[0].mxu0
        %v3460 = vpop.f32.mrb[0].mxu0
        %v3461 = vadd.f32 %v3300, %v3460
        %v3462 = vpop.f32.mrb[0].mxu0
        %3463 = vmatprep.mubr.bf16.mxu0 0
        %3464 = vmatmul.mubr.bf16.gmra.mrb[0].mxu0 %v691
        %v3465 = vpop.f32.mrb[0].mxu0
        %v3466 = vadd.f32 %v3305, %v3465
        %v3467 = vpop.f32.mrb[0].mxu0
        %v3468 = vpop.f32.mrb[0].mxu0
        %v3469 = vadd.f32 %v3308, %v3468
        %v3470 = vpop.f32.mrb[0].mxu0
        %3471 = vmatprep.mubr.bf16.mxu0 0
        %3472 = vmatmul.mubr.bf16.gmra.mrb[0].mxu0 %v694
        %v3473 = vpop.f32.mrb[0].mxu0
        %v3474 = vadd.f32 %v3313, %v3473
        %v3475 = vpop.f32.mrb[0].mxu0
        %v3476 = vpop.f32.mrb[0].mxu0
        %v3477 = vadd.f32 %v3316, %v3476
        %v3478 = vpop.f32.mrb[0].mxu0
        %3479 = vmatprep.mubr.bf16.mxu0 0
        %3480 = vmatmul.mubr.bf16.gmra.mrb[0].mxu0 %v697
        %v3481 = vpop.f32.mrb[0].mxu0
        %v3482 = vadd.f32 %v3321, %v3481
        %v3483 = vpop.f32.mrb[0].mxu0
        %v3484 = vpop.f32.mrb[0].mxu0
        %v3485 = vadd.f32 %v3324, %v3484
        %v3486 = vpop.f32.mrb[0].mxu0
        %3487 = vmatprep.mubr.bf16.mxu0 0
        %3488 = vmatmul.mubr.bf16.gmra.mrb[0].mxu0 %v700
        %v3489 = vpop.f32.mrb[0].mxu0
        %v3490 = vadd.f32 %v3329, %v3489
        %v3491 = vpop.f32.mrb[0].mxu0
        %v3492 = vpop.f32.mrb[0].mxu0
        %v3493 = vadd.f32 %v3332, %v3492
        %v3494 = vpop.f32.mrb[0].mxu0
        %3495 = vmatprep.mubr.bf16.mxu0 0
        %3496 = vmatmul.mubr.bf16.gmra.mrb[0].mxu0 %v703
        %v3497 = vpop.f32.mrb[0].mxu0
        %v3498 = vadd.f32 %v3337, %v3497
        %v3499 = vpop.f32.mrb[0].mxu0
        %v3500 = vpop.f32.mrb[0].mxu0
        %v3501 = vadd.f32 %v3340, %v3500
        %v3502 = vpop.f32.mrb[0].mxu0
        %3503 = vmatprep.mubr.bf16.mxu0 0
        %3504 = vmatmul.mubr.bf16.gmra.mrb[0].mxu0 %v706
        %v3505 = vpop.f32.mrb[0].mxu0
        %v3506 = vadd.f32 %v3345, %v3505
        %v3507 = vpop.f32.mrb[0].mxu0
        %v3508 = vpop.f32.mrb[0].mxu0
        %v3509 = vadd.f32 %v3348, %v3508
        %v3510 = vpop.f32.mrb[0].mxu0
        %3511 = vmatprep.mubr.bf16.mxu0 0
        %3512 = vmatmul.mubr.bf16.gmra.mrb[0].mxu0 %v709
        %v3513 = vpop.f32.mrb[0].mxu0
        %v3514 = vadd.f32 %v3353, %v3513
        %v3515 = vpop.f32.mrb[0].mxu0
        %v3516 = vpop.f32.mrb[0].mxu0
        %v3517 = vadd.f32 %v3356, %v3516
        %v3518 = vpop.f32.mrb[0].mxu0
        %3519 = vmatprep.mubr.bf16.mxu0 0
        %3520 = vmatmul.mubr.bf16.gmra.mrb[0].mxu0 %v712
        %v3521 = vpop.f32.mrb[0].mxu0
        %v3522 = vadd.f32 %v3361, %v3521
        %v3523 = vpop.f32.mrb[0].mxu0
        %v3524 = vpop.f32.mrb[0].mxu0
        %v3525 = vadd.f32 %v3364, %v3524
        %v3526 = vpop.f32.mrb[0].mxu0
        %3527 = vmatprep.mubr.bf16.mxu0 0
        %3528 = vmatmul.mubr.bf16.gmra.mrb[0].mxu0 %v715
        %v3529 = vpop.f32.mrb[0].mxu0
        %v3530 = vadd.f32 %v3369, %v3529
        %v3531 = vpop.f32.mrb[0].mxu0
        %v3532 = vpop.f32.mrb[0].mxu0
        %v3533 = vadd.f32 %v3372, %v3532
        %v3534 = vpop.f32.mrb[0].mxu0
        %3535 = vmatprep.mubr.bf16.mxu0 0
        %3536 = vmatmul.mubr.bf16.gmra.mrb[0].mxu0 %v718
        %v3537 = vpop.f32.mrb[0].mxu0
        %v3538 = vadd.f32 %v3377, %v3537
        %v3539 = vpop.f32.mrb[0].mxu0
        %v3540 = vpop.f32.mrb[0].mxu0
        %v3541 = vadd.f32 %v3380, %v3540
        %v3542 = vpop.f32.mrb[0].mxu0
        %3543 = vmatprep.mubr.bf16.mxu0 0
        %3544 = vmatmul.mubr.bf16.gmra.mrb[0].mxu0 %v721
        %v3545 = vpop.f32.mrb[0].mxu0
        %v3546 = vadd.f32 %v3385, %v3545
        %v3547 = vpop.f32.mrb[0].mxu0
        %v3548 = vpop.f32.mrb[0].mxu0
        %v3549 = vadd.f32 %v3388, %v3548
        %v3550 = vpop.f32.mrb[0].mxu0
        %3551 = vmatprep.mubr.bf16.mxu0 0
        %3552 = vmatmul.mubr.bf16.gmra.mrb[0].mxu0 %v724
        %v3553 = vpop.f32.mrb[0].mxu0
        %v3554 = vadd.f32 %v3393, %v3553
        %v3555 = vpop.f32.mrb[0].mxu0
        %v3556 = vpop.f32.mrb[0].mxu0
        %v3557 = vadd.f32 %v3396, %v3556
        %v3558 = vpop.f32.mrb[0].mxu0
        %3559 = vmatprep.mubr.bf16.mxu0 0
        %3560 = vmatmul.mubr.bf16.gmra.mrb[0].mxu0 %v727
        %v3561 = vpop.f32.mrb[0].mxu0
        %v3562 = vadd.f32 %v3401, %v3561
        %v3563 = vpop.f32.mrb[0].mxu0
        %v3564 = vpop.f32.mrb[0].mxu0
        %v3565 = vadd.f32 %v3404, %v3564
        %v3566 = vpop.f32.mrb[0].mxu0
        %3567 = vmatprep.mubr.bf16.mxu0 0
        %3568 = vmatmul.mubr.bf16.gmra.mrb[0].mxu0 %v730
        %v3569 = vpop.f32.mrb[0].mxu0
        %v3570 = vadd.f32 %v3409, %v3569
        %v3571 = vpop.f32.mrb[0].mxu0
        %v3572 = vpop.f32.mrb[0].mxu0
        %v3573 = vadd.f32 %v3412, %v3572
        %v3574 = vpop.f32.mrb[0].mxu0
        %3575 = vmatprep.mubr.bf16.mxu0 0
        %3576 = vmatmul.mubr.bf16.gmra.mrb[0].mxu0 %v733
        %v3577 = vpop.f32.mrb[0].mxu0
        %v3578 = vadd.f32 %v3417, %v3577
        %v3579 = vpop.f32.mrb[0].mxu0
        %v3580 = vpop.f32.mrb[0].mxu0
        %v3581 = vadd.f32 %v3420, %v3580
        %v3582 = vpop.f32.mrb[0].mxu0
        %3583 = vdwg.mxu0
        %v3584 = vpack.c.bf16 %v2062, %v2058
        %v3585 = vpack.c.bf16 %v2064, %v2060
        %v3586 = vpack.c.bf16 %v2364, %v2360
        %v3587 = vpack.c.bf16 %v2366, %v2362
        %v3588 = vpack.c.bf16 %v2722, %v2718
        %v3589 = vpack.c.bf16 %v2724, %v2720
        %v3590 = vpack.c.bf16 %v3108, %v3104
        %v3591 = vpack.c.bf16 %v3110, %v3106
        %v3592 = vpack.c.bf16 %v3461, %v3458
        %v3593 = vpack.c.bf16 %v2374, %v2371
        %v3594 = vpack.c.bf16 %v2732, %v2728
        %v3595 = vpack.c.bf16 %v2734, %v2730
        %v3596 = vpack.c.bf16 %v3118, %v3114
        %v3597 = vpack.c.bf16 %v3120, %v3116
        %v3598 = vpack.c.bf16 %v3469, %v3466
        %v3599 = vpack.c.bf16 %v2382, %v2379
        %v3600 = vpack.c.bf16 %v2742, %v2738
        %v3601 = vpack.c.bf16 %v2744, %v2740
        %v3602 = vpack.c.bf16 %v3128, %v3124
        %v3603 = vpack.c.bf16 %v3130, %v3126
        %v3604 = vpack.c.bf16 %v3477, %v3474
        %v3605 = vpack.c.bf16 %v2390, %v2387
        %v3606 = vpack.c.bf16 %v2752, %v2748
        %v3607 = vpack.c.bf16 %v2754, %v2750
        %v3608 = vpack.c.bf16 %v3138, %v3134
        %v3609 = vpack.c.bf16 %v3140, %v3136
        %v3610 = vpack.c.bf16 %v3485, %v3482
        %v3611 = vpack.c.bf16 %v2398, %v2395
        %v3612 = vpack.c.bf16 %v2762, %v2758
        %v3613 = vpack.c.bf16 %v2764, %v2760
        %v3614 = vpack.c.bf16 %v3148, %v3144
        %v3615 = vpack.c.bf16 %v3150, %v3146
        %v3616 = vpack.c.bf16 %v3493, %v3490
        %v3617 = vpack.c.bf16 %v2406, %v2403
        %v3618 = vpack.c.bf16 %v2772, %v2768
        %v3619 = vpack.c.bf16 %v2774, %v2770
        %v3620 = vpack.c.bf16 %v3158, %v3154
        %v3621 = vpack.c.bf16 %v3160, %v3156
        %v3622 = vpack.c.bf16 %v3501, %v3498
        %v3623 = vpack.c.bf16 %v2414, %v2411
        %v3624 = vpack.c.bf16 %v2782, %v2778
        %v3625 = vpack.c.bf16 %v2784, %v2780
        %v3626 = vpack.c.bf16 %v3168, %v3164
        %v3627 = vpack.c.bf16 %v3170, %v3166
        %v3628 = vpack.c.bf16 %v3509, %v3506
        %v3629 = vpack.c.bf16 %v2422, %v2419
        %v3630 = vpack.c.bf16 %v2792, %v2788
        %v3631 = vpack.c.bf16 %v2794, %v2790
        %v3632 = vpack.c.bf16 %v3178, %v3174
        %v3633 = vpack.c.bf16 %v3180, %v3176
        %v3634 = vpack.c.bf16 %v3517, %v3514
        %v3635 = vpack.c.bf16 %v2114, %v2110
        %v3636 = vpack.c.bf16 %v2116, %v2112
        %v3637 = vpack.c.bf16 %v2430, %v2426
        %v3638 = vpack.c.bf16 %v2432, %v2428
        %v3639 = vpack.c.bf16 %v2802, %v2798
        %v3640 = vpack.c.bf16 %v2804, %v2800
        %v3641 = vpack.c.bf16 %v3188, %v3184
        %v3642 = vpack.c.bf16 %v3190, %v3186
        %v3643 = vpack.c.bf16 %v3525, %v3522
        %v3644 = vpack.c.bf16 %v2440, %v2437
        %v3645 = vpack.c.bf16 %v2812, %v2808
        %v3646 = vpack.c.bf16 %v2814, %v2810
        %v3647 = vpack.c.bf16 %v3198, %v3194
        %v3648 = vpack.c.bf16 %v3200, %v3196
        %v3649 = vpack.c.bf16 %v3533, %v3530
        %v3650 = vpack.c.bf16 %v2448, %v2445
        %v3651 = vpack.c.bf16 %v2822, %v2818
        %v3652 = vpack.c.bf16 %v2824, %v2820
        %v3653 = vpack.c.bf16 %v3208, %v3204
        %v3654 = vpack.c.bf16 %v3210, %v3206
        %v3655 = vpack.c.bf16 %v3541, %v3538
        %v3656 = vpack.c.bf16 %v2456, %v2453
        %v3657 = vpack.c.bf16 %v2832, %v2828
        %v3658 = vpack.c.bf16 %v2834, %v2830
        %v3659 = vpack.c.bf16 %v3218, %v3214
        %v3660 = vpack.c.bf16 %v3220, %v3216
        %v3661 = vpack.c.bf16 %v3549, %v3546
        %v3662 = vpack.c.bf16 %v2464, %v2461
        %v3663 = vpack.c.bf16 %v2842, %v2838
        %v3664 = vpack.c.bf16 %v2844, %v2840
        %v3665 = vpack.c.bf16 %v3228, %v3224
        %v3666 = vpack.c.bf16 %v3230, %v3226
        %v3667 = vpack.c.bf16 %v3557, %v3554
        %v3668 = vpack.c.bf16 %v2472, %v2469
        %v3669 = vpack.c.bf16 %v2852, %v2848
        %v3670 = vpack.c.bf16 %v2854, %v2850
        %v3671 = vpack.c.bf16 %v3238, %v3234
        %v3672 = vpack.c.bf16 %v3240, %v3236
        %v3673 = vpack.c.bf16 %v3565, %v3562
        %v3674 = vpack.c.bf16 %v2480, %v2477
        %v3675 = vpack.c.bf16 %v2862, %v2858
        %v3676 = vpack.c.bf16 %v2864, %v2860
        %v3677 = vpack.c.bf16 %v3248, %v3244
        %v3678 = vpack.c.bf16 %v3250, %v3246
        %v3679 = vpack.c.bf16 %v3573, %v3570
        %v3680 = vpack.c.bf16 %v2488, %v2485
        %v3681 = vpack.c.bf16 %v2872, %v2868
        %v3682 = vpack.c.bf16 %v2874, %v2870
        %v3683 = vpack.c.bf16 %v3258, %v3254
        %v3684 = vpack.c.bf16 %v3260, %v3256
        %v3685 = vpack.c.bf16 %v3581, %v3578
        %v3686 = vlaneseq
        %v3687 = vshrl.u32 %v3686, 7
        %v3688 = vadd.s32 %v3687, 8
        %v3689 = vlaneseq
        %v3690 = vand.u32 %v3689, 127
        %vm3691 = vcmp.ge.s32.totalorder %v3687, %v3690
        %vm3692 = vcmp.ge.s32.totalorder %v3688, %v3690
        %vm3693 = vcmp.lt.s32.totalorder %v3690, 8
        %vm3694 = vmand %vm3691, %vm3693
        %vm3695 = vmand %vm3692, %vm3693
        %vm3696 = vcmask 523264
        %v3698 = vsel %vm3696, %v3584, 0
        %v3701 = vsel %vm3696, %v3587, 0
        %v3704 = vsel %vm3696, %v3593, 0
        %v3707 = vsel %vm3696, %v3599, 0
        %v3710 = vsel %vm3696, %v3605, 0
        %v3713 = vsel %vm3696, %v3611, 0
        %v3716 = vsel %vm3696, %v3617, 0
        %v3719 = vsel %vm3696, %v3623, 0
        %v3722 = vsel %vm3696, %v3629, 0
        %3724 = vmatprep.subr.bf16.mxu0 0
        %3725 = vmatpush1.bf16.xpose.msra.mxu0 %v3701
        %3726 = vmatprep.subr.bf16.mxu0 0
        %3727 = vmatpush1.bf16.xpose.msra.mxu0 %v3704
        %3728 = vmatprep.subr.bf16.mxu0 0
        %3729 = vmatpush1.bf16.xpose.msra.mxu0 %v3707
        %3730 = vmatprep.subr.bf16.mxu0 0
        %3731 = vmatpush1.bf16.xpose.msra.mxu0 %v3710
        %3732 = vmatprep.subr.bf16.mxu0 0
        %3733 = vmatpush1.bf16.xpose.msra.mxu0 %v3713
        %3734 = vmatprep.subr.bf16.mxu0 0
        %3735 = vmatpush1.bf16.xpose.msra.mxu0 %v3716
        %3736 = vmatprep.subr.bf16.mxu0 0
        %3737 = vmatpush1.bf16.xpose.msra.mxu0 %v3719
        %3738 = vmatprep.subr.bf16.mxu0 0
        %3739 = vmatpush1.bf16.xpose.msra.mxu0 %v3722
        %3740 = vmatprep.subr.bf16.mxu0 0
        %3741 = vmatpush1.bf16.xpose.msra.mxu0 0
        %3742 = vmatprep.subr.bf16.mxu0 0
        %3743 = vmatpush1.bf16.xpose.msra.mxu0 0
        %3744 = vmatprep.subr.bf16.mxu0 0
        %3745 = vmatpush1.bf16.xpose.msra.mxu0 0
        %3746 = vmatprep.subr.bf16.mxu0 0
        %3747 = vmatpush1.bf16.xpose.msra.mxu0 0
        %3748 = vmatprep.subr.bf16.mxu0 0
        %3749 = vmatpush1.bf16.xpose.msra.mxu0 0
        %3750 = vmatprep.subr.bf16.mxu0 0
        %3751 = vmatpush1.bf16.xpose.msra.mxu0 0
        %3752 = vmatprep.subr.bf16.mxu0 0
        %3753 = vmatpush1.bf16.xpose.msra.mxu0 0
        %3754 = vmatprep.subr.bf16.mxu0 0
        %3755 = vmatpush1.bf16.xpose.msra.mxu0 0
        %3756 = vmatprep.mubr.bf16.mxu0 0
        %3757 = vmatmul.mubr.bf16.gmra.mrb[0].mxu0 %v3698
        %v3758 = vpop.f32.mrb[0].mxu0
        %v3759 = vadd.f32 0.0, %v3758
        %v3760 = vpop.f32.mrb[0].mxu0
        %v3761 = vpop.f32.mrb[0].mxu0
        %v3762 = vadd.f32 0.0, %v3761
        %v3763 = vpop.f32.mrb[0].mxu0
        %3764 = vdwg.mxu0
        %v3766 = vsel %vm3696, %v3635, 0
        %v3769 = vsel %vm3696, %v3638, 0
        %v3772 = vsel %vm3696, %v3644, 0
        %v3775 = vsel %vm3696, %v3650, 0
        %v3778 = vsel %vm3696, %v3656, 0
        %v3781 = vsel %vm3696, %v3662, 0
        %v3784 = vsel %vm3696, %v3668, 0
        %v3787 = vsel %vm3696, %v3674, 0
        %v3790 = vsel %vm3696, %v3680, 0
        %3792 = vmatprep.subr.bf16.mxu0 0
        %3793 = vmatpush1.bf16.xpose.msra.mxu0 %v3769
        %3794 = vmatprep.subr.bf16.mxu0 0
        %3795 = vmatpush1.bf16.xpose.msra.mxu0 %v3772
        %3796 = vmatprep.subr.bf16.mxu0 0
        %3797 = vmatpush1.bf16.xpose.msra.mxu0 %v3775
        %3798 = vmatprep.subr.bf16.mxu0 0
        %3799 = vmatpush1.bf16.xpose.msra.mxu0 %v3778
        %3800 = vmatprep.subr.bf16.mxu0 0
        %3801 = vmatpush1.bf16.xpose.msra.mxu0 %v3781
        %3802 = vmatprep.subr.bf16.mxu0 0
        %3803 = vmatpush1.bf16.xpose.msra.mxu0 %v3784
        %3804 = vmatprep.subr.bf16.mxu0 0
        %3805 = vmatpush1.bf16.xpose.msra.mxu0 %v3787
        %3806 = vmatprep.subr.bf16.mxu0 0
        %3807 = vmatpush1.bf16.xpose.msra.mxu0 %v3790
        %3808 = vmatprep.subr.bf16.mxu0 0
        %3809 = vmatpush1.bf16.xpose.msra.mxu0 0
        %3810 = vmatprep.subr.bf16.mxu0 0
        %3811 = vmatpush1.bf16.xpose.msra.mxu0 0
        %3812 = vmatprep.subr.bf16.mxu0 0
        %3813 = vmatpush1.bf16.xpose.msra.mxu0 0
        %3814 = vmatprep.subr.bf16.mxu0 0
        %3815 = vmatpush1.bf16.xpose.msra.mxu0 0
        %3816 = vmatprep.subr.bf16.mxu0 0
        %3817 = vmatpush1.bf16.xpose.msra.mxu0 0
        %3818 = vmatprep.subr.bf16.mxu0 0
        %3819 = vmatpush1.bf16.xpose.msra.mxu0 0
        %3820 = vmatprep.subr.bf16.mxu0 0
        %3821 = vmatpush1.bf16.xpose.msra.mxu0 0
        %3822 = vmatprep.subr.bf16.mxu0 0
        %3823 = vmatpush1.bf16.xpose.msra.mxu0 0
        %3824 = vmatprep.mubr.bf16.mxu0 0
        %3825 = vmatmul.mubr.bf16.gmra.mrb[0].mxu0 %v3766
        %v3826 = vpop.f32.mrb[0].mxu0
        %v3827 = vadd.f32 0.0, %v3826
        %v3828 = vpop.f32.mrb[0].mxu0
        %v3829 = vpop.f32.mrb[0].mxu0
        %v3830 = vadd.f32 0.0, %v3829
        %v3831 = vpop.f32.mrb[0].mxu0
        %3832 = vdwg.mxu0
        %v3833 = vsel %vm3694, 1, 0
        %v3834 = vsel %vm3695, 1, 0
        %vm3835 = vcmp.eq.s32.totalorder %v3833, 1
        %vm3836 = vcmp.eq.s32.totalorder %v3834, 1
        %v3837 = vsel %vm3835, %v3759, -1e+30
        %v3838 = vsel %vm3836, %v3762, -1e+30
        %v3839 = vsel %vm3835, %v3827, -1e+30
        %v3840 = vsel %vm3836, %v3830, -1e+30
        %3841 = vmax.xlane.f32.xlu0 %v3837
        %v3842 = vpop.xlane.xlu0 %3841
        %3843 = vmax.xlane.f32.xlu0 %v3838
        %v3844 = vpop.xlane.xlu0 %3843
        %3845 = vmax.xlane.f32.xlu0 %v3839
        %v3846 = vpop.xlane.xlu0 %3845
        %3847 = vmax.xlane.f32.xlu0 %v3840
        %v3848 = vpop.xlane.xlu0 %3847
        %v3849 = vsub.f32 %v3837, %v3842
        %v3850 = vsub.f32 %v3838, %v3844
        %v3851 = vsub.f32 %v3839, %v3846
        %v3852 = vsub.f32 %v3840, %v3848
        %v3853 = vmul.f32 %v3849, 1.442695
        %v3854 = vpow.pop %v3853
        %v3855 = vmul.f32 %v3850, 1.442695
        %v3856 = vpow.pop %v3855
        %v3857 = vmul.f32 %v3851, 1.442695
        %v3858 = vpow.pop %v3857
        %v3859 = vmul.f32 %v3852, 1.442695
        %v3860 = vpow.pop %v3859
        %3861 = vadd.xlane.f32.xlu0 %v3854
        %v3862 = vpop.xlane.xlu0 %3861
        %3863 = vadd.xlane.f32.xlu0 %v3856
        %v3864 = vpop.xlane.xlu0 %3863
        %3865 = vadd.xlane.f32.xlu0 %v3858
        %v3866 = vpop.xlane.xlu0 %3865
        %3867 = vadd.xlane.f32.xlu0 %v3860
        %v3868 = vpop.xlane.xlu0 %3867
        %v3869 = vpack.c.bf16 %v3856, %v3854
        %v3870 = vpack.c.bf16 %v3860, %v3858
        %3871 = vmatprep.subr.bf16.mxu0 0
        %3872 = vmatpush1.bf16.msra.mxu0 %v3590
        %3873 = vmatprep.subr.bf16.mxu0 0
        %3874 = vmatpush1.bf16.msra.mxu0 %v3596
        %3875 = vmatprep.subr.bf16.mxu0 0
        %3876 = vmatpush1.bf16.msra.mxu0 %v3602
        %3877 = vmatprep.subr.bf16.mxu0 0
        %3878 = vmatpush1.bf16.msra.mxu0 %v3608
        %3879 = vmatprep.subr.bf16.mxu0 0
        %3880 = vmatpush1.bf16.msra.mxu0 %v3614
        %3881 = vmatprep.subr.bf16.mxu0 0
        %3882 = vmatpush1.bf16.msra.mxu0 %v3620
        %3883 = vmatprep.subr.bf16.mxu0 0
        %3884 = vmatpush1.bf16.msra.mxu0 %v3626
        %3885 = vmatprep.subr.bf16.mxu0 0
        %3886 = vmatpush1.bf16.msra.mxu0 %v3632
        %3887 = vmatprep.subr.bf16.mxu0 0
        %3888 = vmatpush1.bf16.msra.mxu0 0
        %3889 = vmatprep.subr.bf16.mxu0 0
        %3890 = vmatpush1.bf16.msra.mxu0 0
        %3891 = vmatprep.subr.bf16.mxu0 0
        %3892 = vmatpush1.bf16.msra.mxu0 0
        %3893 = vmatprep.subr.bf16.mxu0 0
        %3894 = vmatpush1.bf16.msra.mxu0 0
        %3895 = vmatprep.subr.bf16.mxu0 0
        %3896 = vmatpush1.bf16.msra.mxu0 0
        %3897 = vmatprep.subr.bf16.mxu0 0
        %3898 = vmatpush1.bf16.msra.mxu0 0
        %3899 = vmatprep.subr.bf16.mxu0 0
        %3900 = vmatpush1.bf16.msra.mxu0 0
        %3901 = vmatprep.subr.bf16.mxu0 0
        %3902 = vmatpush1.bf16.msra.mxu0 0
        %3903 = vmatprep.mubr.bf16.mxu0 0
        %3904 = vmatmul.mubr.bf16.gmra.mrb[0].mxu0 %v3869
        %v3905 = vpop.f32.mrb[0].mxu0
        %v3906 = vadd.f32 0.0, %v3905
        %v3907 = vpop.f32.mrb[0].mxu0
        %v3908 = vpop.f32.mrb[0].mxu0
        %v3909 = vadd.f32 0.0, %v3908
        %v3910 = vpop.f32.mrb[0].mxu0
        %3911 = vdwg.mxu0
        %3912 = vmatprep.subr.bf16.mxu0 0
        %3913 = vmatpush1.bf16.msra.mxu0 %v3641
        %3914 = vmatprep.subr.bf16.mxu0 0
        %3915 = vmatpush1.bf16.msra.mxu0 %v3647
        %3916 = vmatprep.subr.bf16.mxu0 0
        %3917 = vmatpush1.bf16.msra.mxu0 %v3653
        %3918 = vmatprep.subr.bf16.mxu0 0
        %3919 = vmatpush1.bf16.msra.mxu0 %v3659
        %3920 = vmatprep.subr.bf16.mxu0 0
        %3921 = vmatpush1.bf16.msra.mxu0 %v3665
        %3922 = vmatprep.subr.bf16.mxu0 0
        %3923 = vmatpush1.bf16.msra.mxu0 %v3671
        %3924 = vmatprep.subr.bf16.mxu0 0
        %3925 = vmatpush1.bf16.msra.mxu0 %v3677
        %3926 = vmatprep.subr.bf16.mxu0 0
        %3927 = vmatpush1.bf16.msra.mxu0 %v3683
        %3928 = vmatprep.subr.bf16.mxu0 0
        %3929 = vmatpush1.bf16.msra.mxu0 0
        %3930 = vmatprep.subr.bf16.mxu0 0
        %3931 = vmatpush1.bf16.msra.mxu0 0
        %3932 = vmatprep.subr.bf16.mxu0 0
        %3933 = vmatpush1.bf16.msra.mxu0 0
        %3934 = vmatprep.subr.bf16.mxu0 0
        %3935 = vmatpush1.bf16.msra.mxu0 0
        %3936 = vmatprep.subr.bf16.mxu0 0
        %3937 = vmatpush1.bf16.msra.mxu0 0
        %3938 = vmatprep.subr.bf16.mxu0 0
        %3939 = vmatpush1.bf16.msra.mxu0 0
        %3940 = vmatprep.subr.bf16.mxu0 0
        %3941 = vmatpush1.bf16.msra.mxu0 0
        %3942 = vmatprep.subr.bf16.mxu0 0
        %3943 = vmatpush1.bf16.msra.mxu0 0
        %3944 = vmatprep.mubr.bf16.mxu0 0
        %3945 = vmatmul.mubr.bf16.gmra.mrb[0].mxu0 %v3870
        %v3946 = vpop.f32.mrb[0].mxu0
        %v3947 = vadd.f32 0.0, %v3946
        %v3948 = vpop.f32.mrb[0].mxu0
        %v3949 = vpop.f32.mrb[0].mxu0
        %v3950 = vadd.f32 0.0, %v3949
        %v3951 = vpop.f32.mrb[0].mxu0
        %3952 = vdwg.mxu0
        %v3953 = vrcp.pop %v3862
        %v3954 = vrcp.pop %v3864
        %v3955 = vrcp.pop %v3866
        %v3956 = vrcp.pop %v3868
        %v3957 = vmul.f32 %v3906, %v3953
        %v3958 = vmul.f32 %v3909, %v3954
        %v3959 = vmul.f32 %v3947, %v3955
        %v3960 = vmul.f32 %v3950, %v3956
        %v3961 = vpack.c.bf16 %v3958, %v3957
        %v3962 = vpack.c.bf16 %v3960, %v3959
        %3963 = vst.msk [vmem:[#allocation2] sm:$0xff] %vm3696, %v3961
        %3964 = vst.msk [vmem:[#allocation2 + $0x18] sm:$0xff] %vm3696, %v3962
        %3966 = vrot.lane.b32.xlu0 %v3584, 64
        %v3967 = vpop.permute.xlu0 %3966
        %3976 = vrot.lane.b32.xlu0 %v3587, 64
        %v3977 = vpop.permute.xlu0 %3976
        %3978 = vrot.lane.b32.xlu0 %v3593, 64
        %v3979 = vpop.permute.xlu0 %3978
        %3980 = vrot.lane.b32.xlu0 %v3599, 64
        %v3981 = vpop.permute.xlu0 %3980
        %3982 = vrot.lane.b32.xlu0 %v3605, 64
        %v3983 = vpop.permute.xlu0 %3982
        %3984 = vrot.lane.b32.xlu0 %v3611, 64
        %v3985 = vpop.permute.xlu0 %3984
        %3986 = vrot.lane.b32.xlu0 %v3617, 64
        %v3987 = vpop.permute.xlu0 %3986
        %3988 = vrot.lane.b32.xlu0 %v3623, 64
        %v3989 = vpop.permute.xlu0 %3988
        %3990 = vrot.lane.b32.xlu0 %v3629, 64
        %v3991 = vpop.permute.xlu0 %3990
        %v3993 = vsel %vm3696, %v3967, 0
        %v3996 = vsel %vm3696, %v3977, 0
        %v3999 = vsel %vm3696, %v3979, 0
        %v4002 = vsel %vm3696, %v3981, 0
        %v4005 = vsel %vm3696, %v3983, 0
        %v4008 = vsel %vm3696, %v3985, 0
        %v4011 = vsel %vm3696, %v3987, 0
        %v4014 = vsel %vm3696, %v3989, 0
        %v4017 = vsel %vm3696, %v3991, 0
        %4019 = vmatprep.subr.bf16.mxu0 0
        %4020 = vmatpush1.bf16.xpose.msra.mxu0 %v3996
        %4021 = vmatprep.subr.bf16.mxu0 0
        %4022 = vmatpush1.bf16.xpose.msra.mxu0 %v3999
        %4023 = vmatprep.subr.bf16.mxu0 0
        %4024 = vmatpush1.bf16.xpose.msra.mxu0 %v4002
        %4025 = vmatprep.subr.bf16.mxu0 0
        %4026 = vmatpush1.bf16.xpose.msra.mxu0 %v4005
        %4027 = vmatprep.subr.bf16.mxu0 0
        %4028 = vmatpush1.bf16.xpose.msra.mxu0 %v4008
        %4029 = vmatprep.subr.bf16.mxu0 0
        %4030 = vmatpush1.bf16.xpose.msra.mxu0 %v4011
        %4031 = vmatprep.subr.bf16.mxu0 0
        %4032 = vmatpush1.bf16.xpose.msra.mxu0 %v4014
        %4033 = vmatprep.subr.bf16.mxu0 0
        %4034 = vmatpush1.bf16.xpose.msra.mxu0 %v4017
        %4035 = vmatprep.subr.bf16.mxu0 0
        %4036 = vmatpush1.bf16.xpose.msra.mxu0 0
        %4037 = vmatprep.subr.bf16.mxu0 0
        %4038 = vmatpush1.bf16.xpose.msra.mxu0 0
        %4039 = vmatprep.subr.bf16.mxu0 0
        %4040 = vmatpush1.bf16.xpose.msra.mxu0 0
        %4041 = vmatprep.subr.bf16.mxu0 0
        %4042 = vmatpush1.bf16.xpose.msra.mxu0 0
        %4043 = vmatprep.subr.bf16.mxu0 0
        %4044 = vmatpush1.bf16.xpose.msra.mxu0 0
        %4045 = vmatprep.subr.bf16.mxu0 0
        %4046 = vmatpush1.bf16.xpose.msra.mxu0 0
        %4047 = vmatprep.subr.bf16.mxu0 0
        %4048 = vmatpush1.bf16.xpose.msra.mxu0 0
        %4049 = vmatprep.subr.bf16.mxu0 0
        %4050 = vmatpush1.bf16.xpose.msra.mxu0 0
        %4051 = vmatprep.mubr.bf16.mxu0 0
        %4052 = vmatmul.mubr.bf16.gmra.mrb[0].mxu0 %v3993
        %v4053 = vpop.f32.mrb[0].mxu0
        %v4054 = vadd.f32 0.0, %v4053
        %v4055 = vpop.f32.mrb[0].mxu0
        %v4056 = vpop.f32.mrb[0].mxu0
        %v4057 = vadd.f32 0.0, %v4056
        %v4058 = vpop.f32.mrb[0].mxu0
        %4059 = vdwg.mxu0
        %4061 = vrot.lane.b32.xlu0 %v3635, 64
        %v4062 = vpop.permute.xlu0 %4061
        %4071 = vrot.lane.b32.xlu0 %v3638, 64
        %v4072 = vpop.permute.xlu0 %4071
        %4073 = vrot.lane.b32.xlu0 %v3644, 64
        %v4074 = vpop.permute.xlu0 %4073
        %4075 = vrot.lane.b32.xlu0 %v3650, 64
        %v4076 = vpop.permute.xlu0 %4075
        %4077 = vrot.lane.b32.xlu0 %v3656, 64
        %v4078 = vpop.permute.xlu0 %4077
        %4079 = vrot.lane.b32.xlu0 %v3662, 64
        %v4080 = vpop.permute.xlu0 %4079
        %4081 = vrot.lane.b32.xlu0 %v3668, 64
        %v4082 = vpop.permute.xlu0 %4081
        %4083 = vrot.lane.b32.xlu0 %v3674, 64
        %v4084 = vpop.permute.xlu0 %4083
        %4085 = vrot.lane.b32.xlu0 %v3680, 64
        %v4086 = vpop.permute.xlu0 %4085
        %v4088 = vsel %vm3696, %v4062, 0
        %v4091 = vsel %vm3696, %v4072, 0
        %v4094 = vsel %vm3696, %v4074, 0
        %v4097 = vsel %vm3696, %v4076, 0
        %v4100 = vsel %vm3696, %v4078, 0
        %v4103 = vsel %vm3696, %v4080, 0
        %v4106 = vsel %vm3696, %v4082, 0
        %v4109 = vsel %vm3696, %v4084, 0
        %v4112 = vsel %vm3696, %v4086, 0
        %4114 = vmatprep.subr.bf16.mxu0 0
        %4115 = vmatpush1.bf16.xpose.msra.mxu0 %v4091
        %4116 = vmatprep.subr.bf16.mxu0 0
        %4117 = vmatpush1.bf16.xpose.msra.mxu0 %v4094
        %4118 = vmatprep.subr.bf16.mxu0 0
        %4119 = vmatpush1.bf16.xpose.msra.mxu0 %v4097
        %4120 = vmatprep.subr.bf16.mxu0 0
        %4121 = vmatpush1.bf16.xpose.msra.mxu0 %v4100
        %4122 = vmatprep.subr.bf16.mxu0 0
        %4123 = vmatpush1.bf16.xpose.msra.mxu0 %v4103
        %4124 = vmatprep.subr.bf16.mxu0 0
        %4125 = vmatpush1.bf16.xpose.msra.mxu0 %v4106
        %4126 = vmatprep.subr.bf16.mxu0 0
        %4127 = vmatpush1.bf16.xpose.msra.mxu0 %v4109
        %4128 = vmatprep.subr.bf16.mxu0 0
        %4129 = vmatpush1.bf16.xpose.msra.mxu0 %v4112
        %4130 = vmatprep.subr.bf16.mxu0 0
        %4131 = vmatpush1.bf16.xpose.msra.mxu0 0
        %4132 = vmatprep.subr.bf16.mxu0 0
        %4133 = vmatpush1.bf16.xpose.msra.mxu0 0
        %4134 = vmatprep.subr.bf16.mxu0 0
        %4135 = vmatpush1.bf16.xpose.msra.mxu0 0
        %4136 = vmatprep.subr.bf16.mxu0 0
        %4137 = vmatpush1.bf16.xpose.msra.mxu0 0
        %4138 = vmatprep.subr.bf16.mxu0 0
        %4139 = vmatpush1.bf16.xpose.msra.mxu0 0
        %4140 = vmatprep.subr.bf16.mxu0 0
        %4141 = vmatpush1.bf16.xpose.msra.mxu0 0
        %4142 = vmatprep.subr.bf16.mxu0 0
        %4143 = vmatpush1.bf16.xpose.msra.mxu0 0
        %4144 = vmatprep.subr.bf16.mxu0 0
        %4145 = vmatpush1.bf16.xpose.msra.mxu0 0
        %4146 = vmatprep.mubr.bf16.mxu0 0
        %4147 = vmatmul.mubr.bf16.gmra.mrb[0].mxu0 %v4088
        %v4148 = vpop.f32.mrb[0].mxu0
        %v4149 = vadd.f32 0.0, %v4148
        %v4150 = vpop.f32.mrb[0].mxu0
        %v4151 = vpop.f32.mrb[0].mxu0
        %v4152 = vadd.f32 0.0, %v4151
        %v4153 = vpop.f32.mrb[0].mxu0
        %4154 = vdwg.mxu0
        %v4155 = vsel %vm3835, %v4054, -1e+30
        %v4156 = vsel %vm3836, %v4057, -1e+30
        %v4157 = vsel %vm3835, %v4149, -1e+30
        %v4158 = vsel %vm3836, %v4152, -1e+30
        %4159 = vmax.xlane.f32.xlu0 %v4155
        %v4160 = vpop.xlane.xlu0 %4159
        %4161 = vmax.xlane.f32.xlu0 %v4156
        %v4162 = vpop.xlane.xlu0 %4161
        %4163 = vmax.xlane.f32.xlu0 %v4157
        %v4164 = vpop.xlane.xlu0 %4163
        %4165 = vmax.xlane.f32.xlu0 %v4158
        %v4166 = vpop.xlane.xlu0 %4165
        %v4167 = vsub.f32 %v4155, %v4160
        %v4168 = vsub.f32 %v4156, %v4162
        %v4169 = vsub.f32 %v4157, %v4164
        %v4170 = vsub.f32 %v4158, %v4166
        %v4171 = vmul.f32 %v4167, 1.442695
        %v4172 = vpow.pop %v4171
        %v4173 = vmul.f32 %v4168, 1.442695
        %v4174 = vpow.pop %v4173
        %v4175 = vmul.f32 %v4169, 1.442695
        %v4176 = vpow.pop %v4175
        %v4177 = vmul.f32 %v4170, 1.442695
        %v4178 = vpow.pop %v4177
        %4179 = vadd.xlane.f32.xlu0 %v4172
        %v4180 = vpop.xlane.xlu0 %4179
        %4181 = vadd.xlane.f32.xlu0 %v4174
        %v4182 = vpop.xlane.xlu0 %4181
        %4183 = vadd.xlane.f32.xlu0 %v4176
        %v4184 = vpop.xlane.xlu0 %4183
        %4185 = vadd.xlane.f32.xlu0 %v4178
        %v4186 = vpop.xlane.xlu0 %4185
        %v4187 = vpack.c.bf16 %v4174, %v4172
        %v4188 = vpack.c.bf16 %v4178, %v4176
        %4197 = vrot.lane.b32.xlu0 %v3590, 64
        %v4198 = vpop.permute.xlu0 %4197
        %4199 = vrot.lane.b32.xlu0 %v3596, 64
        %v4200 = vpop.permute.xlu0 %4199
        %4201 = vrot.lane.b32.xlu0 %v3602, 64
        %v4202 = vpop.permute.xlu0 %4201
        %4203 = vrot.lane.b32.xlu0 %v3608, 64
        %v4204 = vpop.permute.xlu0 %4203
        %4205 = vrot.lane.b32.xlu0 %v3614, 64
        %v4206 = vpop.permute.xlu0 %4205
        %4207 = vrot.lane.b32.xlu0 %v3620, 64
        %v4208 = vpop.permute.xlu0 %4207
        %4209 = vrot.lane.b32.xlu0 %v3626, 64
        %v4210 = vpop.permute.xlu0 %4209
        %4211 = vrot.lane.b32.xlu0 %v3632, 64
        %v4212 = vpop.permute.xlu0 %4211
        %4221 = vmatprep.subr.bf16.mxu0 0
        %4222 = vmatpush1.bf16.msra.mxu0 %v4198
        %4223 = vmatprep.subr.bf16.mxu0 0
        %4224 = vmatpush1.bf16.msra.mxu0 %v4200
        %4225 = vmatprep.subr.bf16.mxu0 0
        %4226 = vmatpush1.bf16.msra.mxu0 %v4202
        %4227 = vmatprep.subr.bf16.mxu0 0
        %4228 = vmatpush1.bf16.msra.mxu0 %v4204
        %4229 = vmatprep.subr.bf16.mxu0 0
        %4230 = vmatpush1.bf16.msra.mxu0 %v4206
        %4231 = vmatprep.subr.bf16.mxu0 0
        %4232 = vmatpush1.bf16.msra.mxu0 %v4208
        %4233 = vmatprep.subr.bf16.mxu0 0
        %4234 = vmatpush1.bf16.msra.mxu0 %v4210
        %4235 = vmatprep.subr.bf16.mxu0 0
        %4236 = vmatpush1.bf16.msra.mxu0 %v4212
        %4237 = vmatprep.subr.bf16.mxu0 0
        %4238 = vmatpush1.bf16.msra.mxu0 0
        %4239 = vmatprep.subr.bf16.mxu0 0
        %4240 = vmatpush1.bf16.msra.mxu0 0
        %4241 = vmatprep.subr.bf16.mxu0 0
        %4242 = vmatpush1.bf16.msra.mxu0 0
        %4243 = vmatprep.subr.bf16.mxu0 0
        %4244 = vmatpush1.bf16.msra.mxu0 0
        %4245 = vmatprep.subr.bf16.mxu0 0
        %4246 = vmatpush1.bf16.msra.mxu0 0
        %4247 = vmatprep.subr.bf16.mxu0 0
        %4248 = vmatpush1.bf16.msra.mxu0 0
        %4249 = vmatprep.subr.bf16.mxu0 0
        %4250 = vmatpush1.bf16.msra.mxu0 0
        %4251 = vmatprep.subr.bf16.mxu0 0
        %4252 = vmatpush1.bf16.msra.mxu0 0
        %4253 = vmatprep.mubr.bf16.mxu0 0
        %4254 = vmatmul.mubr.bf16.gmra.mrb[0].mxu0 %v4187
        %v4255 = vpop.f32.mrb[0].mxu0
        %v4256 = vadd.f32 0.0, %v4255
        %v4257 = vpop.f32.mrb[0].mxu0
        %v4258 = vpop.f32.mrb[0].mxu0
        %v4259 = vadd.f32 0.0, %v4258
        %v4260 = vpop.f32.mrb[0].mxu0
        %4261 = vdwg.mxu0
        %4270 = vrot.lane.b32.xlu0 %v3641, 64
        %v4271 = vpop.permute.xlu0 %4270
        %4272 = vrot.lane.b32.xlu0 %v3647, 64
        %v4273 = vpop.permute.xlu0 %4272
        %4274 = vrot.lane.b32.xlu0 %v3653, 64
        %v4275 = vpop.permute.xlu0 %4274
        %4276 = vrot.lane.b32.xlu0 %v3659, 64
        %v4277 = vpop.permute.xlu0 %4276
        %4278 = vrot.lane.b32.xlu0 %v3665, 64
        %v4279 = vpop.permute.xlu0 %4278
        %4280 = vrot.lane.b32.xlu0 %v3671, 64
        %v4281 = vpop.permute.xlu0 %4280
        %4282 = vrot.lane.b32.xlu0 %v3677, 64
        %v4283 = vpop.permute.xlu0 %4282
        %4284 = vrot.lane.b32.xlu0 %v3683, 64
        %v4285 = vpop.permute.xlu0 %4284
        %4294 = vmatprep.subr.bf16.mxu0 0
        %4295 = vmatpush1.bf16.msra.mxu0 %v4271
        %4296 = vmatprep.subr.bf16.mxu0 0
        %4297 = vmatpush1.bf16.msra.mxu0 %v4273
        %4298 = vmatprep.subr.bf16.mxu0 0
        %4299 = vmatpush1.bf16.msra.mxu0 %v4275
        %4300 = vmatprep.subr.bf16.mxu0 0
        %4301 = vmatpush1.bf16.msra.mxu0 %v4277
        %4302 = vmatprep.subr.bf16.mxu0 0
        %4303 = vmatpush1.bf16.msra.mxu0 %v4279
        %4304 = vmatprep.subr.bf16.mxu0 0
        %4305 = vmatpush1.bf16.msra.mxu0 %v4281
        %4306 = vmatprep.subr.bf16.mxu0 0
        %4307 = vmatpush1.bf16.msra.mxu0 %v4283
        %4308 = vmatprep.subr.bf16.mxu0 0
        %4309 = vmatpush1.bf16.msra.mxu0 %v4285
        %4310 = vmatprep.subr.bf16.mxu0 0
        %4311 = vmatpush1.bf16.msra.mxu0 0
        %4312 = vmatprep.subr.bf16.mxu0 0
        %4313 = vmatpush1.bf16.msra.mxu0 0
        %4314 = vmatprep.subr.bf16.mxu0 0
        %4315 = vmatpush1.bf16.msra.mxu0 0
        %4316 = vmatprep.subr.bf16.mxu0 0
        %4317 = vmatpush1.bf16.msra.mxu0 0
        %4318 = vmatprep.subr.bf16.mxu0 0
        %4319 = vmatpush1.bf16.msra.mxu0 0
        %4320 = vmatprep.subr.bf16.mxu0 0
        %4321 = vmatpush1.bf16.msra.mxu0 0
        %4322 = vmatprep.subr.bf16.mxu0 0
        %4323 = vmatpush1.bf16.msra.mxu0 0
        %4324 = vmatprep.subr.bf16.mxu0 0
        %4325 = vmatpush1.bf16.msra.mxu0 0
        %4326 = vmatprep.mubr.bf16.mxu0 0
        %4327 = vmatmul.mubr.bf16.gmra.mrb[0].mxu0 %v4188
        %v4328 = vpop.f32.mrb[0].mxu0
        %v4329 = vadd.f32 0.0, %v4328
        %v4330 = vpop.f32.mrb[0].mxu0
        %v4331 = vpop.f32.mrb[0].mxu0
        %v4332 = vadd.f32 0.0, %v4331
        %v4333 = vpop.f32.mrb[0].mxu0
        %4334 = vdwg.mxu0
        %v4335 = vrcp.pop %v4180
        %v4336 = vrcp.pop %v4182
        %v4337 = vrcp.pop %v4184
        %v4338 = vrcp.pop %v4186
        %v4339 = vmul.f32 %v4256, %v4335
        %v4340 = vmul.f32 %v4259, %v4336
        %v4341 = vmul.f32 %v4329, %v4337
        %v4342 = vmul.f32 %v4332, %v4338
        %v4343 = vpack.c.bf16 %v4340, %v4339
        %v4344 = vpack.c.bf16 %v4342, %v4341
        %4347 = vrot.lane.b32.xlu0 %v4343, 64
        %v4348 = vpop.permute.xlu0 %4347
        %4349 = vrot.lane.b32.xlu0 %v4344, 64
        %v4350 = vpop.permute.xlu0 %4349
        %vm4353 = vcmask 1048064
        %4354 = vst.msk [vmem:[#allocation2] sm:$0xff] %vm4353, %v4348
        %4355 = vst.msk [vmem:[#allocation2 + $0x18] sm:$0xff] %vm4353, %v4350
        %v4357 = vsel %vm3696, %v3585, 0
        %v4360 = vsel %vm3696, %v3588, 0
        %v4363 = vsel %vm3696, %v3594, 0
        %v4366 = vsel %vm3696, %v3600, 0
        %v4369 = vsel %vm3696, %v3606, 0
        %v4372 = vsel %vm3696, %v3612, 0
        %v4375 = vsel %vm3696, %v3618, 0
        %v4378 = vsel %vm3696, %v3624, 0
        %v4381 = vsel %vm3696, %v3630, 0
        %4383 = vmatprep.subr.bf16.mxu0 0
        %4384 = vmatpush1.bf16.xpose.msra.mxu0 %v4360
        %4385 = vmatprep.subr.bf16.mxu0 0
        %4386 = vmatpush1.bf16.xpose.msra.mxu0 %v4363
        %4387 = vmatprep.subr.bf16.mxu0 0
        %4388 = vmatpush1.bf16.xpose.msra.mxu0 %v4366
        %4389 = vmatprep.subr.bf16.mxu0 0
        %4390 = vmatpush1.bf16.xpose.msra.mxu0 %v4369
        %4391 = vmatprep.subr.bf16.mxu0 0
        %4392 = vmatpush1.bf16.xpose.msra.mxu0 %v4372
        %4393 = vmatprep.subr.bf16.mxu0 0
        %4394 = vmatpush1.bf16.xpose.msra.mxu0 %v4375
        %4395 = vmatprep.subr.bf16.mxu0 0
        %4396 = vmatpush1.bf16.xpose.msra.mxu0 %v4378
        %4397 = vmatprep.subr.bf16.mxu0 0
        %4398 = vmatpush1.bf16.xpose.msra.mxu0 %v4381
        %4399 = vmatprep.subr.bf16.mxu0 0
        %4400 = vmatpush1.bf16.xpose.msra.mxu0 0
        %4401 = vmatprep.subr.bf16.mxu0 0
        %4402 = vmatpush1.bf16.xpose.msra.mxu0 0
        %4403 = vmatprep.subr.bf16.mxu0 0
        %4404 = vmatpush1.bf16.xpose.msra.mxu0 0
        %4405 = vmatprep.subr.bf16.mxu0 0
        %4406 = vmatpush1.bf16.xpose.msra.mxu0 0
        %4407 = vmatprep.subr.bf16.mxu0 0
        %4408 = vmatpush1.bf16.xpose.msra.mxu0 0
        %4409 = vmatprep.subr.bf16.mxu0 0
        %4410 = vmatpush1.bf16.xpose.msra.mxu0 0
        %4411 = vmatprep.subr.bf16.mxu0 0
        %4412 = vmatpush1.bf16.xpose.msra.mxu0 0
        %4413 = vmatprep.subr.bf16.mxu0 0
        %4414 = vmatpush1.bf16.xpose.msra.mxu0 0
        %4415 = vmatprep.mubr.bf16.mxu0 0
        %4416 = vmatmul.mubr.bf16.gmra.mrb[0].mxu0 %v4357
        %v4417 = vpop.f32.mrb[0].mxu0
        %v4418 = vadd.f32 0.0, %v4417
        %v4419 = vpop.f32.mrb[0].mxu0
        %v4420 = vpop.f32.mrb[0].mxu0
        %v4421 = vadd.f32 0.0, %v4420
        %v4422 = vpop.f32.mrb[0].mxu0
        %4423 = vdwg.mxu0
        %v4425 = vsel %vm3696, %v3636, 0
        %v4428 = vsel %vm3696, %v3639, 0
        %v4431 = vsel %vm3696, %v3645, 0
        %v4434 = vsel %vm3696, %v3651, 0
        %v4437 = vsel %vm3696, %v3657, 0
        %v4440 = vsel %vm3696, %v3663, 0
        %v4443 = vsel %vm3696, %v3669, 0
        %v4446 = vsel %vm3696, %v3675, 0
        %v4449 = vsel %vm3696, %v3681, 0
        %4451 = vmatprep.subr.bf16.mxu0 0
        %4452 = vmatpush1.bf16.xpose.msra.mxu0 %v4428
        %4453 = vmatprep.subr.bf16.mxu0 0
        %4454 = vmatpush1.bf16.xpose.msra.mxu0 %v4431
        %4455 = vmatprep.subr.bf16.mxu0 0
        %4456 = vmatpush1.bf16.xpose.msra.mxu0 %v4434
        %4457 = vmatprep.subr.bf16.mxu0 0
        %4458 = vmatpush1.bf16.xpose.msra.mxu0 %v4437
        %4459 = vmatprep.subr.bf16.mxu0 0
        %4460 = vmatpush1.bf16.xpose.msra.mxu0 %v4440
        %4461 = vmatprep.subr.bf16.mxu0 0
        %4462 = vmatpush1.bf16.xpose.msra.mxu0 %v4443
        %4463 = vmatprep.subr.bf16.mxu0 0
        %4464 = vmatpush1.bf16.xpose.msra.mxu0 %v4446
        %4465 = vmatprep.subr.bf16.mxu0 0
        %4466 = vmatpush1.bf16.xpose.msra.mxu0 %v4449
        %4467 = vmatprep.subr.bf16.mxu0 0
        %4468 = vmatpush1.bf16.xpose.msra.mxu0 0
        %4469 = vmatprep.subr.bf16.mxu0 0
        %4470 = vmatpush1.bf16.xpose.msra.mxu0 0
        %4471 = vmatprep.subr.bf16.mxu0 0
        %4472 = vmatpush1.bf16.xpose.msra.mxu0 0
        %4473 = vmatprep.subr.bf16.mxu0 0
        %4474 = vmatpush1.bf16.xpose.msra.mxu0 0
        %4475 = vmatprep.subr.bf16.mxu0 0
        %4476 = vmatpush1.bf16.xpose.msra.mxu0 0
        %4477 = vmatprep.subr.bf16.mxu0 0
        %4478 = vmatpush1.bf16.xpose.msra.mxu0 0
        %4479 = vmatprep.subr.bf16.mxu0 0
        %4480 = vmatpush1.bf16.xpose.msra.mxu0 0
        %4481 = vmatprep.subr.bf16.mxu0 0
        %4482 = vmatpush1.bf16.xpose.msra.mxu0 0
        %4483 = vmatprep.mubr.bf16.mxu0 0
        %4484 = vmatmul.mubr.bf16.gmra.mrb[0].mxu0 %v4425
        %v4485 = vpop.f32.mrb[0].mxu0
        %v4486 = vadd.f32 0.0, %v4485
        %v4487 = vpop.f32.mrb[0].mxu0
        %v4488 = vpop.f32.mrb[0].mxu0
        %v4489 = vadd.f32 0.0, %v4488
        %v4490 = vpop.f32.mrb[0].mxu0
        %4491 = vdwg.mxu0
        %v4492 = vsel %vm3835, %v4418, -1e+30
        %v4493 = vsel %vm3836, %v4421, -1e+30
        %v4494 = vsel %vm3835, %v4486, -1e+30
        %v4495 = vsel %vm3836, %v4489, -1e+30
        %4496 = vmax.xlane.f32.xlu0 %v4492
        %v4497 = vpop.xlane.xlu0 %4496
        %4498 = vmax.xlane.f32.xlu0 %v4493
        %v4499 = vpop.xlane.xlu0 %4498
        %4500 = vmax.xlane.f32.xlu0 %v4494
        %v4501 = vpop.xlane.xlu0 %4500
        %4502 = vmax.xlane.f32.xlu0 %v4495
        %v4503 = vpop.xlane.xlu0 %4502
        %v4504 = vsub.f32 %v4492, %v4497
        %v4505 = vsub.f32 %v4493, %v4499
        %v4506 = vsub.f32 %v4494, %v4501
        %v4507 = vsub.f32 %v4495, %v4503
        %v4508 = vmul.f32 %v4504, 1.442695
        %v4509 = vpow.pop %v4508
        %v4510 = vmul.f32 %v4505, 1.442695
        %v4511 = vpow.pop %v4510
        %v4512 = vmul.f32 %v4506, 1.442695
        %v4513 = vpow.pop %v4512
        %v4514 = vmul.f32 %v4507, 1.442695
        %v4515 = vpow.pop %v4514
        %4516 = vadd.xlane.f32.xlu0 %v4509
        %v4517 = vpop.xlane.xlu0 %4516
        %4518 = vadd.xlane.f32.xlu0 %v4511
        %v4519 = vpop.xlane.xlu0 %4518
        %4520 = vadd.xlane.f32.xlu0 %v4513
        %v4521 = vpop.xlane.xlu0 %4520
        %4522 = vadd.xlane.f32.xlu0 %v4515
        %v4523 = vpop.xlane.xlu0 %4522
        %v4524 = vpack.c.bf16 %v4511, %v4509
        %v4525 = vpack.c.bf16 %v4515, %v4513
        %4526 = vmatprep.subr.bf16.mxu0 0
        %4527 = vmatpush1.bf16.msra.mxu0 %v3591
        %4528 = vmatprep.subr.bf16.mxu0 0
        %4529 = vmatpush1.bf16.msra.mxu0 %v3597
        %4530 = vmatprep.subr.bf16.mxu0 0
        %4531 = vmatpush1.bf16.msra.mxu0 %v3603
        %4532 = vmatprep.subr.bf16.mxu0 0
        %4533 = vmatpush1.bf16.msra.mxu0 %v3609
        %4534 = vmatprep.subr.bf16.mxu0 0
        %4535 = vmatpush1.bf16.msra.mxu0 %v3615
        %4536 = vmatprep.subr.bf16.mxu0 0
        %4537 = vmatpush1.bf16.msra.mxu0 %v3621
        %4538 = vmatprep.subr.bf16.mxu0 0
        %4539 = vmatpush1.bf16.msra.mxu0 %v3627
        %4540 = vmatprep.subr.bf16.mxu0 0
        %4541 = vmatpush1.bf16.msra.mxu0 %v3633
        %4542 = vmatprep.subr.bf16.mxu0 0
        %4543 = vmatpush1.bf16.msra.mxu0 0
        %4544 = vmatprep.subr.bf16.mxu0 0
        %4545 = vmatpush1.bf16.msra.mxu0 0
        %4546 = vmatprep.subr.bf16.mxu0 0
        %4547 = vmatpush1.bf16.msra.mxu0 0
        %4548 = vmatprep.subr.bf16.mxu0 0
        %4549 = vmatpush1.bf16.msra.mxu0 0
        %4550 = vmatprep.subr.bf16.mxu0 0
        %4551 = vmatpush1.bf16.msra.mxu0 0
        %4552 = vmatprep.subr.bf16.mxu0 0
        %4553 = vmatpush1.bf16.msra.mxu0 0
        %4554 = vmatprep.subr.bf16.mxu0 0
        %4555 = vmatpush1.bf16.msra.mxu0 0
        %4556 = vmatprep.subr.bf16.mxu0 0
        %4557 = vmatpush1.bf16.msra.mxu0 0
        %4558 = vmatprep.mubr.bf16.mxu0 0
        %4559 = vmatmul.mubr.bf16.gmra.mrb[0].mxu0 %v4524
        %v4560 = vpop.f32.mrb[0].mxu0
        %v4561 = vadd.f32 0.0, %v4560
        %v4562 = vpop.f32.mrb[0].mxu0
        %v4563 = vpop.f32.mrb[0].mxu0
        %v4564 = vadd.f32 0.0, %v4563
        %v4565 = vpop.f32.mrb[0].mxu0
        %4566 = vdwg.mxu0
        %4567 = vmatprep.subr.bf16.mxu0 0
        %4568 = vmatpush1.bf16.msra.mxu0 %v3642
        %4569 = vmatprep.subr.bf16.mxu0 0
        %4570 = vmatpush1.bf16.msra.mxu0 %v3648
        %4571 = vmatprep.subr.bf16.mxu0 0
        %4572 = vmatpush1.bf16.msra.mxu0 %v3654
        %4573 = vmatprep.subr.bf16.mxu0 0
        %4574 = vmatpush1.bf16.msra.mxu0 %v3660
        %4575 = vmatprep.subr.bf16.mxu0 0
        %4576 = vmatpush1.bf16.msra.mxu0 %v3666
        %4577 = vmatprep.subr.bf16.mxu0 0
        %4578 = vmatpush1.bf16.msra.mxu0 %v3672
        %4579 = vmatprep.subr.bf16.mxu0 0
        %4580 = vmatpush1.bf16.msra.mxu0 %v3678
        %4581 = vmatprep.subr.bf16.mxu0 0
        %4582 = vmatpush1.bf16.msra.mxu0 %v3684
        %4583 = vmatprep.subr.bf16.mxu0 0
        %4584 = vmatpush1.bf16.msra.mxu0 0
        %4585 = vmatprep.subr.bf16.mxu0 0
        %4586 = vmatpush1.bf16.msra.mxu0 0
        %4587 = vmatprep.subr.bf16.mxu0 0
        %4588 = vmatpush1.bf16.msra.mxu0 0
        %4589 = vmatprep.subr.bf16.mxu0 0
        %4590 = vmatpush1.bf16.msra.mxu0 0
        %4591 = vmatprep.subr.bf16.mxu0 0
        %4592 = vmatpush1.bf16.msra.mxu0 0
        %4593 = vmatprep.subr.bf16.mxu0 0
        %4594 = vmatpush1.bf16.msra.mxu0 0
        %4595 = vmatprep.subr.bf16.mxu0 0
        %4596 = vmatpush1.bf16.msra.mxu0 0
        %4597 = vmatprep.subr.bf16.mxu0 0
        %4598 = vmatpush1.bf16.msra.mxu0 0
        %4599 = vmatprep.mubr.bf16.mxu0 0
        %4600 = vmatmul.mubr.bf16.gmra.mrb[0].mxu0 %v4525
        %v4601 = vpop.f32.mrb[0].mxu0
        %v4602 = vadd.f32 0.0, %v4601
        %v4603 = vpop.f32.mrb[0].mxu0
        %v4604 = vpop.f32.mrb[0].mxu0
        %v4605 = vadd.f32 0.0, %v4604
        %v4606 = vpop.f32.mrb[0].mxu0
        %4607 = vdwg.mxu0
        %v4608 = vrcp.pop %v4517
        %v4609 = vrcp.pop %v4519
        %v4610 = vrcp.pop %v4521
        %v4611 = vrcp.pop %v4523
        %v4612 = vmul.f32 %v4561, %v4608
        %v4613 = vmul.f32 %v4564, %v4609
        %v4614 = vmul.f32 %v4602, %v4610
        %v4615 = vmul.f32 %v4605, %v4611
        %v4616 = vpack.c.bf16 %v4613, %v4612
        %v4617 = vpack.c.bf16 %v4615, %v4614
        %4618 = vst.msk [vmem:[#allocation2 + $0x8] sm:$0xff] %vm3696, %v4616
        %4619 = vst.msk [vmem:[#allocation2 + $0x20] sm:$0xff] %vm3696, %v4617
        %4621 = vrot.lane.b32.xlu0 %v3585, 64
        %v4622 = vpop.permute.xlu0 %4621
        %4631 = vrot.lane.b32.xlu0 %v3588, 64
        %v4632 = vpop.permute.xlu0 %4631
        %4633 = vrot.lane.b32.xlu0 %v3594, 64
        %v4634 = vpop.permute.xlu0 %4633
        %4635 = vrot.lane.b32.xlu0 %v3600, 64
        %v4636 = vpop.permute.xlu0 %4635
        %4637 = vrot.lane.b32.xlu0 %v3606, 64
        %v4638 = vpop.permute.xlu0 %4637
        %4639 = vrot.lane.b32.xlu0 %v3612, 64
        %v4640 = vpop.permute.xlu0 %4639
        %4641 = vrot.lane.b32.xlu0 %v3618, 64
        %v4642 = vpop.permute.xlu0 %4641
        %4643 = vrot.lane.b32.xlu0 %v3624, 64
        %v4644 = vpop.permute.xlu0 %4643
        %4645 = vrot.lane.b32.xlu0 %v3630, 64
        %v4646 = vpop.permute.xlu0 %4645
        %v4648 = vsel %vm3696, %v4622, 0
        %v4651 = vsel %vm3696, %v4632, 0
        %v4654 = vsel %vm3696, %v4634, 0
        %v4657 = vsel %vm3696, %v4636, 0
        %v4660 = vsel %vm3696, %v4638, 0
        %v4663 = vsel %vm3696, %v4640, 0
        %v4666 = vsel %vm3696, %v4642, 0
        %v4669 = vsel %vm3696, %v4644, 0
        %v4672 = vsel %vm3696, %v4646, 0
        %4674 = vmatprep.subr.bf16.mxu0 0
        %4675 = vmatpush1.bf16.xpose.msra.mxu0 %v4651
        %4676 = vmatprep.subr.bf16.mxu0 0
        %4677 = vmatpush1.bf16.xpose.msra.mxu0 %v4654
        %4678 = vmatprep.subr.bf16.mxu0 0
        %4679 = vmatpush1.bf16.xpose.msra.mxu0 %v4657
        %4680 = vmatprep.subr.bf16.mxu0 0
        %4681 = vmatpush1.bf16.xpose.msra.mxu0 %v4660
        %4682 = vmatprep.subr.bf16.mxu0 0
        %4683 = vmatpush1.bf16.xpose.msra.mxu0 %v4663
        %4684 = vmatprep.subr.bf16.mxu0 0
        %4685 = vmatpush1.bf16.xpose.msra.mxu0 %v4666
        %4686 = vmatprep.subr.bf16.mxu0 0
        %4687 = vmatpush1.bf16.xpose.msra.mxu0 %v4669
        %4688 = vmatprep.subr.bf16.mxu0 0
        %4689 = vmatpush1.bf16.xpose.msra.mxu0 %v4672
        %4690 = vmatprep.subr.bf16.mxu0 0
        %4691 = vmatpush1.bf16.xpose.msra.mxu0 0
        %4692 = vmatprep.subr.bf16.mxu0 0
        %4693 = vmatpush1.bf16.xpose.msra.mxu0 0
        %4694 = vmatprep.subr.bf16.mxu0 0
        %4695 = vmatpush1.bf16.xpose.msra.mxu0 0
        %4696 = vmatprep.subr.bf16.mxu0 0
        %4697 = vmatpush1.bf16.xpose.msra.mxu0 0
        %4698 = vmatprep.subr.bf16.mxu0 0
        %4699 = vmatpush1.bf16.xpose.msra.mxu0 0
        %4700 = vmatprep.subr.bf16.mxu0 0
        %4701 = vmatpush1.bf16.xpose.msra.mxu0 0
        %4702 = vmatprep.subr.bf16.mxu0 0
        %4703 = vmatpush1.bf16.xpose.msra.mxu0 0
        %4704 = vmatprep.subr.bf16.mxu0 0
        %4705 = vmatpush1.bf16.xpose.msra.mxu0 0
        %4706 = vmatprep.mubr.bf16.mxu0 0
        %4707 = vmatmul.mubr.bf16.gmra.mrb[0].mxu0 %v4648
        %v4708 = vpop.f32.mrb[0].mxu0
        %v4709 = vadd.f32 0.0, %v4708
        %v4710 = vpop.f32.mrb[0].mxu0
        %v4711 = vpop.f32.mrb[0].mxu0
        %v4712 = vadd.f32 0.0, %v4711
        %v4713 = vpop.f32.mrb[0].mxu0
        %4714 = vdwg.mxu0
        %4716 = vrot.lane.b32.xlu0 %v3636, 64
        %v4717 = vpop.permute.xlu0 %4716
        %4726 = vrot.lane.b32.xlu0 %v3639, 64
        %v4727 = vpop.permute.xlu0 %4726
        %4728 = vrot.lane.b32.xlu0 %v3645, 64
        %v4729 = vpop.permute.xlu0 %4728
        %4730 = vrot.lane.b32.xlu0 %v3651, 64
        %v4731 = vpop.permute.xlu0 %4730
        %4732 = vrot.lane.b32.xlu0 %v3657, 64
        %v4733 = vpop.permute.xlu0 %4732
        %4734 = vrot.lane.b32.xlu0 %v3663, 64
        %v4735 = vpop.permute.xlu0 %4734
        %4736 = vrot.lane.b32.xlu0 %v3669, 64
        %v4737 = vpop.permute.xlu0 %4736
        %4738 = vrot.lane.b32.xlu0 %v3675, 64
        %v4739 = vpop.permute.xlu0 %4738
        %4740 = vrot.lane.b32.xlu0 %v3681, 64
        %v4741 = vpop.permute.xlu0 %4740
        %v4743 = vsel %vm3696, %v4717, 0
        %v4746 = vsel %vm3696, %v4727, 0
        %v4749 = vsel %vm3696, %v4729, 0
        %v4752 = vsel %vm3696, %v4731, 0
        %v4755 = vsel %vm3696, %v4733, 0
        %v4758 = vsel %vm3696, %v4735, 0
        %v4761 = vsel %vm3696, %v4737, 0
        %v4764 = vsel %vm3696, %v4739, 0
        %v4767 = vsel %vm3696, %v4741, 0
        %4769 = vmatprep.subr.bf16.mxu0 0
        %4770 = vmatpush1.bf16.xpose.msra.mxu0 %v4746
        %4771 = vmatprep.subr.bf16.mxu0 0
        %4772 = vmatpush1.bf16.xpose.msra.mxu0 %v4749
        %4773 = vmatprep.subr.bf16.mxu0 0
        %4774 = vmatpush1.bf16.xpose.msra.mxu0 %v4752
        %4775 = vmatprep.subr.bf16.mxu0 0
        %4776 = vmatpush1.bf16.xpose.msra.mxu0 %v4755
        %4777 = vmatprep.subr.bf16.mxu0 0
        %4778 = vmatpush1.bf16.xpose.msra.mxu0 %v4758
        %4779 = vmatprep.subr.bf16.mxu0 0
        %4780 = vmatpush1.bf16.xpose.msra.mxu0 %v4761
        %4781 = vmatprep.subr.bf16.mxu0 0
        %4782 = vmatpush1.bf16.xpose.msra.mxu0 %v4764
        %4783 = vmatprep.subr.bf16.mxu0 0
        %4784 = vmatpush1.bf16.xpose.msra.mxu0 %v4767
        %4785 = vmatprep.subr.bf16.mxu0 0
        %4786 = vmatpush1.bf16.xpose.msra.mxu0 0
        %4787 = vmatprep.subr.bf16.mxu0 0
        %4788 = vmatpush1.bf16.xpose.msra.mxu0 0
        %4789 = vmatprep.subr.bf16.mxu0 0
        %4790 = vmatpush1.bf16.xpose.msra.mxu0 0
        %4791 = vmatprep.subr.bf16.mxu0 0
        %4792 = vmatpush1.bf16.xpose.msra.mxu0 0
        %4793 = vmatprep.subr.bf16.mxu0 0
        %4794 = vmatpush1.bf16.xpose.msra.mxu0 0
        %4795 = vmatprep.subr.bf16.mxu0 0
        %4796 = vmatpush1.bf16.xpose.msra.mxu0 0
        %4797 = vmatprep.subr.bf16.mxu0 0
        %4798 = vmatpush1.bf16.xpose.msra.mxu0 0
        %4799 = vmatprep.subr.bf16.mxu0 0
        %4800 = vmatpush1.bf16.xpose.msra.mxu0 0
        %4801 = vmatprep.mubr.bf16.mxu0 0
        %4802 = vmatmul.mubr.bf16.gmra.mrb[0].mxu0 %v4743
        %v4803 = vpop.f32.mrb[0].mxu0
        %v4804 = vadd.f32 0.0, %v4803
        %v4805 = vpop.f32.mrb[0].mxu0
        %v4806 = vpop.f32.mrb[0].mxu0
        %v4807 = vadd.f32 0.0, %v4806
        %v4808 = vpop.f32.mrb[0].mxu0
        %4809 = vdwg.mxu0
        %v4810 = vsel %vm3835, %v4709, -1e+30
        %v4811 = vsel %vm3836, %v4712, -1e+30
        %v4812 = vsel %vm3835, %v4804, -1e+30
        %v4813 = vsel %vm3836, %v4807, -1e+30
        %4814 = vmax.xlane.f32.xlu0 %v4810
        %v4815 = vpop.xlane.xlu0 %4814
        %4816 = vmax.xlane.f32.xlu0 %v4811
        %v4817 = vpop.xlane.xlu0 %4816
        %4818 = vmax.xlane.f32.xlu0 %v4812
        %v4819 = vpop.xlane.xlu0 %4818
        %4820 = vmax.xlane.f32.xlu0 %v4813
        %v4821 = vpop.xlane.xlu0 %4820
        %v4822 = vsub.f32 %v4810, %v4815
        %v4823 = vsub.f32 %v4811, %v4817
        %v4824 = vsub.f32 %v4812, %v4819
        %v4825 = vsub.f32 %v4813, %v4821
        %v4826 = vmul.f32 %v4822, 1.442695
        %v4827 = vpow.pop %v4826
        %v4828 = vmul.f32 %v4823, 1.442695
        %v4829 = vpow.pop %v4828
        %v4830 = vmul.f32 %v4824, 1.442695
        %v4831 = vpow.pop %v4830
        %v4832 = vmul.f32 %v4825, 1.442695
        %v4833 = vpow.pop %v4832
        %4834 = vadd.xlane.f32.xlu0 %v4827
        %v4835 = vpop.xlane.xlu0 %4834
        %4836 = vadd.xlane.f32.xlu0 %v4829
        %v4837 = vpop.xlane.xlu0 %4836
        %4838 = vadd.xlane.f32.xlu0 %v4831
        %v4839 = vpop.xlane.xlu0 %4838
        %4840 = vadd.xlane.f32.xlu0 %v4833
        %v4841 = vpop.xlane.xlu0 %4840
        %v4842 = vpack.c.bf16 %v4829, %v4827
        %v4843 = vpack.c.bf16 %v4833, %v4831
        %4852 = vrot.lane.b32.xlu0 %v3591, 64
        %v4853 = vpop.permute.xlu0 %4852
        %4854 = vrot.lane.b32.xlu0 %v3597, 64
        %v4855 = vpop.permute.xlu0 %4854
        %4856 = vrot.lane.b32.xlu0 %v3603, 64
        %v4857 = vpop.permute.xlu0 %4856
        %4858 = vrot.lane.b32.xlu0 %v3609, 64
        %v4859 = vpop.permute.xlu0 %4858
        %4860 = vrot.lane.b32.xlu0 %v3615, 64
        %v4861 = vpop.permute.xlu0 %4860
        %4862 = vrot.lane.b32.xlu0 %v3621, 64
        %v4863 = vpop.permute.xlu0 %4862
        %4864 = vrot.lane.b32.xlu0 %v3627, 64
        %v4865 = vpop.permute.xlu0 %4864
        %4866 = vrot.lane.b32.xlu0 %v3633, 64
        %v4867 = vpop.permute.xlu0 %4866
        %4876 = vmatprep.subr.bf16.mxu0 0
        %4877 = vmatpush1.bf16.msra.mxu0 %v4853
        %4878 = vmatprep.subr.bf16.mxu0 0
        %4879 = vmatpush1.bf16.msra.mxu0 %v4855
        %4880 = vmatprep.subr.bf16.mxu0 0
        %4881 = vmatpush1.bf16.msra.mxu0 %v4857
        %4882 = vmatprep.subr.bf16.mxu0 0
        %4883 = vmatpush1.bf16.msra.mxu0 %v4859
        %4884 = vmatprep.subr.bf16.mxu0 0
        %4885 = vmatpush1.bf16.msra.mxu0 %v4861
        %4886 = vmatprep.subr.bf16.mxu0 0
        %4887 = vmatpush1.bf16.msra.mxu0 %v4863
        %4888 = vmatprep.subr.bf16.mxu0 0
        %4889 = vmatpush1.bf16.msra.mxu0 %v4865
        %4890 = vmatprep.subr.bf16.mxu0 0
        %4891 = vmatpush1.bf16.msra.mxu0 %v4867
        %4892 = vmatprep.subr.bf16.mxu0 0
        %4893 = vmatpush1.bf16.msra.mxu0 0
        %4894 = vmatprep.subr.bf16.mxu0 0
        %4895 = vmatpush1.bf16.msra.mxu0 0
        %4896 = vmatprep.subr.bf16.mxu0 0
        %4897 = vmatpush1.bf16.msra.mxu0 0
        %4898 = vmatprep.subr.bf16.mxu0 0
        %4899 = vmatpush1.bf16.msra.mxu0 0
        %4900 = vmatprep.subr.bf16.mxu0 0
        %4901 = vmatpush1.bf16.msra.mxu0 0
        %4902 = vmatprep.subr.bf16.mxu0 0
        %4903 = vmatpush1.bf16.msra.mxu0 0
        %4904 = vmatprep.subr.bf16.mxu0 0
        %4905 = vmatpush1.bf16.msra.mxu0 0
        %4906 = vmatprep.subr.bf16.mxu0 0
        %4907 = vmatpush1.bf16.msra.mxu0 0
        %4908 = vmatprep.mubr.bf16.mxu0 0
        %4909 = vmatmul.mubr.bf16.gmra.mrb[0].mxu0 %v4842
        %v4910 = vpop.f32.mrb[0].mxu0
        %v4911 = vadd.f32 0.0, %v4910
        %v4912 = vpop.f32.mrb[0].mxu0
        %v4913 = vpop.f32.mrb[0].mxu0
        %v4914 = vadd.f32 0.0, %v4913
        %v4915 = vpop.f32.mrb[0].mxu0
        %4916 = vdwg.mxu0
        %4925 = vrot.lane.b32.xlu0 %v3642, 64
        %v4926 = vpop.permute.xlu0 %4925
        %4927 = vrot.lane.b32.xlu0 %v3648, 64
        %v4928 = vpop.permute.xlu0 %4927
        %4929 = vrot.lane.b32.xlu0 %v3654, 64
        %v4930 = vpop.permute.xlu0 %4929
        %4931 = vrot.lane.b32.xlu0 %v3660, 64
        %v4932 = vpop.permute.xlu0 %4931
        %4933 = vrot.lane.b32.xlu0 %v3666, 64
        %v4934 = vpop.permute.xlu0 %4933
        %4935 = vrot.lane.b32.xlu0 %v3672, 64
        %v4936 = vpop.permute.xlu0 %4935
        %4937 = vrot.lane.b32.xlu0 %v3678, 64
        %v4938 = vpop.permute.xlu0 %4937
        %4939 = vrot.lane.b32.xlu0 %v3684, 64
        %v4940 = vpop.permute.xlu0 %4939
        %4949 = vmatprep.subr.bf16.mxu0 0
        %4950 = vmatpush1.bf16.msra.mxu0 %v4926
        %4951 = vmatprep.subr.bf16.mxu0 0
        %4952 = vmatpush1.bf16.msra.mxu0 %v4928
        %4953 = vmatprep.subr.bf16.mxu0 0
        %4954 = vmatpush1.bf16.msra.mxu0 %v4930
        %4955 = vmatprep.subr.bf16.mxu0 0
        %4956 = vmatpush1.bf16.msra.mxu0 %v4932
        %4957 = vmatprep.subr.bf16.mxu0 0
        %4958 = vmatpush1.bf16.msra.mxu0 %v4934
        %4959 = vmatprep.subr.bf16.mxu0 0
        %4960 = vmatpush1.bf16.msra.mxu0 %v4936
        %4961 = vmatprep.subr.bf16.mxu0 0
        %4962 = vmatpush1.bf16.msra.mxu0 %v4938
        %4963 = vmatprep.subr.bf16.mxu0 0
        %4964 = vmatpush1.bf16.msra.mxu0 %v4940
        %4965 = vmatprep.subr.bf16.mxu0 0
        %4966 = vmatpush1.bf16.msra.mxu0 0
        %4967 = vmatprep.subr.bf16.mxu0 0
        %4968 = vmatpush1.bf16.msra.mxu0 0
        %4969 = vmatprep.subr.bf16.mxu0 0
        %4970 = vmatpush1.bf16.msra.mxu0 0
        %4971 = vmatprep.subr.bf16.mxu0 0
        %4972 = vmatpush1.bf16.msra.mxu0 0
        %4973 = vmatprep.subr.bf16.mxu0 0
        %4974 = vmatpush1.bf16.msra.mxu0 0
        %4975 = vmatprep.subr.bf16.mxu0 0
        %4976 = vmatpush1.bf16.msra.mxu0 0
        %4977 = vmatprep.subr.bf16.mxu0 0
        %4978 = vmatpush1.bf16.msra.mxu0 0
        %4979 = vmatprep.subr.bf16.mxu0 0
        %4980 = vmatpush1.bf16.msra.mxu0 0
        %4981 = vmatprep.mubr.bf16.mxu0 0
        %4982 = vmatmul.mubr.bf16.gmra.mrb[0].mxu0 %v4843
        %v4983 = vpop.f32.mrb[0].mxu0
        %v4984 = vadd.f32 0.0, %v4983
        %v4985 = vpop.f32.mrb[0].mxu0
        %v4986 = vpop.f32.mrb[0].mxu0
        %v4987 = vadd.f32 0.0, %v4986
        %v4988 = vpop.f32.mrb[0].mxu0
        %4989 = vdwg.mxu0
        %v4990 = vrcp.pop %v4835
        %v4991 = vrcp.pop %v4837
        %v4992 = vrcp.pop %v4839
        %v4993 = vrcp.pop %v4841
        %v4994 = vmul.f32 %v4911, %v4990
        %v4995 = vmul.f32 %v4914, %v4991
        %v4996 = vmul.f32 %v4984, %v4992
        %v4997 = vmul.f32 %v4987, %v4993
        %v4998 = vpack.c.bf16 %v4995, %v4994
        %v4999 = vpack.c.bf16 %v4997, %v4996
        %5002 = vrot.lane.b32.xlu0 %v4998, 64
        %v5003 = vpop.permute.xlu0 %5002
        %5004 = vrot.lane.b32.xlu0 %v4999, 64
        %v5005 = vpop.permute.xlu0 %5004
        %5008 = vst.msk [vmem:[#allocation2 + $0x8] sm:$0xff] %vm4353, %v5003
        %5009 = vst.msk [vmem:[#allocation2 + $0x20] sm:$0xff] %vm4353, %v5005
        %v5011 = vsel %vm3696, %v3586, 0
        %v5014 = vsel %vm3696, %v3589, 0
        %v5017 = vsel %vm3696, %v3595, 0
        %v5020 = vsel %vm3696, %v3601, 0
        %v5023 = vsel %vm3696, %v3607, 0
        %v5026 = vsel %vm3696, %v3613, 0
        %v5029 = vsel %vm3696, %v3619, 0
        %v5032 = vsel %vm3696, %v3625, 0
        %v5035 = vsel %vm3696, %v3631, 0
        %5037 = vmatprep.subr.bf16.mxu0 0
        %5038 = vmatpush1.bf16.xpose.msra.mxu0 %v5014
        %5039 = vmatprep.subr.bf16.mxu0 0
        %5040 = vmatpush1.bf16.xpose.msra.mxu0 %v5017
        %5041 = vmatprep.subr.bf16.mxu0 0
        %5042 = vmatpush1.bf16.xpose.msra.mxu0 %v5020
        %5043 = vmatprep.subr.bf16.mxu0 0
        %5044 = vmatpush1.bf16.xpose.msra.mxu0 %v5023
        %5045 = vmatprep.subr.bf16.mxu0 0
        %5046 = vmatpush1.bf16.xpose.msra.mxu0 %v5026
        %5047 = vmatprep.subr.bf16.mxu0 0
        %5048 = vmatpush1.bf16.xpose.msra.mxu0 %v5029
        %5049 = vmatprep.subr.bf16.mxu0 0
        %5050 = vmatpush1.bf16.xpose.msra.mxu0 %v5032
        %5051 = vmatprep.subr.bf16.mxu0 0
        %5052 = vmatpush1.bf16.xpose.msra.mxu0 %v5035
        %5053 = vmatprep.subr.bf16.mxu0 0
        %5054 = vmatpush1.bf16.xpose.msra.mxu0 0
        %5055 = vmatprep.subr.bf16.mxu0 0
        %5056 = vmatpush1.bf16.xpose.msra.mxu0 0
        %5057 = vmatprep.subr.bf16.mxu0 0
        %5058 = vmatpush1.bf16.xpose.msra.mxu0 0
        %5059 = vmatprep.subr.bf16.mxu0 0
        %5060 = vmatpush1.bf16.xpose.msra.mxu0 0
        %5061 = vmatprep.subr.bf16.mxu0 0
        %5062 = vmatpush1.bf16.xpose.msra.mxu0 0
        %5063 = vmatprep.subr.bf16.mxu0 0
        %5064 = vmatpush1.bf16.xpose.msra.mxu0 0
        %5065 = vmatprep.subr.bf16.mxu0 0
        %5066 = vmatpush1.bf16.xpose.msra.mxu0 0
        %5067 = vmatprep.subr.bf16.mxu0 0
        %5068 = vmatpush1.bf16.xpose.msra.mxu0 0
        %5069 = vmatprep.mubr.bf16.mxu0 0
        %5070 = vmatmul.mubr.bf16.gmra.mrb[0].mxu0 %v5011
        %v5071 = vpop.f32.mrb[0].mxu0
        %v5072 = vadd.f32 0.0, %v5071
        %v5073 = vpop.f32.mrb[0].mxu0
        %v5074 = vpop.f32.mrb[0].mxu0
        %v5075 = vadd.f32 0.0, %v5074
        %v5076 = vpop.f32.mrb[0].mxu0
        %5077 = vdwg.mxu0
        %v5079 = vsel %vm3696, %v3637, 0
        %v5082 = vsel %vm3696, %v3640, 0
        %v5085 = vsel %vm3696, %v3646, 0
        %v5088 = vsel %vm3696, %v3652, 0
        %v5091 = vsel %vm3696, %v3658, 0
        %v5094 = vsel %vm3696, %v3664, 0
        %v5097 = vsel %vm3696, %v3670, 0
        %v5100 = vsel %vm3696, %v3676, 0
        %v5103 = vsel %vm3696, %v3682, 0
        %5105 = vmatprep.subr.bf16.mxu0 0
        %5106 = vmatpush1.bf16.xpose.msra.mxu0 %v5082
        %5107 = vmatprep.subr.bf16.mxu0 0
        %5108 = vmatpush1.bf16.xpose.msra.mxu0 %v5085
        %5109 = vmatprep.subr.bf16.mxu0 0
        %5110 = vmatpush1.bf16.xpose.msra.mxu0 %v5088
        %5111 = vmatprep.subr.bf16.mxu0 0
        %5112 = vmatpush1.bf16.xpose.msra.mxu0 %v5091
        %5113 = vmatprep.subr.bf16.mxu0 0
        %5114 = vmatpush1.bf16.xpose.msra.mxu0 %v5094
        %5115 = vmatprep.subr.bf16.mxu0 0
        %5116 = vmatpush1.bf16.xpose.msra.mxu0 %v5097
        %5117 = vmatprep.subr.bf16.mxu0 0
        %5118 = vmatpush1.bf16.xpose.msra.mxu0 %v5100
        %5119 = vmatprep.subr.bf16.mxu0 0
        %5120 = vmatpush1.bf16.xpose.msra.mxu0 %v5103
        %5121 = vmatprep.subr.bf16.mxu0 0
        %5122 = vmatpush1.bf16.xpose.msra.mxu0 0
        %5123 = vmatprep.subr.bf16.mxu0 0
        %5124 = vmatpush1.bf16.xpose.msra.mxu0 0
        %5125 = vmatprep.subr.bf16.mxu0 0
        %5126 = vmatpush1.bf16.xpose.msra.mxu0 0
        %5127 = vmatprep.subr.bf16.mxu0 0
        %5128 = vmatpush1.bf16.xpose.msra.mxu0 0
        %5129 = vmatprep.subr.bf16.mxu0 0
        %5130 = vmatpush1.bf16.xpose.msra.mxu0 0
        %5131 = vmatprep.subr.bf16.mxu0 0
        %5132 = vmatpush1.bf16.xpose.msra.mxu0 0
        %5133 = vmatprep.subr.bf16.mxu0 0
        %5134 = vmatpush1.bf16.xpose.msra.mxu0 0
        %5135 = vmatprep.subr.bf16.mxu0 0
        %5136 = vmatpush1.bf16.xpose.msra.mxu0 0
        %5137 = vmatprep.mubr.bf16.mxu0 0
        %5138 = vmatmul.mubr.bf16.gmra.mrb[0].mxu0 %v5079
        %v5139 = vpop.f32.mrb[0].mxu0
        %v5140 = vadd.f32 0.0, %v5139
        %v5141 = vpop.f32.mrb[0].mxu0
        %v5142 = vpop.f32.mrb[0].mxu0
        %v5143 = vadd.f32 0.0, %v5142
        %v5144 = vpop.f32.mrb[0].mxu0
        %5145 = vdwg.mxu0
        %v5146 = vsel %vm3835, %v5072, -1e+30
        %v5147 = vsel %vm3836, %v5075, -1e+30
        %v5148 = vsel %vm3835, %v5140, -1e+30
        %v5149 = vsel %vm3836, %v5143, -1e+30
        %5150 = vmax.xlane.f32.xlu0 %v5146
        %v5151 = vpop.xlane.xlu0 %5150
        %5152 = vmax.xlane.f32.xlu0 %v5147
        %v5153 = vpop.xlane.xlu0 %5152
        %5154 = vmax.xlane.f32.xlu0 %v5148
        %v5155 = vpop.xlane.xlu0 %5154
        %5156 = vmax.xlane.f32.xlu0 %v5149
        %v5157 = vpop.xlane.xlu0 %5156
        %v5158 = vsub.f32 %v5146, %v5151
        %v5159 = vsub.f32 %v5147, %v5153
        %v5160 = vsub.f32 %v5148, %v5155
        %v5161 = vsub.f32 %v5149, %v5157
        %v5162 = vmul.f32 %v5158, 1.442695
        %v5163 = vpow.pop %v5162
        %v5164 = vmul.f32 %v5159, 1.442695
        %v5165 = vpow.pop %v5164
        %v5166 = vmul.f32 %v5160, 1.442695
        %v5167 = vpow.pop %v5166
        %v5168 = vmul.f32 %v5161, 1.442695
        %v5169 = vpow.pop %v5168
        %5170 = vadd.xlane.f32.xlu0 %v5163
        %v5171 = vpop.xlane.xlu0 %5170
        %5172 = vadd.xlane.f32.xlu0 %v5165
        %v5173 = vpop.xlane.xlu0 %5172
        %5174 = vadd.xlane.f32.xlu0 %v5167
        %v5175 = vpop.xlane.xlu0 %5174
        %5176 = vadd.xlane.f32.xlu0 %v5169
        %v5177 = vpop.xlane.xlu0 %5176
        %v5178 = vpack.c.bf16 %v5165, %v5163
        %v5179 = vpack.c.bf16 %v5169, %v5167
        %5180 = vmatprep.subr.bf16.mxu0 0
        %5181 = vmatpush1.bf16.msra.mxu0 %v3592
        %5182 = vmatprep.subr.bf16.mxu0 0
        %5183 = vmatpush1.bf16.msra.mxu0 %v3598
        %5184 = vmatprep.subr.bf16.mxu0 0
        %5185 = vmatpush1.bf16.msra.mxu0 %v3604
        %5186 = vmatprep.subr.bf16.mxu0 0
        %5187 = vmatpush1.bf16.msra.mxu0 %v3610
        %5188 = vmatprep.subr.bf16.mxu0 0
        %5189 = vmatpush1.bf16.msra.mxu0 %v3616
        %5190 = vmatprep.subr.bf16.mxu0 0
        %5191 = vmatpush1.bf16.msra.mxu0 %v3622
        %5192 = vmatprep.subr.bf16.mxu0 0
        %5193 = vmatpush1.bf16.msra.mxu0 %v3628
        %5194 = vmatprep.subr.bf16.mxu0 0
        %5195 = vmatpush1.bf16.msra.mxu0 %v3634
        %5196 = vmatprep.subr.bf16.mxu0 0
        %5197 = vmatpush1.bf16.msra.mxu0 0
        %5198 = vmatprep.subr.bf16.mxu0 0
        %5199 = vmatpush1.bf16.msra.mxu0 0
        %5200 = vmatprep.subr.bf16.mxu0 0
        %5201 = vmatpush1.bf16.msra.mxu0 0
        %5202 = vmatprep.subr.bf16.mxu0 0
        %5203 = vmatpush1.bf16.msra.mxu0 0
        %5204 = vmatprep.subr.bf16.mxu0 0
        %5205 = vmatpush1.bf16.msra.mxu0 0
        %5206 = vmatprep.subr.bf16.mxu0 0
        %5207 = vmatpush1.bf16.msra.mxu0 0
        %5208 = vmatprep.subr.bf16.mxu0 0
        %5209 = vmatpush1.bf16.msra.mxu0 0
        %5210 = vmatprep.subr.bf16.mxu0 0
        %5211 = vmatpush1.bf16.msra.mxu0 0
        %5212 = vmatprep.mubr.bf16.mxu0 0
        %5213 = vmatmul.mubr.bf16.gmra.mrb[0].mxu0 %v5178
        %v5214 = vpop.f32.mrb[0].mxu0
        %v5215 = vadd.f32 0.0, %v5214
        %v5216 = vpop.f32.mrb[0].mxu0
        %v5217 = vpop.f32.mrb[0].mxu0
        %v5218 = vadd.f32 0.0, %v5217
        %v5219 = vpop.f32.mrb[0].mxu0
        %5220 = vdwg.mxu0
        %5221 = vmatprep.subr.bf16.mxu0 0
        %5222 = vmatpush1.bf16.msra.mxu0 %v3643
        %5223 = vmatprep.subr.bf16.mxu0 0
        %5224 = vmatpush1.bf16.msra.mxu0 %v3649
        %5225 = vmatprep.subr.bf16.mxu0 0
        %5226 = vmatpush1.bf16.msra.mxu0 %v3655
        %5227 = vmatprep.subr.bf16.mxu0 0
        %5228 = vmatpush1.bf16.msra.mxu0 %v3661
        %5229 = vmatprep.subr.bf16.mxu0 0
        %5230 = vmatpush1.bf16.msra.mxu0 %v3667
        %5231 = vmatprep.subr.bf16.mxu0 0
        %5232 = vmatpush1.bf16.msra.mxu0 %v3673
        %5233 = vmatprep.subr.bf16.mxu0 0
        %5234 = vmatpush1.bf16.msra.mxu0 %v3679
        %5235 = vmatprep.subr.bf16.mxu0 0
        %5236 = vmatpush1.bf16.msra.mxu0 %v3685
        %5237 = vmatprep.subr.bf16.mxu0 0
        %5238 = vmatpush1.bf16.msra.mxu0 0
        %5239 = vmatprep.subr.bf16.mxu0 0
        %5240 = vmatpush1.bf16.msra.mxu0 0
        %5241 = vmatprep.subr.bf16.mxu0 0
        %5242 = vmatpush1.bf16.msra.mxu0 0
        %5243 = vmatprep.subr.bf16.mxu0 0
        %5244 = vmatpush1.bf16.msra.mxu0 0
        %5245 = vmatprep.subr.bf16.mxu0 0
        %5246 = vmatpush1.bf16.msra.mxu0 0
        %5247 = vmatprep.subr.bf16.mxu0 0
        %5248 = vmatpush1.bf16.msra.mxu0 0
        %5249 = vmatprep.subr.bf16.mxu0 0
        %5250 = vmatpush1.bf16.msra.mxu0 0
        %5251 = vmatprep.subr.bf16.mxu0 0
        %5252 = vmatpush1.bf16.msra.mxu0 0
        %5253 = vmatprep.mubr.bf16.mxu0 0
        %5254 = vmatmul.mubr.bf16.gmra.mrb[0].mxu0 %v5179
        %v5255 = vpop.f32.mrb[0].mxu0
        %v5256 = vadd.f32 0.0, %v5255
        %v5257 = vpop.f32.mrb[0].mxu0
        %v5258 = vpop.f32.mrb[0].mxu0
        %v5259 = vadd.f32 0.0, %v5258
        %v5260 = vpop.f32.mrb[0].mxu0
        %5261 = vdwg.mxu0
        %v5262 = vrcp.pop %v5171
        %v5263 = vrcp.pop %v5173
        %v5264 = vrcp.pop %v5175
        %v5265 = vrcp.pop %v5177
        %v5266 = vmul.f32 %v5215, %v5262
        %v5267 = vmul.f32 %v5218, %v5263
        %v5268 = vmul.f32 %v5256, %v5264
        %v5269 = vmul.f32 %v5259, %v5265
        %v5270 = vpack.c.bf16 %v5267, %v5266
        %v5271 = vpack.c.bf16 %v5269, %v5268
        %5272 = vst.msk [vmem:[#allocation2 + $0x10] sm:$0xff] %vm3696, %v5270
        %5273 = vst.msk [vmem:[#allocation2 + $0x28] sm:$0xff] %vm3696, %v5271
        %5275 = vrot.lane.b32.xlu0 %v3586, 64
        %v5276 = vpop.permute.xlu0 %5275
        %5285 = vrot.lane.b32.xlu0 %v3589, 64
        %v5286 = vpop.permute.xlu0 %5285
        %5287 = vrot.lane.b32.xlu0 %v3595, 64
        %v5288 = vpop.permute.xlu0 %5287
        %5289 = vrot.lane.b32.xlu0 %v3601, 64
        %v5290 = vpop.permute.xlu0 %5289
        %5291 = vrot.lane.b32.xlu0 %v3607, 64
        %v5292 = vpop.permute.xlu0 %5291
        %5293 = vrot.lane.b32.xlu0 %v3613, 64
        %v5294 = vpop.permute.xlu0 %5293
        %5295 = vrot.lane.b32.xlu0 %v3619, 64
        %v5296 = vpop.permute.xlu0 %5295
        %5297 = vrot.lane.b32.xlu0 %v3625, 64
        %v5298 = vpop.permute.xlu0 %5297
        %5299 = vrot.lane.b32.xlu0 %v3631, 64
        %v5300 = vpop.permute.xlu0 %5299
        %v5302 = vsel %vm3696, %v5276, 0
        %v5305 = vsel %vm3696, %v5286, 0
        %v5308 = vsel %vm3696, %v5288, 0
        %v5311 = vsel %vm3696, %v5290, 0
        %v5314 = vsel %vm3696, %v5292, 0
        %v5317 = vsel %vm3696, %v5294, 0
        %v5320 = vsel %vm3696, %v5296, 0
        %v5323 = vsel %vm3696, %v5298, 0
        %v5326 = vsel %vm3696, %v5300, 0
        %5328 = vmatprep.subr.bf16.mxu0 0
        %5329 = vmatpush1.bf16.xpose.msra.mxu0 %v5305
        %5330 = vmatprep.subr.bf16.mxu0 0
        %5331 = vmatpush1.bf16.xpose.msra.mxu0 %v5308
        %5332 = vmatprep.subr.bf16.mxu0 0
        %5333 = vmatpush1.bf16.xpose.msra.mxu0 %v5311
        %5334 = vmatprep.subr.bf16.mxu0 0
        %5335 = vmatpush1.bf16.xpose.msra.mxu0 %v5314
        %5336 = vmatprep.subr.bf16.mxu0 0
        %5337 = vmatpush1.bf16.xpose.msra.mxu0 %v5317
        %5338 = vmatprep.subr.bf16.mxu0 0
        %5339 = vmatpush1.bf16.xpose.msra.mxu0 %v5320
        %5340 = vmatprep.subr.bf16.mxu0 0
        %5341 = vmatpush1.bf16.xpose.msra.mxu0 %v5323
        %5342 = vmatprep.subr.bf16.mxu0 0
        %5343 = vmatpush1.bf16.xpose.msra.mxu0 %v5326
        %5344 = vmatprep.subr.bf16.mxu0 0
        %5345 = vmatpush1.bf16.xpose.msra.mxu0 0
        %5346 = vmatprep.subr.bf16.mxu0 0
        %5347 = vmatpush1.bf16.xpose.msra.mxu0 0
        %5348 = vmatprep.subr.bf16.mxu0 0
        %5349 = vmatpush1.bf16.xpose.msra.mxu0 0
        %5350 = vmatprep.subr.bf16.mxu0 0
        %5351 = vmatpush1.bf16.xpose.msra.mxu0 0
        %5352 = vmatprep.subr.bf16.mxu0 0
        %5353 = vmatpush1.bf16.xpose.msra.mxu0 0
        %5354 = vmatprep.subr.bf16.mxu0 0
        %5355 = vmatpush1.bf16.xpose.msra.mxu0 0
        %5356 = vmatprep.subr.bf16.mxu0 0
        %5357 = vmatpush1.bf16.xpose.msra.mxu0 0
        %5358 = vmatprep.subr.bf16.mxu0 0
        %5359 = vmatpush1.bf16.xpose.msra.mxu0 0
        %5360 = vmatprep.mubr.bf16.mxu0 0
        %5361 = vmatmul.mubr.bf16.gmra.mrb[0].mxu0 %v5302
        %v5362 = vpop.f32.mrb[0].mxu0
        %v5363 = vadd.f32 0.0, %v5362
        %v5364 = vpop.f32.mrb[0].mxu0
        %v5365 = vpop.f32.mrb[0].mxu0
        %v5366 = vadd.f32 0.0, %v5365
        %v5367 = vpop.f32.mrb[0].mxu0
        %5368 = vdwg.mxu0
        %5370 = vrot.lane.b32.xlu0 %v3637, 64
        %v5371 = vpop.permute.xlu0 %5370
        %5380 = vrot.lane.b32.xlu0 %v3640, 64
        %v5381 = vpop.permute.xlu0 %5380
        %5382 = vrot.lane.b32.xlu0 %v3646, 64
        %v5383 = vpop.permute.xlu0 %5382
        %5384 = vrot.lane.b32.xlu0 %v3652, 64
        %v5385 = vpop.permute.xlu0 %5384
        %5386 = vrot.lane.b32.xlu0 %v3658, 64
        %v5387 = vpop.permute.xlu0 %5386
        %5388 = vrot.lane.b32.xlu0 %v3664, 64
        %v5389 = vpop.permute.xlu0 %5388
        %5390 = vrot.lane.b32.xlu0 %v3670, 64
        %v5391 = vpop.permute.xlu0 %5390
        %5392 = vrot.lane.b32.xlu0 %v3676, 64
        %v5393 = vpop.permute.xlu0 %5392
        %5394 = vrot.lane.b32.xlu0 %v3682, 64
        %v5395 = vpop.permute.xlu0 %5394
        %v5397 = vsel %vm3696, %v5371, 0
        %v5400 = vsel %vm3696, %v5381, 0
        %v5403 = vsel %vm3696, %v5383, 0
        %v5406 = vsel %vm3696, %v5385, 0
        %v5409 = vsel %vm3696, %v5387, 0
        %v5412 = vsel %vm3696, %v5389, 0
        %v5415 = vsel %vm3696, %v5391, 0
        %v5418 = vsel %vm3696, %v5393, 0
        %v5421 = vsel %vm3696, %v5395, 0
        %5423 = vmatprep.subr.bf16.mxu0 0
        %5424 = vmatpush1.bf16.xpose.msra.mxu0 %v5400
        %5425 = vmatprep.subr.bf16.mxu0 0
        %5426 = vmatpush1.bf16.xpose.msra.mxu0 %v5403
        %5427 = vmatprep.subr.bf16.mxu0 0
        %5428 = vmatpush1.bf16.xpose.msra.mxu0 %v5406
        %5429 = vmatprep.subr.bf16.mxu0 0
        %5430 = vmatpush1.bf16.xpose.msra.mxu0 %v5409
        %5431 = vmatprep.subr.bf16.mxu0 0
        %5432 = vmatpush1.bf16.xpose.msra.mxu0 %v5412
        %5433 = vmatprep.subr.bf16.mxu0 0
        %5434 = vmatpush1.bf16.xpose.msra.mxu0 %v5415
        %5435 = vmatprep.subr.bf16.mxu0 0
        %5436 = vmatpush1.bf16.xpose.msra.mxu0 %v5418
        %5437 = vmatprep.subr.bf16.mxu0 0
        %5438 = vmatpush1.bf16.xpose.msra.mxu0 %v5421
        %5439 = vmatprep.subr.bf16.mxu0 0
        %5440 = vmatpush1.bf16.xpose.msra.mxu0 0
        %5441 = vmatprep.subr.bf16.mxu0 0
        %5442 = vmatpush1.bf16.xpose.msra.mxu0 0
        %5443 = vmatprep.subr.bf16.mxu0 0
        %5444 = vmatpush1.bf16.xpose.msra.mxu0 0
        %5445 = vmatprep.subr.bf16.mxu0 0
        %5446 = vmatpush1.bf16.xpose.msra.mxu0 0
        %5447 = vmatprep.subr.bf16.mxu0 0
        %5448 = vmatpush1.bf16.xpose.msra.mxu0 0
        %5449 = vmatprep.subr.bf16.mxu0 0
        %5450 = vmatpush1.bf16.xpose.msra.mxu0 0
        %5451 = vmatprep.subr.bf16.mxu0 0
        %5452 = vmatpush1.bf16.xpose.msra.mxu0 0
        %5453 = vmatprep.subr.bf16.mxu0 0
        %5454 = vmatpush1.bf16.xpose.msra.mxu0 0
        %5455 = vmatprep.mubr.bf16.mxu0 0
        %5456 = vmatmul.mubr.bf16.gmra.mrb[0].mxu0 %v5397
        %v5457 = vpop.f32.mrb[0].mxu0
        %v5458 = vadd.f32 0.0, %v5457
        %v5459 = vpop.f32.mrb[0].mxu0
        %v5460 = vpop.f32.mrb[0].mxu0
        %v5461 = vadd.f32 0.0, %v5460
        %v5462 = vpop.f32.mrb[0].mxu0
        %5463 = vdwg.mxu0
        %v5464 = vsel %vm3835, %v5363, -1e+30
        %v5465 = vsel %vm3836, %v5366, -1e+30
        %v5466 = vsel %vm3835, %v5458, -1e+30
        %v5467 = vsel %vm3836, %v5461, -1e+30
        %5468 = vmax.xlane.f32.xlu0 %v5464
        %v5469 = vpop.xlane.xlu0 %5468
        %5470 = vmax.xlane.f32.xlu0 %v5465
        %v5471 = vpop.xlane.xlu0 %5470
        %5472 = vmax.xlane.f32.xlu0 %v5466
        %v5473 = vpop.xlane.xlu0 %5472
        %5474 = vmax.xlane.f32.xlu0 %v5467
        %v5475 = vpop.xlane.xlu0 %5474
        %v5476 = vsub.f32 %v5464, %v5469
        %v5477 = vsub.f32 %v5465, %v5471
        %v5478 = vsub.f32 %v5466, %v5473
        %v5479 = vsub.f32 %v5467, %v5475
        %v5480 = vmul.f32 %v5476, 1.442695
        %v5481 = vpow.pop %v5480
        %v5482 = vmul.f32 %v5477, 1.442695
        %v5483 = vpow.pop %v5482
        %v5484 = vmul.f32 %v5478, 1.442695
        %v5485 = vpow.pop %v5484
        %v5486 = vmul.f32 %v5479, 1.442695
        %v5487 = vpow.pop %v5486
        %5488 = vadd.xlane.f32.xlu0 %v5481
        %v5489 = vpop.xlane.xlu0 %5488
        %5490 = vadd.xlane.f32.xlu0 %v5483
        %v5491 = vpop.xlane.xlu0 %5490
        %5492 = vadd.xlane.f32.xlu0 %v5485
        %v5493 = vpop.xlane.xlu0 %5492
        %5494 = vadd.xlane.f32.xlu0 %v5487
        %v5495 = vpop.xlane.xlu0 %5494
        %v5496 = vpack.c.bf16 %v5483, %v5481
        %v5497 = vpack.c.bf16 %v5487, %v5485
        %5506 = vrot.lane.b32.xlu0 %v3592, 64
        %v5507 = vpop.permute.xlu0 %5506
        %5508 = vrot.lane.b32.xlu0 %v3598, 64
        %v5509 = vpop.permute.xlu0 %5508
        %5510 = vrot.lane.b32.xlu0 %v3604, 64
        %v5511 = vpop.permute.xlu0 %5510
        %5512 = vrot.lane.b32.xlu0 %v3610, 64
        %v5513 = vpop.permute.xlu0 %5512
        %5514 = vrot.lane.b32.xlu0 %v3616, 64
        %v5515 = vpop.permute.xlu0 %5514
        %5516 = vrot.lane.b32.xlu0 %v3622, 64
        %v5517 = vpop.permute.xlu0 %5516
        %5518 = vrot.lane.b32.xlu0 %v3628, 64
        %v5519 = vpop.permute.xlu0 %5518
        %5520 = vrot.lane.b32.xlu0 %v3634, 64
        %v5521 = vpop.permute.xlu0 %5520
        %5530 = vmatprep.subr.bf16.mxu0 0
        %5531 = vmatpush1.bf16.msra.mxu0 %v5507
        %5532 = vmatprep.subr.bf16.mxu0 0
        %5533 = vmatpush1.bf16.msra.mxu0 %v5509
        %5534 = vmatprep.subr.bf16.mxu0 0
        %5535 = vmatpush1.bf16.msra.mxu0 %v5511
        %5536 = vmatprep.subr.bf16.mxu0 0
        %5537 = vmatpush1.bf16.msra.mxu0 %v5513
        %5538 = vmatprep.subr.bf16.mxu0 0
        %5539 = vmatpush1.bf16.msra.mxu0 %v5515
        %5540 = vmatprep.subr.bf16.mxu0 0
        %5541 = vmatpush1.bf16.msra.mxu0 %v5517
        %5542 = vmatprep.subr.bf16.mxu0 0
        %5543 = vmatpush1.bf16.msra.mxu0 %v5519
        %5544 = vmatprep.subr.bf16.mxu0 0
        %5545 = vmatpush1.bf16.msra.mxu0 %v5521
        %5546 = vmatprep.subr.bf16.mxu0 0
        %5547 = vmatpush1.bf16.msra.mxu0 0
        %5548 = vmatprep.subr.bf16.mxu0 0
        %5549 = vmatpush1.bf16.msra.mxu0 0
        %5550 = vmatprep.subr.bf16.mxu0 0
        %5551 = vmatpush1.bf16.msra.mxu0 0
        %5552 = vmatprep.subr.bf16.mxu0 0
        %5553 = vmatpush1.bf16.msra.mxu0 0
        %5554 = vmatprep.subr.bf16.mxu0 0
        %5555 = vmatpush1.bf16.msra.mxu0 0
        %5556 = vmatprep.subr.bf16.mxu0 0
        %5557 = vmatpush1.bf16.msra.mxu0 0
        %5558 = vmatprep.subr.bf16.mxu0 0
        %5559 = vmatpush1.bf16.msra.mxu0 0
        %5560 = vmatprep.subr.bf16.mxu0 0
        %5561 = vmatpush1.bf16.msra.mxu0 0
        %5562 = vmatprep.mubr.bf16.mxu0 0
        %5563 = vmatmul.mubr.bf16.gmra.mrb[0].mxu0 %v5496
        %v5564 = vpop.f32.mrb[0].mxu0
        %v5565 = vadd.f32 0.0, %v5564
        %v5566 = vpop.f32.mrb[0].mxu0
        %v5567 = vpop.f32.mrb[0].mxu0
        %v5568 = vadd.f32 0.0, %v5567
        %v5569 = vpop.f32.mrb[0].mxu0
        %5570 = vdwg.mxu0
        %5579 = vrot.lane.b32.xlu0 %v3643, 64
        %v5580 = vpop.permute.xlu0 %5579
        %5581 = vrot.lane.b32.xlu0 %v3649, 64
        %v5582 = vpop.permute.xlu0 %5581
        %5583 = vrot.lane.b32.xlu0 %v3655, 64
        %v5584 = vpop.permute.xlu0 %5583
        %5585 = vrot.lane.b32.xlu0 %v3661, 64
        %v5586 = vpop.permute.xlu0 %5585
        %5587 = vrot.lane.b32.xlu0 %v3667, 64
        %v5588 = vpop.permute.xlu0 %5587
        %5589 = vrot.lane.b32.xlu0 %v3673, 64
        %v5590 = vpop.permute.xlu0 %5589
        %5591 = vrot.lane.b32.xlu0 %v3679, 64
        %v5592 = vpop.permute.xlu0 %5591
        %5593 = vrot.lane.b32.xlu0 %v3685, 64
        %v5594 = vpop.permute.xlu0 %5593
        %5603 = vmatprep.subr.bf16.mxu0 0
        %5604 = vmatpush1.bf16.msra.mxu0 %v5580
        %5605 = vmatprep.subr.bf16.mxu0 0
        %5606 = vmatpush1.bf16.msra.mxu0 %v5582
        %5607 = vmatprep.subr.bf16.mxu0 0
        %5608 = vmatpush1.bf16.msra.mxu0 %v5584
        %5609 = vmatprep.subr.bf16.mxu0 0
        %5610 = vmatpush1.bf16.msra.mxu0 %v5586
        %5611 = vmatprep.subr.bf16.mxu0 0
        %5612 = vmatpush1.bf16.msra.mxu0 %v5588
        %5613 = vmatprep.subr.bf16.mxu0 0
        %5614 = vmatpush1.bf16.msra.mxu0 %v5590
        %5615 = vmatprep.subr.bf16.mxu0 0
        %5616 = vmatpush1.bf16.msra.mxu0 %v5592
        %5617 = vmatprep.subr.bf16.mxu0 0
        %5618 = vmatpush1.bf16.msra.mxu0 %v5594
        %5619 = vmatprep.subr.bf16.mxu0 0
        %5620 = vmatpush1.bf16.msra.mxu0 0
        %5621 = vmatprep.subr.bf16.mxu0 0
        %5622 = vmatpush1.bf16.msra.mxu0 0
        %5623 = vmatprep.subr.bf16.mxu0 0
        %5624 = vmatpush1.bf16.msra.mxu0 0
        %5625 = vmatprep.subr.bf16.mxu0 0
        %5626 = vmatpush1.bf16.msra.mxu0 0
        %5627 = vmatprep.subr.bf16.mxu0 0
        %5628 = vmatpush1.bf16.msra.mxu0 0
        %5629 = vmatprep.subr.bf16.mxu0 0
        %5630 = vmatpush1.bf16.msra.mxu0 0
        %5631 = vmatprep.subr.bf16.mxu0 0
        %5632 = vmatpush1.bf16.msra.mxu0 0
        %5633 = vmatprep.subr.bf16.mxu0 0
        %5634 = vmatpush1.bf16.msra.mxu0 0
        %5635 = vmatprep.mubr.bf16.mxu0 0
        %5636 = vmatmul.mubr.bf16.gmra.mrb[0].mxu0 %v5497
        %v5637 = vpop.f32.mrb[0].mxu0
        %v5638 = vadd.f32 0.0, %v5637
        %v5639 = vpop.f32.mrb[0].mxu0
        %v5640 = vpop.f32.mrb[0].mxu0
        %v5641 = vadd.f32 0.0, %v5640
        %v5642 = vpop.f32.mrb[0].mxu0
        %5643 = vdwg.mxu0
        %v5644 = vrcp.pop %v5489
        %v5645 = vrcp.pop %v5491
        %v5646 = vrcp.pop %v5493
        %v5647 = vrcp.pop %v5495
        %v5648 = vmul.f32 %v5565, %v5644
        %v5649 = vmul.f32 %v5568, %v5645
        %v5650 = vmul.f32 %v5638, %v5646
        %v5651 = vmul.f32 %v5641, %v5647
        %v5652 = vpack.c.bf16 %v5649, %v5648
        %v5653 = vpack.c.bf16 %v5651, %v5650
        %5656 = vrot.lane.b32.xlu0 %v5652, 64
        %v5657 = vpop.permute.xlu0 %5656
        %5658 = vrot.lane.b32.xlu0 %v5653, 64
        %v5659 = vpop.permute.xlu0 %5658
        %5662 = vst.msk [vmem:[#allocation2 + $0x10] sm:$0xff] %vm4353, %v5657
        %5663 = vst.msk [vmem:[#allocation2 + $0x28] sm:$0xff] %vm4353, %v5659
        %v5664 = vld [vmem:[#allocation2] sm:$0xff]
        %v5665 = vld [vmem:[#allocation2 + $0x8] sm:$0xff]
        %v5666 = vld [vmem:[#allocation2 + $0x10] sm:$0xff]
        %v5667 = vld [vmem:[#allocation2 + $0x18] sm:$0xff]
        %v5668 = vld [vmem:[#allocation2 + $0x20] sm:$0xff]
        %v5669 = vld [vmem:[#allocation2 + $0x28] sm:$0xff]
        %v5670 = vld [vmem:[%s2] sm:$0xff]
        %v5671 = vld [vmem:[%s2 + $0x8] sm:$0xf]
        %v5672 = vld [vmem:[%s2 + $0xc] sm:$0xff]
        %v5673 = vld [vmem:[%s2 + $0x14] sm:$0xf]
        %v5674 = vld [vmem:[%s2 + $0x18] sm:$0xff]
        %v5675 = vld [vmem:[%s2 + $0x20] sm:$0xf]
        %v5676 = vld [vmem:[%s2 + $0x24] sm:$0xff]
        %v5677 = vld [vmem:[%s2 + $0x2c] sm:$0xf]
        %v5678 = vld [vmem:[%s2 + $0x30] sm:$0xff]
        %v5679 = vld [vmem:[%s2 + $0x38] sm:$0xf]
        %v5680 = vld [vmem:[%s2 + $0x3c] sm:$0xff]
        %v5681 = vld [vmem:[%s2 + $0x44] sm:$0xf]
        %v5682 = vld [vmem:[%s2 + $0x48] sm:$0xff]
        %v5683 = vld [vmem:[%s2 + $0x50] sm:$0xf]
        %v5684 = vld [vmem:[%s2 + $0x54] sm:$0xff]
        %v5685 = vld [vmem:[%s2 + $0x5c] sm:$0xf]
        %v5686 = vld [vmem:[%s2 + $0x60] sm:$0xff]
        %v5687 = vld [vmem:[%s2 + $0x68] sm:$0xf]
        %v5688 = vld [vmem:[%s2 + $0x6c] sm:$0xff]
        %v5689 = vld [vmem:[%s2 + $0x74] sm:$0xf]
        %v5690 = vld [vmem:[%s2 + $0x78] sm:$0xff]
        %v5691 = vld [vmem:[%s2 + $0x80] sm:$0xf]
        %v5692 = vld [vmem:[%s2 + $0x84] sm:$0xff]
        %v5693 = vld [vmem:[%s2 + $0x8c] sm:$0xf]
        %v5694 = vld [vmem:[%s2 + $0x90] sm:$0xff]
        %v5695 = vld [vmem:[%s2 + $0x98] sm:$0xf]
        %v5696 = vld [vmem:[%s2 + $0x9c] sm:$0xff]
        %v5697 = vld [vmem:[%s2 + $0xa4] sm:$0xf]
        %v5698 = vld [vmem:[%s2 + $0xa8] sm:$0xff]
        %v5699 = vld [vmem:[%s2 + $0xb0] sm:$0xf]
        %v5700 = vld [vmem:[%s2 + $0xb4] sm:$0xff]
        %v5701 = vld [vmem:[%s2 + $0xbc] sm:$0xf]
        %v5702 = vld [vmem:[%s2 + $0xc0] sm:$0xff]
        %v5703 = vld [vmem:[%s2 + $0xc8] sm:$0xf]
        %v5704 = vld [vmem:[%s2 + $0xcc] sm:$0xff]
        %v5705 = vld [vmem:[%s2 + $0xd4] sm:$0xf]
        %v5706 = vld [vmem:[%s2 + $0xd8] sm:$0xff]
        %v5707 = vld [vmem:[%s2 + $0xe0] sm:$0xf]
        %v5708 = vld [vmem:[%s2 + $0xe4] sm:$0xff]
        %v5709 = vld [vmem:[%s2 + $0xec] sm:$0xf]
        %v5710 = vld [vmem:[%s2 + $0xf0] sm:$0xff]
        %v5711 = vld [vmem:[%s2 + $0xf8] sm:$0xf]
        %v5712 = vld [vmem:[%s2 + $0xfc] sm:$0xff]
        %v5713 = vld [vmem:[%s2 + $0x104] sm:$0xf]
        %v5714 = vld [vmem:[%s2 + $0x108] sm:$0xff]
        %v5715 = vld [vmem:[%s2 + $0x110] sm:$0xf]
        %v5716 = vld [vmem:[%s2 + $0x114] sm:$0xff]
        %v5717 = vld [vmem:[%s2 + $0x11c] sm:$0xf]
        %v5718 = vld [vmem:[%s2 + $0x120] sm:$0xff]
        %v5719 = vld [vmem:[%s2 + $0x128] sm:$0xf]
        %v5720 = vld [vmem:[%s2 + $0x12c] sm:$0xff]
        %v5721 = vld [vmem:[%s2 + $0x134] sm:$0xf]
        %v5722 = vld [vmem:[%s2 + $0x138] sm:$0xff]
        %v5723 = vld [vmem:[%s2 + $0x140] sm:$0xf]
        %v5724 = vld [vmem:[%s2 + $0x144] sm:$0xff]
        %v5725 = vld [vmem:[%s2 + $0x14c] sm:$0xf]
        %v5726 = vld [vmem:[%s2 + $0x150] sm:$0xff]
        %v5727 = vld [vmem:[%s2 + $0x158] sm:$0xf]
        %v5728 = vld [vmem:[%s2 + $0x15c] sm:$0xff]
        %v5729 = vld [vmem:[%s2 + $0x164] sm:$0xf]
        %v5730 = vld [vmem:[%s2 + $0x168] sm:$0xff]
        %v5731 = vld [vmem:[%s2 + $0x170] sm:$0xf]
        %v5732 = vld [vmem:[%s2 + $0x174] sm:$0xff]
        %v5733 = vld [vmem:[%s2 + $0x17c] sm:$0xf]
        %v5734 = vld [vmem:[%s2 + $0x180] sm:$0xff]
        %v5735 = vld [vmem:[%s2 + $0x188] sm:$0xf]
        %v5736 = vld [vmem:[%s2 + $0x18c] sm:$0xff]
        %v5737 = vld [vmem:[%s2 + $0x194] sm:$0xf]
        %v5738 = vld [vmem:[%s2 + $0x198] sm:$0xff]
        %v5739 = vld [vmem:[%s2 + $0x1a0] sm:$0xf]
        %v5740 = vld [vmem:[%s2 + $0x1a4] sm:$0xff]
        %v5741 = vld [vmem:[%s2 + $0x1ac] sm:$0xf]
        %v5742 = vld [vmem:[%s2 + $0x1b0] sm:$0xff]
        %v5743 = vld [vmem:[%s2 + $0x1b8] sm:$0xf]
        %v5744 = vld [vmem:[%s2 + $0x1bc] sm:$0xff]
        %v5745 = vld [vmem:[%s2 + $0x1c4] sm:$0xf]
        %v5746 = vld [vmem:[%s2 + $0x1c8] sm:$0xff]
        %v5747 = vld [vmem:[%s2 + $0x1d0] sm:$0xf]
        %v5748 = vld [vmem:[%s2 + $0x1d4] sm:$0xff]
        %v5749 = vld [vmem:[%s2 + $0x1dc] sm:$0xf]
        %v5750 = vld [vmem:[%s2 + $0x1e0] sm:$0xff]
        %v5751 = vld [vmem:[%s2 + $0x1e8] sm:$0xf]
        %v5752 = vld [vmem:[%s2 + $0x1ec] sm:$0xff]
        %v5753 = vld [vmem:[%s2 + $0x1f4] sm:$0xf]
        %v5754 = vld [vmem:[%s2 + $0x1f8] sm:$0xff]
        %v5755 = vld [vmem:[%s2 + $0x200] sm:$0xf]
        %v5756 = vld [vmem:[%s2 + $0x204] sm:$0xff]
        %v5757 = vld [vmem:[%s2 + $0x20c] sm:$0xf]
        %v5758 = vld [vmem:[%s2 + $0x210] sm:$0xff]
        %v5759 = vld [vmem:[%s2 + $0x218] sm:$0xf]
        %v5760 = vld [vmem:[%s2 + $0x21c] sm:$0xff]
        %v5761 = vld [vmem:[%s2 + $0x224] sm:$0xf]
        %v5762 = vld [vmem:[%s2 + $0x228] sm:$0xff]
        %v5763 = vld [vmem:[%s2 + $0x230] sm:$0xf]
        %v5764 = vld [vmem:[%s2 + $0x234] sm:$0xff]
        %v5765 = vld [vmem:[%s2 + $0x23c] sm:$0xf]
        %v5766 = vld [vmem:[%s3] sm:$0x7]
        %v5768 = vlaneseq
        %v5769 = vshrl.u32 %v5768, 7
        %v5770 = vsub.s32 0, %v5769
        %v5771 = vrot.slane %v5766, %v5770
        %v5772 = vlaneseq
        %v5773 = vshrl.u32 %v5772, 7
        %v5774 = vsub.s32 1, %v5773
        %v5775 = vrot.slane %v5766, %v5774
        %v5776 = vlaneseq
        %v5777 = vshrl.u32 %v5776, 7
        %v5778 = vsub.s32 2, %v5777
        %v5779 = vrot.slane %v5766, %v5778
        %v5879 = vunpack.c.l.b16 %v5670
        %v5880 = vunpack.c.h.b16 %v5670
        %v5881 = vunpack.c.l.b16 %v5671
        %v5882 = vunpack.c.l.b16 %v5672
        %v5883 = vunpack.c.h.b16 %v5672
        %v5884 = vunpack.c.l.b16 %v5673
        %v5885 = vunpack.c.l.b16 %v5674
        %v5886 = vunpack.c.h.b16 %v5674
        %v5887 = vunpack.c.l.b16 %v5675
        %v5888 = vunpack.c.l.b16 %v5676
        %v5889 = vunpack.c.h.b16 %v5676
        %v5890 = vunpack.c.l.b16 %v5677
        %v5891 = vunpack.c.l.b16 %v5678
        %v5892 = vunpack.c.h.b16 %v5678
        %v5893 = vunpack.c.l.b16 %v5679
        %v5894 = vunpack.c.l.b16 %v5680
        %v5895 = vunpack.c.h.b16 %v5680
        %v5896 = vunpack.c.l.b16 %v5681
        %v5897 = vunpack.c.l.b16 %v5682
        %v5898 = vunpack.c.h.b16 %v5682
        %v5899 = vunpack.c.l.b16 %v5683
        %v5900 = vunpack.c.l.b16 %v5684
        %v5901 = vunpack.c.h.b16 %v5684
        %v5902 = vunpack.c.l.b16 %v5685
        %v5903 = vunpack.c.l.b16 %v5686
        %v5904 = vunpack.c.h.b16 %v5686
        %v5905 = vunpack.c.l.b16 %v5687
        %v5906 = vunpack.c.l.b16 %v5688
        %v5907 = vunpack.c.h.b16 %v5688
        %v5908 = vunpack.c.l.b16 %v5689
        %v5909 = vunpack.c.l.b16 %v5690
        %v5910 = vunpack.c.h.b16 %v5690
        %v5911 = vunpack.c.l.b16 %v5691
        %v5912 = vunpack.c.l.b16 %v5692
        %v5913 = vunpack.c.h.b16 %v5692
        %v5914 = vunpack.c.l.b16 %v5693
        %v5915 = vunpack.c.l.b16 %v5694
        %v5916 = vunpack.c.h.b16 %v5694
        %v5917 = vunpack.c.l.b16 %v5695
        %v5918 = vunpack.c.l.b16 %v5696
        %v5919 = vunpack.c.h.b16 %v5696
        %v5920 = vunpack.c.l.b16 %v5697
        %v5921 = vunpack.c.l.b16 %v5698
        %v5922 = vunpack.c.h.b16 %v5698
        %v5923 = vunpack.c.l.b16 %v5699
        %v5924 = vunpack.c.l.b16 %v5700
        %v5925 = vunpack.c.h.b16 %v5700
        %v5926 = vunpack.c.l.b16 %v5701
        %v5927 = vunpack.c.l.b16 %v5702
        %v5928 = vunpack.c.h.b16 %v5702
        %v5929 = vunpack.c.l.b16 %v5703
        %v5930 = vunpack.c.l.b16 %v5704
        %v5931 = vunpack.c.h.b16 %v5704
        %v5932 = vunpack.c.l.b16 %v5705
        %v5933 = vunpack.c.l.b16 %v5706
        %v5934 = vunpack.c.h.b16 %v5706
        %v5935 = vunpack.c.l.b16 %v5707
        %v5936 = vunpack.c.l.b16 %v5708
        %v5937 = vunpack.c.h.b16 %v5708
        %v5938 = vunpack.c.l.b16 %v5709
        %v5939 = vunpack.c.l.b16 %v5710
        %v5940 = vunpack.c.h.b16 %v5710
        %v5941 = vunpack.c.l.b16 %v5711
        %v5942 = vunpack.c.l.b16 %v5712
        %v5943 = vunpack.c.h.b16 %v5712
        %v5944 = vunpack.c.l.b16 %v5713
        %v5945 = vunpack.c.l.b16 %v5714
        %v5946 = vunpack.c.h.b16 %v5714
        %v5947 = vunpack.c.l.b16 %v5715
        %v5948 = vunpack.c.l.b16 %v5716
        %v5949 = vunpack.c.h.b16 %v5716
        %v5950 = vunpack.c.l.b16 %v5717
        %v5951 = vunpack.c.l.b16 %v5718
        %v5952 = vunpack.c.h.b16 %v5718
        %v5953 = vunpack.c.l.b16 %v5719
        %v5954 = vunpack.c.l.b16 %v5720
        %v5955 = vunpack.c.h.b16 %v5720
        %v5956 = vunpack.c.l.b16 %v5721
        %v5957 = vunpack.c.l.b16 %v5722
        %v5958 = vunpack.c.h.b16 %v5722
        %v5959 = vunpack.c.l.b16 %v5723
        %v5960 = vunpack.c.l.b16 %v5724
        %v5961 = vunpack.c.h.b16 %v5724
        %v5962 = vunpack.c.l.b16 %v5725
        %v5963 = vunpack.c.l.b16 %v5726
        %v5964 = vunpack.c.h.b16 %v5726
        %v5965 = vunpack.c.l.b16 %v5727
        %v5966 = vunpack.c.l.b16 %v5728
        %v5967 = vunpack.c.h.b16 %v5728
        %v5968 = vunpack.c.l.b16 %v5729
        %v5969 = vunpack.c.l.b16 %v5730
        %v5970 = vunpack.c.h.b16 %v5730
        %v5971 = vunpack.c.l.b16 %v5731
        %v5972 = vunpack.c.l.b16 %v5732
        %v5973 = vunpack.c.h.b16 %v5732
        %v5974 = vunpack.c.l.b16 %v5733
        %v5975 = vunpack.c.l.b16 %v5734
        %v5976 = vunpack.c.h.b16 %v5734
        %v5977 = vunpack.c.l.b16 %v5735
        %v5978 = vunpack.c.l.b16 %v5736
        %v5979 = vunpack.c.h.b16 %v5736
        %v5980 = vunpack.c.l.b16 %v5737
        %v5981 = vunpack.c.l.b16 %v5738
        %v5982 = vunpack.c.h.b16 %v5738
        %v5983 = vunpack.c.l.b16 %v5739
        %v5984 = vunpack.c.l.b16 %v5740
        %v5985 = vunpack.c.h.b16 %v5740
        %v5986 = vunpack.c.l.b16 %v5741
        %v5987 = vunpack.c.l.b16 %v5742
        %v5988 = vunpack.c.h.b16 %v5742
        %v5989 = vunpack.c.l.b16 %v5743
        %v5990 = vunpack.c.l.b16 %v5744
        %v5991 = vunpack.c.h.b16 %v5744
        %v5992 = vunpack.c.l.b16 %v5745
        %v5993 = vunpack.c.l.b16 %v5746
        %v5994 = vunpack.c.h.b16 %v5746
        %v5995 = vunpack.c.l.b16 %v5747
        %v5996 = vunpack.c.l.b16 %v5748
        %v5997 = vunpack.c.h.b16 %v5748
        %v5998 = vunpack.c.l.b16 %v5749
        %v5999 = vunpack.c.l.b16 %v5750
        %v6000 = vunpack.c.h.b16 %v5750
        %v6001 = vunpack.c.l.b16 %v5751
        %v6002 = vunpack.c.l.b16 %v5752
        %v6003 = vunpack.c.h.b16 %v5752
        %v6004 = vunpack.c.l.b16 %v5753
        %v6005 = vunpack.c.l.b16 %v5754
        %v6006 = vunpack.c.h.b16 %v5754
        %v6007 = vunpack.c.l.b16 %v5755
        %v6008 = vunpack.c.l.b16 %v5756
        %v6009 = vunpack.c.h.b16 %v5756
        %v6010 = vunpack.c.l.b16 %v5757
        %v6011 = vunpack.c.l.b16 %v5758
        %v6012 = vunpack.c.h.b16 %v5758
        %v6013 = vunpack.c.l.b16 %v5759
        %v6014 = vunpack.c.l.b16 %v5760
        %v6015 = vunpack.c.h.b16 %v5760
        %v6016 = vunpack.c.l.b16 %v5761
        %v6017 = vunpack.c.l.b16 %v5762
        %v6018 = vunpack.c.h.b16 %v5762
        %v6019 = vunpack.c.l.b16 %v5763
        %v6020 = vunpack.c.l.b16 %v5764
        %v6021 = vunpack.c.h.b16 %v5764
        %v6022 = vunpack.c.l.b16 %v5765
        %v6023 = vpack.c.b16 %v5882, %v5879
        %v6024 = vpack.c.b16 %v5883, %v5880
        %v6025 = vpack.c.b16 %v5884, %v5881
        %v6026 = vpack.c.b16 %v5888, %v5885
        %v6027 = vpack.c.b16 %v5889, %v5886
        %v6028 = vpack.c.b16 %v5890, %v5887
        %v6029 = vpack.c.b16 %v5894, %v5891
        %v6030 = vpack.c.b16 %v5895, %v5892
        %v6031 = vpack.c.b16 %v5896, %v5893
        %v6032 = vpack.c.b16 %v5900, %v5897
        %v6033 = vpack.c.b16 %v5901, %v5898
        %v6034 = vpack.c.b16 %v5902, %v5899
        %v6035 = vpack.c.b16 %v5906, %v5903
        %v6036 = vpack.c.b16 %v5907, %v5904
        %v6037 = vpack.c.b16 %v5908, %v5905
        %v6038 = vpack.c.b16 %v5912, %v5909
        %v6039 = vpack.c.b16 %v5913, %v5910
        %v6040 = vpack.c.b16 %v5914, %v5911
        %v6041 = vpack.c.b16 %v5918, %v5915
        %v6042 = vpack.c.b16 %v5919, %v5916
        %v6043 = vpack.c.b16 %v5920, %v5917
        %v6044 = vpack.c.b16 %v5924, %v5921
        %v6045 = vpack.c.b16 %v5925, %v5922
        %v6046 = vpack.c.b16 %v5926, %v5923
        %v6047 = vpack.c.b16 %v5930, %v5927
        %v6048 = vpack.c.b16 %v5931, %v5928
        %v6049 = vpack.c.b16 %v5932, %v5929
        %v6050 = vpack.c.b16 %v5936, %v5933
        %v6051 = vpack.c.b16 %v5937, %v5934
        %v6052 = vpack.c.b16 %v5938, %v5935
        %v6053 = vpack.c.b16 %v5942, %v5939
        %v6054 = vpack.c.b16 %v5943, %v5940
        %v6055 = vpack.c.b16 %v5944, %v5941
        %v6056 = vpack.c.b16 %v5948, %v5945
        %v6057 = vpack.c.b16 %v5949, %v5946
        %v6058 = vpack.c.b16 %v5950, %v5947
        %v6059 = vpack.c.b16 %v5954, %v5951
        %v6060 = vpack.c.b16 %v5955, %v5952
        %v6061 = vpack.c.b16 %v5956, %v5953
        %v6062 = vpack.c.b16 %v5960, %v5957
        %v6063 = vpack.c.b16 %v5961, %v5958
        %v6064 = vpack.c.b16 %v5962, %v5959
        %v6065 = vpack.c.b16 %v5966, %v5963
        %v6066 = vpack.c.b16 %v5967, %v5964
        %v6067 = vpack.c.b16 %v5968, %v5965
        %v6068 = vpack.c.b16 %v5972, %v5969
        %v6069 = vpack.c.b16 %v5973, %v5970
        %v6070 = vpack.c.b16 %v5974, %v5971
        %v6071 = vpack.c.b16 %v5978, %v5975
        %v6072 = vpack.c.b16 %v5979, %v5976
        %v6073 = vpack.c.b16 %v5980, %v5977
        %v6074 = vpack.c.b16 %v5984, %v5981
        %v6075 = vpack.c.b16 %v5985, %v5982
        %v6076 = vpack.c.b16 %v5986, %v5983
        %v6077 = vpack.c.b16 %v5990, %v5987
        %v6078 = vpack.c.b16 %v5991, %v5988
        %v6079 = vpack.c.b16 %v5992, %v5989
        %v6080 = vpack.c.b16 %v5996, %v5993
        %v6081 = vpack.c.b16 %v5997, %v5994
        %v6082 = vpack.c.b16 %v5998, %v5995
        %v6083 = vpack.c.b16 %v6002, %v5999
        %v6084 = vpack.c.b16 %v6003, %v6000
        %v6085 = vpack.c.b16 %v6004, %v6001
        %v6086 = vpack.c.b16 %v6008, %v6005
        %v6087 = vpack.c.b16 %v6009, %v6006
        %v6088 = vpack.c.b16 %v6010, %v6007
        %v6089 = vpack.c.b16 %v6014, %v6011
        %v6090 = vpack.c.b16 %v6015, %v6012
        %v6091 = vpack.c.b16 %v6016, %v6013
        %v6092 = vpack.c.b16 %v6020, %v6017
        %v6093 = vpack.c.b16 %v6021, %v6018
        %v6094 = vpack.c.b16 %v6022, %v6019
        %6167 = vmatprep.subr.bf16.mxu0 %v6024
        %6168 = vmatpush1.bf16.msra.mxu0 %v6023
        %6169 = vmatprep.subr.bf16.mxu0 %v6027
        %6170 = vmatpush1.bf16.msra.mxu0 %v6026
        %6171 = vmatprep.subr.bf16.mxu0 %v6030
        %6172 = vmatpush1.bf16.msra.mxu0 %v6029
        %6173 = vmatprep.subr.bf16.mxu0 %v6033
        %6174 = vmatpush1.bf16.msra.mxu0 %v6032
        %6175 = vmatprep.subr.bf16.mxu0 %v6036
        %6176 = vmatpush1.bf16.msra.mxu0 %v6035
        %6177 = vmatprep.subr.bf16.mxu0 %v6039
        %6178 = vmatpush1.bf16.msra.mxu0 %v6038
        %6179 = vmatprep.subr.bf16.mxu0 %v6042
        %6180 = vmatpush1.bf16.msra.mxu0 %v6041
        %6181 = vmatprep.subr.bf16.mxu0 %v6045
        %6182 = vmatpush1.bf16.msra.mxu0 %v6044
        %6183 = vmatprep.subr.bf16.mxu0 %v6048
        %6184 = vmatpush1.bf16.msra.mxu0 %v6047
        %6185 = vmatprep.subr.bf16.mxu0 %v6051
        %6186 = vmatpush1.bf16.msra.mxu0 %v6050
        %6187 = vmatprep.subr.bf16.mxu0 %v6054
        %6188 = vmatpush1.bf16.msra.mxu0 %v6053
        %6189 = vmatprep.subr.bf16.mxu0 %v6057
        %6190 = vmatpush1.bf16.msra.mxu0 %v6056
        %6191 = vmatprep.subr.bf16.mxu0 %v6060
        %6192 = vmatpush1.bf16.msra.mxu0 %v6059
        %6193 = vmatprep.subr.bf16.mxu0 %v6063
        %6194 = vmatpush1.bf16.msra.mxu0 %v6062
        %6195 = vmatprep.subr.bf16.mxu0 %v6066
        %6196 = vmatpush1.bf16.msra.mxu0 %v6065
        %6197 = vmatprep.subr.bf16.mxu0 %v6069
        %6198 = vmatpush1.bf16.msra.mxu0 %v6068
        %6199 = vmatprep.mubr.bf16.mxu0 %v5665
        %6200 = vmatmul.mubr.bf16.gmra.mrb[0].mxu0 %v5664
        %v6201 = vpop.f32.mrb[0].mxu0
        %v6202 = vadd.f32 %v5771, %v6201
        %v6203 = vpop.f32.mrb[0].mxu0
        %v6204 = vadd.f32 %v5775, %v6203
        %v6205 = vpop.f32.mrb[0].mxu0
        %v6206 = vadd.f32 %v5771, %v6205
        %v6207 = vpop.f32.mrb[0].mxu0
        %v6208 = vadd.f32 %v5775, %v6207
        %6209 = vmatprep.mubr.bf16.mxu0 %v5668
        %6210 = vmatmul.mubr.bf16.gmra.mrb[0].mxu0 %v5667
        %v6211 = vpop.f32.mrb[0].mxu0
        %v6212 = vadd.f32 %v5771, %v6211
        %v6213 = vpop.f32.mrb[0].mxu0
        %v6214 = vadd.f32 %v5775, %v6213
        %v6215 = vpop.f32.mrb[0].mxu0
        %v6216 = vadd.f32 %v5771, %v6215
        %v6217 = vpop.f32.mrb[0].mxu0
        %v6218 = vadd.f32 %v5775, %v6217
        %6219 = vdwg.mxu0
        %6220 = vmatprep.subr.bf16.mxu0 %v6072
        %6221 = vmatpush1.bf16.msra.mxu0 %v6071
        %6222 = vmatprep.subr.bf16.mxu0 %v6075
        %6223 = vmatpush1.bf16.msra.mxu0 %v6074
        %6224 = vmatprep.subr.bf16.mxu0 %v6078
        %6225 = vmatpush1.bf16.msra.mxu0 %v6077
        %6226 = vmatprep.subr.bf16.mxu0 %v6081
        %6227 = vmatpush1.bf16.msra.mxu0 %v6080
        %6228 = vmatprep.subr.bf16.mxu0 %v6084
        %6229 = vmatpush1.bf16.msra.mxu0 %v6083
        %6230 = vmatprep.subr.bf16.mxu0 %v6087
        %6231 = vmatpush1.bf16.msra.mxu0 %v6086
        %6232 = vmatprep.subr.bf16.mxu0 %v6090
        %6233 = vmatpush1.bf16.msra.mxu0 %v6089
        %6234 = vmatprep.subr.bf16.mxu0 %v6093
        %6235 = vmatpush1.bf16.msra.mxu0 %v6092
        %6236 = vmatprep.subr.bf16.mxu0 0
        %6237 = vmatpush1.bf16.msra.mxu0 0
        %6238 = vmatprep.subr.bf16.mxu0 0
        %6239 = vmatpush1.bf16.msra.mxu0 0
        %6240 = vmatprep.subr.bf16.mxu0 0
        %6241 = vmatpush1.bf16.msra.mxu0 0
        %6242 = vmatprep.subr.bf16.mxu0 0
        %6243 = vmatpush1.bf16.msra.mxu0 0
        %6244 = vmatprep.subr.bf16.mxu0 0
        %6245 = vmatpush1.bf16.msra.mxu0 0
        %6246 = vmatprep.subr.bf16.mxu0 0
        %6247 = vmatpush1.bf16.msra.mxu0 0
        %6248 = vmatprep.subr.bf16.mxu0 0
        %6249 = vmatpush1.bf16.msra.mxu0 0
        %6250 = vmatprep.subr.bf16.mxu0 0
        %6251 = vmatpush1.bf16.msra.mxu0 0
        %6252 = vmatprep.mubr.bf16.mxu0 0
        %6253 = vmatmul.mubr.bf16.gmra.mrb[0].mxu0 %v5666
        %v6254 = vpop.f32.mrb[0].mxu0
        %v6255 = vadd.f32 %v6202, %v6254
        %v6256 = vpop.f32.mrb[0].mxu0
        %v6257 = vadd.f32 %v6204, %v6256
        %v6258 = vpop.f32.mrb[0].mxu0
        %v6259 = vadd.f32 %v6206, %v6258
        %v6260 = vpop.f32.mrb[0].mxu0
        %v6261 = vadd.f32 %v6208, %v6260
        %6262 = vmatprep.mubr.bf16.mxu0 0
        %6263 = vmatmul.mubr.bf16.gmra.mrb[0].mxu0 %v5669
        %v6264 = vpop.f32.mrb[0].mxu0
        %v6265 = vadd.f32 %v6212, %v6264
        %v6266 = vpop.f32.mrb[0].mxu0
        %v6267 = vadd.f32 %v6214, %v6266
        %v6268 = vpop.f32.mrb[0].mxu0
        %v6269 = vadd.f32 %v6216, %v6268
        %v6270 = vpop.f32.mrb[0].mxu0
        %v6271 = vadd.f32 %v6218, %v6270
        %6272 = vdwg.mxu0
        %6273 = vmatprep.subr.bf16.mxu0 0
        %6274 = vmatpush1.bf16.msra.mxu0 %v6025
        %6275 = vmatprep.subr.bf16.mxu0 0
        %6276 = vmatpush1.bf16.msra.mxu0 %v6028
        %6277 = vmatprep.subr.bf16.mxu0 0
        %6278 = vmatpush1.bf16.msra.mxu0 %v6031
        %6279 = vmatprep.subr.bf16.mxu0 0
        %6280 = vmatpush1.bf16.msra.mxu0 %v6034
        %6281 = vmatprep.subr.bf16.mxu0 0
        %6282 = vmatpush1.bf16.msra.mxu0 %v6037
        %6283 = vmatprep.subr.bf16.mxu0 0
        %6284 = vmatpush1.bf16.msra.mxu0 %v6040
        %6285 = vmatprep.subr.bf16.mxu0 0
        %6286 = vmatpush1.bf16.msra.mxu0 %v6043
        %6287 = vmatprep.subr.bf16.mxu0 0
        %6288 = vmatpush1.bf16.msra.mxu0 %v6046
        %6289 = vmatprep.subr.bf16.mxu0 0
        %6290 = vmatpush1.bf16.msra.mxu0 %v6049
        %6291 = vmatprep.subr.bf16.mxu0 0
        %6292 = vmatpush1.bf16.msra.mxu0 %v6052
        %6293 = vmatprep.subr.bf16.mxu0 0
        %6294 = vmatpush1.bf16.msra.mxu0 %v6055
        %6295 = vmatprep.subr.bf16.mxu0 0
        %6296 = vmatpush1.bf16.msra.mxu0 %v6058
        %6297 = vmatprep.subr.bf16.mxu0 0
        %6298 = vmatpush1.bf16.msra.mxu0 %v6061
        %6299 = vmatprep.subr.bf16.mxu0 0
        %6300 = vmatpush1.bf16.msra.mxu0 %v6064
        %6301 = vmatprep.subr.bf16.mxu0 0
        %6302 = vmatpush1.bf16.msra.mxu0 %v6067
        %6303 = vmatprep.subr.bf16.mxu0 0
        %6304 = vmatpush1.bf16.msra.mxu0 %v6070
        %6305 = vmatprep.mubr.bf16.mxu0 %v5665
        %6306 = vmatmul.mubr.bf16.gmra.mrb[0].mxu0 %v5664
        %v6307 = vpop.f32.mrb[0].mxu0
        %v6308 = vadd.f32 %v5779, %v6307
        %v6309 = vpop.f32.mrb[0].mxu0
        %v6310 = vpop.f32.mrb[0].mxu0
        %v6311 = vadd.f32 %v5779, %v6310
        %v6312 = vpop.f32.mrb[0].mxu0
        %6313 = vmatprep.mubr.bf16.mxu0 %v5668
        %6314 = vmatmul.mubr.bf16.gmra.mrb[0].mxu0 %v5667
        %v6315 = vpop.f32.mrb[0].mxu0
        %v6316 = vadd.f32 %v5779, %v6315
        %v6317 = vpop.f32.mrb[0].mxu0
        %v6318 = vpop.f32.mrb[0].mxu0
        %v6319 = vadd.f32 %v5779, %v6318
        %v6320 = vpop.f32.mrb[0].mxu0
        %6321 = vdwg.mxu0
        %6322 = vmatprep.subr.bf16.mxu0 0
        %6323 = vmatpush1.bf16.msra.mxu0 %v6073
        %6324 = vmatprep.subr.bf16.mxu0 0
        %6325 = vmatpush1.bf16.msra.mxu0 %v6076
        %6326 = vmatprep.subr.bf16.mxu0 0
        %6327 = vmatpush1.bf16.msra.mxu0 %v6079
        %6328 = vmatprep.subr.bf16.mxu0 0
        %6329 = vmatpush1.bf16.msra.mxu0 %v6082
        %6330 = vmatprep.subr.bf16.mxu0 0
        %6331 = vmatpush1.bf16.msra.mxu0 %v6085
        %6332 = vmatprep.subr.bf16.mxu0 0
        %6333 = vmatpush1.bf16.msra.mxu0 %v6088
        %6334 = vmatprep.subr.bf16.mxu0 0
        %6335 = vmatpush1.bf16.msra.mxu0 %v6091
        %6336 = vmatprep.subr.bf16.mxu0 0
        %6337 = vmatpush1.bf16.msra.mxu0 %v6094
        %6338 = vmatprep.subr.bf16.mxu0 0
        %6339 = vmatpush1.bf16.msra.mxu0 0
        %6340 = vmatprep.subr.bf16.mxu0 0
        %6341 = vmatpush1.bf16.msra.mxu0 0
        %6342 = vmatprep.subr.bf16.mxu0 0
        %6343 = vmatpush1.bf16.msra.mxu0 0
        %6344 = vmatprep.subr.bf16.mxu0 0
        %6345 = vmatpush1.bf16.msra.mxu0 0
        %6346 = vmatprep.subr.bf16.mxu0 0
        %6347 = vmatpush1.bf16.msra.mxu0 0
        %6348 = vmatprep.subr.bf16.mxu0 0
        %6349 = vmatpush1.bf16.msra.mxu0 0
        %6350 = vmatprep.subr.bf16.mxu0 0
        %6351 = vmatpush1.bf16.msra.mxu0 0
        %6352 = vmatprep.subr.bf16.mxu0 0
        %6353 = vmatpush1.bf16.msra.mxu0 0
        %6354 = vmatprep.mubr.bf16.mxu0 0
        %6355 = vmatmul.mubr.bf16.gmra.mrb[0].mxu0 %v5666
        %v6356 = vpop.f32.mrb[0].mxu0
        %v6357 = vadd.f32 %v6308, %v6356
        %v6358 = vpop.f32.mrb[0].mxu0
        %v6359 = vpop.f32.mrb[0].mxu0
        %v6360 = vadd.f32 %v6311, %v6359
        %v6361 = vpop.f32.mrb[0].mxu0
        %6362 = vmatprep.mubr.bf16.mxu0 0
        %6363 = vmatmul.mubr.bf16.gmra.mrb[0].mxu0 %v5669
        %v6364 = vpop.f32.mrb[0].mxu0
        %v6365 = vadd.f32 %v6316, %v6364
        %v6366 = vpop.f32.mrb[0].mxu0
        %v6367 = vpop.f32.mrb[0].mxu0
        %v6368 = vadd.f32 %v6319, %v6367
        %v6369 = vpop.f32.mrb[0].mxu0
        %6370 = vdwg.mxu0
        %6371 = vst [vmem:[%s219] sm:$0xff] %v6255
        %6372 = vst [vmem:[%s219 + $0x8] sm:$0xff] %v6257
        %6373 = vst [vmem:[%s219 + $0x10] sm:$0xff] %v6357
        %6374 = vst [vmem:[%s219 + $0x18] sm:$0xff] %v6259
        %6375 = vst [vmem:[%s219 + $0x20] sm:$0xff] %v6261
        %6376 = vst [vmem:[%s219 + $0x28] sm:$0xff] %v6360
        %6377 = vst [vmem:[%s219 + $0x30] sm:$0xff] %v6265
        %6378 = vst [vmem:[%s219 + $0x38] sm:$0xff] %v6267
        %6379 = vst [vmem:[%s219 + $0x40] sm:$0xff] %v6365
        %6380 = vst [vmem:[%s219 + $0x48] sm:$0xff] %v6269
        %6381 = vst [vmem:[%s219 + $0x50] sm:$0xff] %v6271
        %6382 = vst [vmem:[%s219 + $0x58] sm:$0xff] %v6368
        %s6383 = smul.u32 2, %s16
        %p6384 = scmp.lt.s32.totalorder %s6383, 3
        %s6385 = scalar_select %p6384, %s6383, 3
        %s6386 = smul.addr %s6385, 6
        %s6387 = smul.addr %s6386, 8
        %s6388 = scalar_lea.vmem %s4, %s6387
        // Predicated region
        $region41: #{multihead_forward.1} parent=35 // pred_check
          %p6389 = pneg %p123
        $region42: #{multihead_forward.1} parent=35 // pred_check_branch
          %6391 = sbr.rel (%p6389) target = $region44
        $region43: #{multihead_forward.1} parent=35 // pred_region
          %s6392 = smul.u32 2, %s16
        $region44: #{multihead_forward.1} parent=35 // pred_fallthru
          _
      $region36: #{multihead_forward.1} parent=5 // pred_fallthru
        _
      %p6393 = scmp.le.s32.totalorder 2, %s11
      // Predicated region
      $region45: #{multihead_forward.1} parent=5 // pred_check
        %p6394 = pneg %p6393
      $region46: #{multihead_forward.1} parent=5 // pred_check_branch
        %6396 = sbr.rel (%p6394) target = $region48
      $region47: #{multihead_forward.1} parent=5 // pred_region
        %s6397 = ssub.s32 %s11, 2
        // Predicated region
        $region49: #{multihead_forward.1} parent=47 // pred_check
          %p6398 = pneg %p129
        $region50: #{multihead_forward.1} parent=47 // pred_check_branch
          %6400 = sbr.rel (%p6398) target = $region52
        $region51: #{multihead_forward.1} parent=47 // pred_region
          %s6401 = smul.u32 2, %s17
          %p6402 = scmp.lt.s32.totalorder %s6401, 3
          %s6403 = scalar_select %p6402, %s6401, 3
          %s6404 = smul.addr %s6403, 6
          %s6405 = smul.addr %s6404, 8
          %s6406 = scalar_lea.vmem %s4, %s6405
        $region52: #{multihead_forward.1} parent=47 // pred_fallthru
          _
      $region48: #{multihead_forward.1} parent=5 // pred_fallthru
        _
    $region6: #{multihead_forward.1} parent=1 // loop_footer
      %s15 = sadd.s32 1, %s11
    $region7: #{multihead_forward.1} parent=1 // loop_footer_branch
      %10 = sbr.rel target = $region3
    $region8: #{multihead_forward.1} parent=1 // loop_exit
      _
    %6407 = vsyncpa [#allocation4], 1
    %s6408 = scalar_lea.sflag [#allocation4], 1
    %6409 = vsyncpa %s6408, 1

</llo_original>
